<compile_context>
chip_gen: v6e
topology: v6e:2x2x1
jax: 0.10.0
libtpu: 0.0.40
codegen_flags: <defaults>
</compile_context>

<pallas_src>
import jax
import jax.numpy as jnp
from jax import lax
from jax.experimental import pallas as pl
from jax.experimental.pallas import tpu as pltpu

# Model hyper-params (LeNet(out_dim=4, in_channel=3, img_sz=16)).
OUT_DIM = 4
IN_CH = 3
IMG_SZ = 16
FEAT_MAP_SZ = IMG_SZ // 16
N_FEAT = 256 * FEAT_MAP_SZ * FEAT_MAP_SZ          # 256
BATCH = 8                                         # so view(-1, n_feat) divides evenly
EPS = 1e-5
LANE = 128


def _round_up(x, m):
    return (x + m - 1) // m * m


# ----------------------------- Pallas kernels ------------------------------ #

def _conv_bn_relu_pool_kernel(x_ref, w_ref, scale_ref, shift_ref, o_ref):
    """x_ref: (4, tm, Kp) bf16 im2col patches, quadrant-major (the 4 positions of each
    2x2 pool window, rows in (n, h', w') order).  One MXU matmul per quadrant with f32
    accumulation, fused per-channel scale/shift (conv bias + eval-mode BN) + ReLU on
    the VPU; the 2x2 max-pool is then just an elementwise max of the 4 quadrants."""
    w = w_ref[...]
    scale = scale_ref[...]
    shift = shift_ref[...]

    def quadrant(q):
        y = jnp.dot(x_ref[q], w, preferred_element_type=jnp.float32)
        return jnp.maximum(y * scale + shift, 0.0)

    pooled = jnp.maximum(jnp.maximum(quadrant(0), quadrant(1)),
                         jnp.maximum(quadrant(2), quadrant(3)))
    o_ref[...] = pooled.astype(o_ref.dtype)


def _fc_fused_kernel(x_ref, w3_ref, s3_ref, sh3_ref, w4_ref, b4_ref, o_ref):
    """Linear(n_feat,500)+BN1d+ReLU followed by Linear(500,out_dim), fused.
    The intermediate h stays on-chip (never written to HBM)."""
    h = jnp.dot(x_ref[...], w3_ref[...], preferred_element_type=jnp.float32)
    h = jnp.maximum(h * s3_ref[...] + sh3_ref[...], 0.0)
    y = jnp.dot(h.astype(jnp.bfloat16), w4_ref[...],
                preferred_element_type=jnp.float32)
    o_ref[...] = (y + b4_ref[...]).astype(o_ref.dtype)


# ------------------------------ Kernel wrappers ----------------------------- #

def conv_bn_relu_pool(x_nhwc, w_mat, scale, shift):
    """5x5 conv (pad=2, stride=1) + scale/shift + ReLU + 2x2 max-pool as ONE pallas_call.

    x_nhwc : (N, H, W, C) float32
    w_mat  : (Kp, Np) bf16, Kp >= 25*C, Np >= Cout (zero padded, lane aligned)
    returns: (N*(H//2)*(W//2), Np) float32, rows in (n, h', w') order (NHWC flattened).
    """
    N, H, W, C = x_nhwc.shape
    Kp, Np = w_mat.shape
    Mp = N * (H // 2) * (W // 2)

    # im2col in XLA glue (pad + 25 shifted slices + concat fuse into one HBM write),
    # grouped quadrant-major so the pool fuses into the kernel epilogue.
    xp = jnp.pad(x_nhwc, ((0, 0), (2, 2), (2, 2), (0, 0)))
    cols = [xp[:, kh:kh + H, kw:kw + W, :] for kh in range(5) for kw in range(5)]
    patches = jnp.concatenate(cols, axis=-1)                       # (N, H, W, 25*C)
    quads = [patches[:, di::2, dj::2, :].reshape(Mp, 25 * C)
             for di in (0, 1) for dj in (0, 1)]
    q = jnp.stack(quads, axis=0)                                   # (4, Mp, 25*C)
    q = jnp.pad(q, ((0, 0), (0, 0), (0, Kp - 25 * C))).astype(jnp.bfloat16)

    tm = Mp // 2 if Mp % 16 == 0 else Mp       # 2 'parallel' steps -> both TCs on v7x
    grid = (Mp // tm,)
    return pl.pallas_call(
        _conv_bn_relu_pool_kernel,
        out_shape=jax.ShapeDtypeStruct((Mp, Np), jnp.float32),
        grid=grid,
        in_specs=[
            pl.BlockSpec((4, tm, Kp), lambda i: (0, i, 0)),
            pl.BlockSpec((Kp, Np), lambda i: (0, 0)),
            pl.BlockSpec((1, Np), lambda i: (0, 0)),
            pl.BlockSpec((1, Np), lambda i: (0, 0)),
        ],
        out_specs=pl.BlockSpec((tm, Np), lambda i: (i, 0)),
        compiler_params=pltpu.CompilerParams(dimension_semantics=("parallel",)),
    )(q, w_mat, scale, shift)


def fc_fused(flat, w3, s3, sh3, w4, b4):
    Mp, K = flat.shape
    K3, N3 = w3.shape
    K4, N4 = w4.shape
    return pl.pallas_call(
        _fc_fused_kernel,
        out_shape=jax.ShapeDtypeStruct((Mp, N4), jnp.float32),
        grid=(1,),
        in_specs=[
            pl.BlockSpec((Mp, K), lambda i: (0, 0)),
            pl.BlockSpec((K3, N3), lambda i: (0, 0)),
            pl.BlockSpec((1, N3), lambda i: (0, 0)),
            pl.BlockSpec((1, N3), lambda i: (0, 0)),
            pl.BlockSpec((K4, N4), lambda i: (0, 0)),
            pl.BlockSpec((1, N4), lambda i: (0, 0)),
        ],
        out_specs=pl.BlockSpec((Mp, N4), lambda i: (0, 0)),
    )(flat, w3, s3, sh3, w4, b4)


# ------------------------------- Param prep --------------------------------- #

def conv_weight_to_mat(w_oihw, kp, np_):
    """(Cout,Cin,5,5) -> (kp, np_) bf16; column order matches the im2col above."""
    cout, cin, kh, kw = w_oihw.shape
    m = jnp.transpose(w_oihw, (2, 3, 1, 0)).reshape(kh * kw * cin, cout)
    m = jnp.pad(m, ((0, kp - kh * kw * cin), (0, np_ - cout)))
    return m.astype(jnp.bfloat16)


def bn_fold(gamma, beta, mean, var, bias, np_):
    """Eval-mode BN folded with the preceding bias into y*scale + shift, zero-padded
    to np_ lanes (padded channels stay exactly 0 after ReLU)."""
    scale = gamma / jnp.sqrt(var + EPS)
    shift = scale * (bias - mean) + beta
    n = scale.shape[0]
    pad = (0, np_ - n)
    return (jnp.pad(scale, pad).reshape(1, np_).astype(jnp.float32),
            jnp.pad(shift, pad).reshape(1, np_).astype(jnp.float32))


# ------------------------------ Forward pass -------------------------------- #

def lenet_pallas(x_nchw, p):
    N = x_nchw.shape[0]
    x = jnp.transpose(x_nchw, (0, 2, 3, 1))                        # NHWC

    # conv1 (3->20, 5x5, pad 2) + BN + ReLU + maxpool(2): one fused kernel.
    s1, sh1 = bn_fold(p["g1"], p["be1"], p["m1"], p["v1"], p["b1"], LANE)
    w1 = conv_weight_to_mat(p["w1"], _round_up(25 * IN_CH, LANE), LANE)
    y1 = conv_bn_relu_pool(x, w1, s1, sh1)                         # (N*8*8, 128)
    y1 = y1.reshape(N, IMG_SZ // 2, IMG_SZ // 2, LANE)[..., :20]   # (N, 8, 8, 20)

    # conv2 (20->50, 5x5, pad 2) + BN + ReLU + maxpool(2): one fused kernel.
    s2, sh2 = bn_fold(p["g2"], p["be2"], p["m2"], p["v2"], p["b2"], LANE)
    w2 = conv_weight_to_mat(p["w2"], _round_up(25 * 20, LANE), LANE)
    y2 = conv_bn_relu_pool(y1, w2, s2, sh2)                        # (N*4*4, 128)
    y2 = y2.reshape(N, IMG_SZ // 4, IMG_SZ // 4, LANE)[..., :50]   # (N, 4, 4, 50)

    # x.view(-1, n_feat) in PyTorch NCHW flattening order.
    flat = jnp.transpose(y2, (0, 3, 1, 2)).reshape(-1, N_FEAT)     # (25, 256)
    m = flat.shape[0]
    mp = _round_up(m, 8)                                           # 32 (sublane pad)

    # Linear(n_feat,500)+BN1d+ReLU and Linear(500,out_dim): one fused kernel.
    n3 = _round_up(500, LANE)                                      # 512
    s3, sh3 = bn_fold(p["g3"], p["be3"], p["m3"], p["v3"], p["bl1"], n3)
    w3 = jnp.pad(p["wl1"].T, ((0, 0), (0, n3 - 500))).astype(jnp.bfloat16)       # (256,512)
    w4 = jnp.pad(p["wlast"].T, ((0, n3 - 500), (0, LANE - OUT_DIM))).astype(jnp.bfloat16)  # (512,128)
    b4 = jnp.pad(p["blast"], (0, LANE - OUT_DIM)).reshape(1, LANE).astype(jnp.float32)
    flat_p = jnp.pad(flat, ((0, mp - m), (0, 0))).astype(jnp.bfloat16)           # (32,256)
    out = fc_fused(flat_p, w3, s3, sh3, w4, b4)                    # (32, 128)
    return out[:m, :OUT_DIM]


# Pure-JAX reference (XLA conv / reduce_window, true f32) for correctness checking.
def lenet_ref(x, p):
    hp = lax.Precision.HIGHEST

    def bn4(y, g, b, m, v):
        s = (g / jnp.sqrt(v + EPS))[None, :, None, None]
        return (y - m[None, :, None, None]) * s + b[None, :, None, None]

    y = lax.conv_general_dilated(x, p["w1"], (1, 1), ((2, 2), (2, 2)),
                                 dimension_numbers=("NCHW", "OIHW", "NCHW"), precision=hp)
    y = jnp.maximum(bn4(y + p["b1"][None, :, None, None], p["g1"], p["be1"], p["m1"], p["v1"]), 0.0)
    y = lax.reduce_window(y, -jnp.inf, lax.max, (1, 1, 2, 2), (1, 1, 2, 2), "VALID")
    y = lax.conv_general_dilated(y, p["w2"], (1, 1), ((2, 2), (2, 2)),
                                 dimension_numbers=("NCHW", "OIHW", "NCHW"), precision=hp)
    y = jnp.maximum(bn4(y + p["b2"][None, :, None, None], p["g2"], p["be2"], p["m2"], p["v2"]), 0.0)
    y = lax.reduce_window(y, -jnp.inf, lax.max, (1, 1, 2, 2), (1, 1, 2, 2), "VALID")
    flat = y.reshape(-1, N_FEAT)
    h = jnp.dot(flat, p["wl1"].T, precision=hp) + p["bl1"]
    h = jnp.maximum((h - p["m3"]) * (p["g3"] / jnp.sqrt(p["v3"] + EPS)) + p["be3"], 0.0)
    return jnp.dot(h, p["wlast"].T, precision=hp) + p["blast"]


# ------------------------------ Param init ---------------------------------- #

def init_params(key):
    ks = jax.random.split(key, 20)
    n = lambda k, s: (0.1 * jax.random.normal(k, s)).astype(jnp.float32)
    u = lambda k, s: jax.random.uniform(k, s, jnp.float32, 0.5, 1.5)
    p = {}
    p["w1"], p["b1"] = n(ks[0], (20, IN_CH, 5, 5)), n(ks[1], (20,))
    p["g1"], p["be1"], p["m1"], p["v1"] = u(ks[2], (20,)), n(ks[3], (20,)), n(ks[4], (20,)), u(ks[5], (20,))
    p["w2"], p["b2"] = n(ks[6], (50, 20, 5, 5)), n(ks[7], (50,))
    p["g2"], p["be2"], p["m2"], p["v2"] = u(ks[8], (50,)), n(ks[9], (50,)), n(ks[10], (50,)), u(ks[11], (50,))
    p["wl1"], p["bl1"] = n(ks[12], (500, N_FEAT)), n(ks[13], (500,))
    p["g3"], p["be3"], p["m3"], p["v3"] = u(ks[14], (500,)), n(ks[15], (500,)), n(ks[16], (500,)), u(ks[17], (500,))
    p["wlast"], p["blast"] = n(ks[18], (OUT_DIM, 500)), n(ks[19], (OUT_DIM,))
    return p


if __name__ == "__main__":
    key = jax.random.PRNGKey(0)
    kx, kp = jax.random.split(key)
    x = jax.random.normal(kx, (BATCH, IN_CH, IMG_SZ, IMG_SZ), jnp.float32)
    params = init_params(kp)

    out = jax.block_until_ready(jax.jit(lenet_pallas)(x, params))
    ref = jax.block_until_ready(jax.jit(lenet_ref)(x, params))

    expected_rows = (BATCH * 50 * (IMG_SZ // 4) ** 2) // N_FEAT    # view(-1, n_feat)
    assert out.shape == (expected_rows, OUT_DIM), out.shape
    err = float(jnp.max(jnp.abs(out - ref)))
    assert jnp.allclose(out, ref, rtol=3e-2, atol=3e-2), err
    print("KERNEL_OK")
</pallas_src>

<mosaic_0001>
module attributes {stable_mosaic.version = 11 : i64} {
  func.func @_conv_bn_relu_pool_kernel(%arg0: i32, %arg1: memref<4x256x128xbf16, #tpu.memory_space<vmem>>, %arg2: memref<128x128xbf16, #tpu.memory_space<vmem>>, %arg3: memref<1x128xf32, #tpu.memory_space<vmem>>, %arg4: memref<1x128xf32, #tpu.memory_space<vmem>>, %arg5: memref<256x128xf32, #tpu.memory_space<vmem>>) attributes {dimension_semantics = [#tpu.dimension_semantics<parallel>], iteration_bounds = array<i64: 2>, scalar_prefetch = 0 : i64, scratch_operands = 0 : i64, tpu.core_type = #tpu.core_type<tc>, window_params = [{transform_indices = @transform_0, window_bounds = array<i64: 4, 256, 128>}, {pipeline_mode = #tpu.pipeline_mode<synchronous>, transform_indices = @transform_1, window_bounds = array<i64: 128, 128>}, {pipeline_mode = #tpu.pipeline_mode<synchronous>, transform_indices = @transform_2, window_bounds = array<i64: 1, 128>}, {pipeline_mode = #tpu.pipeline_mode<synchronous>, transform_indices = @transform_3, window_bounds = array<i64: 1, 128>}, {transform_indices = @transform_4, window_bounds = array<i64: 256, 128>}]} {
    %c0 = arith.constant 0 : index
    %c0_0 = arith.constant 0 : index
    %0 = vector.load %arg2[%c0, %c0_0] : memref<128x128xbf16, #tpu.memory_space<vmem>>, vector<128x128xbf16>
    %c0_1 = arith.constant 0 : index
    %c0_2 = arith.constant 0 : index
    %1 = vector.load %arg3[%c0_1, %c0_2] : memref<1x128xf32, #tpu.memory_space<vmem>>, vector<1x128xf32>
    %c0_3 = arith.constant 0 : index
    %c0_4 = arith.constant 0 : index
    %2 = vector.load %arg4[%c0_3, %c0_4] : memref<1x128xf32, #tpu.memory_space<vmem>>, vector<1x128xf32>
    %c0_5 = arith.constant 0 : index
    %c0_6 = arith.constant 0 : index
    %c0_7 = arith.constant 0 : index
    %3 = vector.load %arg1[%c0_5, %c0_6, %c0_7] : memref<4x256x128xbf16, #tpu.memory_space<vmem>>, vector<1x256x128xbf16>
    %4 = vector.shape_cast %3 : vector<1x256x128xbf16> to vector<256x128xbf16>
    %cst = arith.constant dense<0.000000e+00> : vector<256x128xf32>
    %5 = tpu.matmul %4, %0, %cst {dimension_numbers = #tpu.dot_dimension_numbers<[1], [0], [0], [1], [0, 0, 1, 1], [], []>} : vector<256x128xbf16>, vector<128x128xbf16>, vector<256x128xf32> -> vector<256x128xf32>
    %6 = vector.broadcast %1 : vector<1x128xf32> to vector<256x128xf32>
    %7 = arith.mulf %5, %6 : vector<256x128xf32>
    %8 = vector.broadcast %2 : vector<1x128xf32> to vector<256x128xf32>
    %9 = arith.addf %7, %8 : vector<256x128xf32>
    %cst_8 = arith.constant 0.000000e+00 : f32
    %10 = vector.broadcast %cst_8 : f32 to vector<256x128xf32>
    %11 = arith.maximumf %9, %10 : vector<256x128xf32>
    %c1 = arith.constant 1 : index
    %c0_9 = arith.constant 0 : index
    %c0_10 = arith.constant 0 : index
    %12 = vector.load %arg1[%c1, %c0_9, %c0_10] : memref<4x256x128xbf16, #tpu.memory_space<vmem>>, vector<1x256x128xbf16>
    %13 = vector.shape_cast %12 : vector<1x256x128xbf16> to vector<256x128xbf16>
    %cst_11 = arith.constant dense<0.000000e+00> : vector<256x128xf32>
    %14 = tpu.matmul %13, %0, %cst_11 {dimension_numbers = #tpu.dot_dimension_numbers<[1], [0], [0], [1], [0, 0, 1, 1], [], []>} : vector<256x128xbf16>, vector<128x128xbf16>, vector<256x128xf32> -> vector<256x128xf32>
    %15 = vector.broadcast %1 : vector<1x128xf32> to vector<256x128xf32>
    %16 = arith.mulf %14, %15 : vector<256x128xf32>
    %17 = vector.broadcast %2 : vector<1x128xf32> to vector<256x128xf32>
    %18 = arith.addf %16, %17 : vector<256x128xf32>
    %cst_12 = arith.constant 0.000000e+00 : f32
    %19 = vector.broadcast %cst_12 : f32 to vector<256x128xf32>
    %20 = arith.maximumf %18, %19 : vector<256x128xf32>
    %21 = arith.maximumf %11, %20 : vector<256x128xf32>
    %c2 = arith.constant 2 : index
    %c0_13 = arith.constant 0 : index
    %c0_14 = arith.constant 0 : index
    %22 = vector.load %arg1[%c2, %c0_13, %c0_14] : memref<4x256x128xbf16, #tpu.memory_space<vmem>>, vector<1x256x128xbf16>
    %23 = vector.shape_cast %22 : vector<1x256x128xbf16> to vector<256x128xbf16>
    %cst_15 = arith.constant dense<0.000000e+00> : vector<256x128xf32>
    %24 = tpu.matmul %23, %0, %cst_15 {dimension_numbers = #tpu.dot_dimension_numbers<[1], [0], [0], [1], [0, 0, 1, 1], [], []>} : vector<256x128xbf16>, vector<128x128xbf16>, vector<256x128xf32> -> vector<256x128xf32>
    %25 = vector.broadcast %1 : vector<1x128xf32> to vector<256x128xf32>
    %26 = arith.mulf %24, %25 : vector<256x128xf32>
    %27 = vector.broadcast %2 : vector<1x128xf32> to vector<256x128xf32>
    %28 = arith.addf %26, %27 : vector<256x128xf32>
    %cst_16 = arith.constant 0.000000e+00 : f32
    %29 = vector.broadcast %cst_16 : f32 to vector<256x128xf32>
    %30 = arith.maximumf %28, %29 : vector<256x128xf32>
    %c3 = arith.constant 3 : index
    %c0_17 = arith.constant 0 : index
    %c0_18 = arith.constant 0 : index
    %31 = vector.load %arg1[%c3, %c0_17, %c0_18] : memref<4x256x128xbf16, #tpu.memory_space<vmem>>, vector<1x256x128xbf16>
    %32 = vector.shape_cast %31 : vector<1x256x128xbf16> to vector<256x128xbf16>
    %cst_19 = arith.constant dense<0.000000e+00> : vector<256x128xf32>
    %33 = tpu.matmul %32, %0, %cst_19 {dimension_numbers = #tpu.dot_dimension_numbers<[1], [0], [0], [1], [0, 0, 1, 1], [], []>} : vector<256x128xbf16>, vector<128x128xbf16>, vector<256x128xf32> -> vector<256x128xf32>
    %34 = vector.broadcast %1 : vector<1x128xf32> to vector<256x128xf32>
    %35 = arith.mulf %33, %34 : vector<256x128xf32>
    %36 = vector.broadcast %2 : vector<1x128xf32> to vector<256x128xf32>
    %37 = arith.addf %35, %36 : vector<256x128xf32>
    %cst_20 = arith.constant 0.000000e+00 : f32
    %38 = vector.broadcast %cst_20 : f32 to vector<256x128xf32>
    %39 = arith.maximumf %37, %38 : vector<256x128xf32>
    %40 = arith.maximumf %30, %39 : vector<256x128xf32>
    %41 = arith.maximumf %21, %40 : vector<256x128xf32>
    %c0_21 = arith.constant 0 : index
    %c0_22 = arith.constant 0 : index
    %42 = vector.load %arg5[%c0_21, %c0_22] : memref<256x128xf32, #tpu.memory_space<vmem>>, vector<256x128xf32>
    tpu.vector_store %arg5[%c0_21, %c0_22], %41 {strides = array<i32>} : memref<256x128xf32, #tpu.memory_space<vmem>>, vector<256x128xf32>,
    return
  }
  func.func @transform_0(%arg0: i32) -> (i32, i32, i32) {
    %c0_i32 = arith.constant 0 : i32
    %c0_i32_0 = arith.constant 0 : i32
    %c0_i32_1 = arith.constant 0 : i32
    return %c0_i32, %arg0, %c0_i32_0 : i32, i32, i32
  }
  func.func @transform_1(%arg0: i32) -> (i32, i32) {
    %c0_i32 = arith.constant 0 : i32
    %c0_i32_0 = arith.constant 0 : i32
    %c0_i32_1 = arith.constant 0 : i32
    return %c0_i32, %c0_i32_0 : i32, i32
  }
  func.func @transform_2(%arg0: i32) -> (i32, i32) {
    %c0_i32 = arith.constant 0 : i32
    %c0_i32_0 = arith.constant 0 : i32
    %c0_i32_1 = arith.constant 0 : i32
    return %c0_i32, %c0_i32_0 : i32, i32
  }
  func.func @transform_3(%arg0: i32) -> (i32, i32) {
    %c0_i32 = arith.constant 0 : i32
    %c0_i32_0 = arith.constant 0 : i32
    %c0_i32_1 = arith.constant 0 : i32
    return %c0_i32, %c0_i32_0 : i32, i32
  }
  func.func @transform_4(%arg0: i32) -> (i32, i32) {
    %c0_i32 = arith.constant 0 : i32
    %c0_i32_0 = arith.constant 0 : i32
    return %arg0, %c0_i32 : i32, i32
  }
}

module attributes {stable_mosaic.version = 11 : i64} {
  func.func @_conv_bn_relu_pool_kernel(%arg0: i32, %arg1: memref<4x64x512xbf16, #tpu.memory_space<vmem>>, %arg2: memref<512x128xbf16, #tpu.memory_space<vmem>>, %arg3: memref<1x128xf32, #tpu.memory_space<vmem>>, %arg4: memref<1x128xf32, #tpu.memory_space<vmem>>, %arg5: memref<64x128xf32, #tpu.memory_space<vmem>>) attributes {dimension_semantics = [#tpu.dimension_semantics<parallel>], iteration_bounds = array<i64: 2>, scalar_prefetch = 0 : i64, scratch_operands = 0 : i64, tpu.core_type = #tpu.core_type<tc>, window_params = [{transform_indices = @transform_0, window_bounds = array<i64: 4, 64, 512>}, {pipeline_mode = #tpu.pipeline_mode<synchronous>, transform_indices = @transform_1, window_bounds = array<i64: 512, 128>}, {pipeline_mode = #tpu.pipeline_mode<synchronous>, transform_indices = @transform_2, window_bounds = array<i64: 1, 128>}, {pipeline_mode = #tpu.pipeline_mode<synchronous>, transform_indices = @transform_3, window_bounds = array<i64: 1, 128>}, {transform_indices = @transform_4, window_bounds = array<i64: 64, 128>}]} {
    %c0 = arith.constant 0 : index
    %c0_0 = arith.constant 0 : index
    %0 = vector.load %arg2[%c0, %c0_0] : memref<512x128xbf16, #tpu.memory_space<vmem>>, vector<512x128xbf16>
    %c0_1 = arith.constant 0 : index
    %c0_2 = arith.constant 0 : index
    %1 = vector.load %arg3[%c0_1, %c0_2] : memref<1x128xf32, #tpu.memory_space<vmem>>, vector<1x128xf32>
    %c0_3 = arith.constant 0 : index
    %c0_4 = arith.constant 0 : index
    %2 = vector.load %arg4[%c0_3, %c0_4] : memref<1x128xf32, #tpu.memory_space<vmem>>, vector<1x128xf32>
    %c0_5 = arith.constant 0 : index
    %c0_6 = arith.constant 0 : index
    %c0_7 = arith.constant 0 : index
    %3 = vector.load %arg1[%c0_5, %c0_6, %c0_7] : memref<4x64x512xbf16, #tpu.memory_space<vmem>>, vector<1x64x512xbf16>
    %4 = vector.shape_cast %3 : vector<1x64x512xbf16> to vector<64x512xbf16>
    %cst = arith.constant dense<0.000000e+00> : vector<64x128xf32>
    %5 = tpu.matmul %4, %0, %cst {dimension_numbers = #tpu.dot_dimension_numbers<[1], [0], [0], [1], [0, 0, 1, 1], [], []>} : vector<64x512xbf16>, vector<512x128xbf16>, vector<64x128xf32> -> vector<64x128xf32>
    %6 = vector.broadcast %1 : vector<1x128xf32> to vector<64x128xf32>
    %7 = arith.mulf %5, %6 : vector<64x128xf32>
    %8 = vector.broadcast %2 : vector<1x128xf32> to vector<64x128xf32>
    %9 = arith.addf %7, %8 : vector<64x128xf32>
    %cst_8 = arith.constant 0.000000e+00 : f32
    %10 = vector.broadcast %cst_8 : f32 to vector<64x128xf32>
    %11 = arith.maximumf %9, %10 : vector<64x128xf32>
    %c1 = arith.constant 1 : index
    %c0_9 = arith.constant 0 : index
    %c0_10 = arith.constant 0 : index
    %12 = vector.load %arg1[%c1, %c0_9, %c0_10] : memref<4x64x512xbf16, #tpu.memory_space<vmem>>, vector<1x64x512xbf16>
    %13 = vector.shape_cast %12 : vector<1x64x512xbf16> to vector<64x512xbf16>
    %cst_11 = arith.constant dense<0.000000e+00> : vector<64x128xf32>
    %14 = tpu.matmul %13, %0, %cst_11 {dimension_numbers = #tpu.dot_dimension_numbers<[1], [0], [0], [1], [0, 0, 1, 1], [], []>} : vector<64x512xbf16>, vector<512x128xbf16>, vector<64x128xf32> -> vector<64x128xf32>
    %15 = vector.broadcast %1 : vector<1x128xf32> to vector<64x128xf32>
    %16 = arith.mulf %14, %15 : vector<64x128xf32>
    %17 = vector.broadcast %2 : vector<1x128xf32> to vector<64x128xf32>
    %18 = arith.addf %16, %17 : vector<64x128xf32>
    %cst_12 = arith.constant 0.000000e+00 : f32
    %19 = vector.broadcast %cst_12 : f32 to vector<64x128xf32>
    %20 = arith.maximumf %18, %19 : vector<64x128xf32>
    %21 = arith.maximumf %11, %20 : vector<64x128xf32>
    %c2 = arith.constant 2 : index
    %c0_13 = arith.constant 0 : index
    %c0_14 = arith.constant 0 : index
    %22 = vector.load %arg1[%c2, %c0_13, %c0_14] : memref<4x64x512xbf16, #tpu.memory_space<vmem>>, vector<1x64x512xbf16>
    %23 = vector.shape_cast %22 : vector<1x64x512xbf16> to vector<64x512xbf16>
    %cst_15 = arith.constant dense<0.000000e+00> : vector<64x128xf32>
    %24 = tpu.matmul %23, %0, %cst_15 {dimension_numbers = #tpu.dot_dimension_numbers<[1], [0], [0], [1], [0, 0, 1, 1], [], []>} : vector<64x512xbf16>, vector<512x128xbf16>, vector<64x128xf32> -> vector<64x128xf32>
    %25 = vector.broadcast %1 : vector<1x128xf32> to vector<64x128xf32>
    %26 = arith.mulf %24, %25 : vector<64x128xf32>
    %27 = vector.broadcast %2 : vector<1x128xf32> to vector<64x128xf32>
    %28 = arith.addf %26, %27 : vector<64x128xf32>
    %cst_16 = arith.constant 0.000000e+00 : f32
    %29 = vector.broadcast %cst_16 : f32 to vector<64x128xf32>
    %30 = arith.maximumf %28, %29 : vector<64x128xf32>
    %c3 = arith.constant 3 : index
    %c0_17 = arith.constant 0 : index
    %c0_18 = arith.constant 0 : index
    %31 = vector.load %arg1[%c3, %c0_17, %c0_18] : memref<4x64x512xbf16, #tpu.memory_space<vmem>>, vector<1x64x512xbf16>
    %32 = vector.shape_cast %31 : vector<1x64x512xbf16> to vector<64x512xbf16>
    %cst_19 = arith.constant dense<0.000000e+00> : vector<64x128xf32>
    %33 = tpu.matmul %32, %0, %cst_19 {dimension_numbers = #tpu.dot_dimension_numbers<[1], [0], [0], [1], [0, 0, 1, 1], [], []>} : vector<64x512xbf16>, vector<512x128xbf16>, vector<64x128xf32> -> vector<64x128xf32>
    %34 = vector.broadcast %1 : vector<1x128xf32> to vector<64x128xf32>
    %35 = arith.mulf %33, %34 : vector<64x128xf32>
    %36 = vector.broadcast %2 : vector<1x128xf32> to vector<64x128xf32>
    %37 = arith.addf %35, %36 : vector<64x128xf32>
    %cst_20 = arith.constant 0.000000e+00 : f32
    %38 = vector.broadcast %cst_20 : f32 to vector<64x128xf32>
    %39 = arith.maximumf %37, %38 : vector<64x128xf32>
    %40 = arith.maximumf %30, %39 : vector<64x128xf32>
    %41 = arith.maximumf %21, %40 : vector<64x128xf32>
    %c0_21 = arith.constant 0 : index
    %c0_22 = arith.constant 0 : index
    %42 = vector.load %arg5[%c0_21, %c0_22] : memref<64x128xf32, #tpu.memory_space<vmem>>, vector<64x128xf32>
    tpu.vector_store %arg5[%c0_21, %c0_22], %41 {strides = array<i32>} : memref<64x128xf32, #tpu.memory_space<vmem>>, vector<64x128xf32>,
    return
  }
  func.func @transform_0(%arg0: i32) -> (i32, i32, i32) {
    %c0_i32 = arith.constant 0 : i32
    %c0_i32_0 = arith.constant 0 : i32
    %c0_i32_1 = arith.constant 0 : i32
    return %c0_i32, %arg0, %c0_i32_0 : i32, i32, i32
  }
  func.func @transform_1(%arg0: i32) -> (i32, i32) {
    %c0_i32 = arith.constant 0 : i32
    %c0_i32_0 = arith.constant 0 : i32
    %c0_i32_1 = arith.constant 0 : i32
    return %c0_i32, %c0_i32_0 : i32, i32
  }
  func.func @transform_2(%arg0: i32) -> (i32, i32) {
    %c0_i32 = arith.constant 0 : i32
    %c0_i32_0 = arith.constant 0 : i32
    %c0_i32_1 = arith.constant 0 : i32
    return %c0_i32, %c0_i32_0 : i32, i32
  }
  func.func @transform_3(%arg0: i32) -> (i32, i32) {
    %c0_i32 = arith.constant 0 : i32
    %c0_i32_0 = arith.constant 0 : i32
    %c0_i32_1 = arith.constant 0 : i32
    return %c0_i32, %c0_i32_0 : i32, i32
  }
  func.func @transform_4(%arg0: i32) -> (i32, i32) {
    %c0_i32 = arith.constant 0 : i32
    %c0_i32_0 = arith.constant 0 : i32
    return %arg0, %c0_i32 : i32, i32
  }
}

module attributes {stable_mosaic.version = 11 : i64} {
  func.func @_fc_fused_kernel(%arg0: i32, %arg1: memref<32x256xbf16, #tpu.memory_space<vmem>>, %arg2: memref<256x512xbf16, #tpu.memory_space<vmem>>, %arg3: memref<1x512xf32, #tpu.memory_space<vmem>>, %arg4: memref<1x512xf32, #tpu.memory_space<vmem>>, %arg5: memref<512x128xbf16, #tpu.memory_space<vmem>>, %arg6: memref<1x128xf32, #tpu.memory_space<vmem>>, %arg7: memref<32x128xf32, #tpu.memory_space<vmem>>) attributes {dimension_semantics = [#tpu.dimension_semantics<arbitrary>], iteration_bounds = array<i64: 1>, scalar_prefetch = 0 : i64, scratch_operands = 0 : i64, tpu.core_type = #tpu.core_type<tc>, window_params = [{pipeline_mode = #tpu.pipeline_mode<synchronous>, transform_indices = @transform_0, window_bounds = array<i64: 32, 256>}, {pipeline_mode = #tpu.pipeline_mode<synchronous>, transform_indices = @transform_1, window_bounds = array<i64: 256, 512>}, {pipeline_mode = #tpu.pipeline_mode<synchronous>, transform_indices = @transform_2, window_bounds = array<i64: 1, 512>}, {pipeline_mode = #tpu.pipeline_mode<synchronous>, transform_indices = @transform_3, window_bounds = array<i64: 1, 512>}, {pipeline_mode = #tpu.pipeline_mode<synchronous>, transform_indices = @transform_4, window_bounds = array<i64: 512, 128>}, {pipeline_mode = #tpu.pipeline_mode<synchronous>, transform_indices = @transform_5, window_bounds = array<i64: 1, 128>}, {pipeline_mode = #tpu.pipeline_mode<synchronous>, transform_indices = @transform_6, window_bounds = array<i64: 32, 128>}]} {
    %c0 = arith.constant 0 : index
    %c0_0 = arith.constant 0 : index
    %0 = vector.load %arg1[%c0, %c0_0] : memref<32x256xbf16, #tpu.memory_space<vmem>>, vector<32x256xbf16>
    %c0_1 = arith.constant 0 : index
    %c0_2 = arith.constant 0 : index
    %1 = vector.load %arg2[%c0_1, %c0_2] : memref<256x512xbf16, #tpu.memory_space<vmem>>, vector<256x512xbf16>
    %cst = arith.constant dense<0.000000e+00> : vector<32x512xf32>
    %2 = tpu.matmul %0, %1, %cst {dimension_numbers = #tpu.dot_dimension_numbers<[1], [0], [0], [1], [0, 0, 1, 1], [], []>} : vector<32x256xbf16>, vector<256x512xbf16>, vector<32x512xf32> -> vector<32x512xf32>
    %c0_3 = arith.constant 0 : index
    %c0_4 = arith.constant 0 : index
    %3 = vector.load %arg3[%c0_3, %c0_4] : memref<1x512xf32, #tpu.memory_space<vmem>>, vector<1x512xf32>
    %4 = vector.broadcast %3 : vector<1x512xf32> to vector<32x512xf32>
    %5 = arith.mulf %2, %4 : vector<32x512xf32>
    %c0_5 = arith.constant 0 : index
    %c0_6 = arith.constant 0 : index
    %6 = vector.load %arg4[%c0_5, %c0_6] : memref<1x512xf32, #tpu.memory_space<vmem>>, vector<1x512xf32>
    %7 = vector.broadcast %6 : vector<1x512xf32> to vector<32x512xf32>
    %8 = arith.addf %5, %7 : vector<32x512xf32>
    %cst_7 = arith.constant 0.000000e+00 : f32
    %9 = vector.broadcast %cst_7 : f32 to vector<32x512xf32>
    %10 = arith.maximumf %8, %9 : vector<32x512xf32>
    %11 = arith.truncf %10 : vector<32x512xf32> to vector<32x512xbf16>
    %c0_8 = arith.constant 0 : index
    %c0_9 = arith.constant 0 : index
    %12 = vector.load %arg5[%c0_8, %c0_9] : memref<512x128xbf16, #tpu.memory_space<vmem>>, vector<512x128xbf16>
    %cst_10 = arith.constant dense<0.000000e+00> : vector<32x128xf32>
    %13 = tpu.matmul %11, %12, %cst_10 {dimension_numbers = #tpu.dot_dimension_numbers<[1], [0], [0], [1], [0, 0, 1, 1], [], []>} : vector<32x512xbf16>, vector<512x128xbf16>, vector<32x128xf32> -> vector<32x128xf32>
    %c0_11 = arith.constant 0 : index
    %c0_12 = arith.constant 0 : index
    %14 = vector.load %arg6[%c0_11, %c0_12] : memref<1x128xf32, #tpu.memory_space<vmem>>, vector<1x128xf32>
    %15 = vector.broadcast %14 : vector<1x128xf32> to vector<32x128xf32>
    %16 = arith.addf %13, %15 : vector<32x128xf32>
    %c0_13 = arith.constant 0 : index
    %c0_14 = arith.constant 0 : index
    %17 = vector.load %arg7[%c0_13, %c0_14] : memref<32x128xf32, #tpu.memory_space<vmem>>, vector<32x128xf32>
    tpu.vector_store %arg7[%c0_13, %c0_14], %16 {strides = array<i32>} : memref<32x128xf32, #tpu.memory_space<vmem>>, vector<32x128xf32>,
    return
  }
  func.func @transform_0(%arg0: i32) -> (i32, i32) {
    %c0_i32 = arith.constant 0 : i32
    %c0_i32_0 = arith.constant 0 : i32
    %c0_i32_1 = arith.constant 0 : i32
    return %c0_i32, %c0_i32_0 : i32, i32
  }
  func.func @transform_1(%arg0: i32) -> (i32, i32) {
    %c0_i32 = arith.constant 0 : i32
    %c0_i32_0 = arith.constant 0 : i32
    %c0_i32_1 = arith.constant 0 : i32
    return %c0_i32, %c0_i32_0 : i32, i32
  }
  func.func @transform_2(%arg0: i32) -> (i32, i32) {
    %c0_i32 = arith.constant 0 : i32
    %c0_i32_0 = arith.constant 0 : i32
    %c0_i32_1 = arith.constant 0 : i32
    return %c0_i32, %c0_i32_0 : i32, i32
  }
  func.func @transform_3(%arg0: i32) -> (i32, i32) {
    %c0_i32 = arith.constant 0 : i32
    %c0_i32_0 = arith.constant 0 : i32
    %c0_i32_1 = arith.constant 0 : i32
    return %c0_i32, %c0_i32_0 : i32, i32
  }
  func.func @transform_4(%arg0: i32) -> (i32, i32) {
    %c0_i32 = arith.constant 0 : i32
    %c0_i32_0 = arith.constant 0 : i32
    %c0_i32_1 = arith.constant 0 : i32
    return %c0_i32, %c0_i32_0 : i32, i32
  }
  func.func @transform_5(%arg0: i32) -> (i32, i32) {
    %c0_i32 = arith.constant 0 : i32
    %c0_i32_0 = arith.constant 0 : i32
    %c0_i32_1 = arith.constant 0 : i32
    return %c0_i32, %c0_i32_0 : i32, i32
  }
  func.func @transform_6(%arg0: i32) -> (i32, i32) {
    %c0_i32 = arith.constant 0 : i32
    %c0_i32_0 = arith.constant 0 : i32
    %c0_i32_1 = arith.constant 0 : i32
    return %c0_i32, %c0_i32_0 : i32, i32
  }
}

</mosaic_0001>

<llo_original>
// kernel: lenet_pallas.3
$region0: #{lenet_pallas.3}
  #allocation0 [shape = 'u32[]', space=smem, size = 0x4, offset = 0x4, fixed_abs, tag = 'smem constant byte address 0x4 - core index']
  #allocation1 [shape = 'u32[144,128]{1,0:T(1,128)}', space=vmem, size = 0x12000, scoped, tag = 'internal scratch']
  %s0 = inlined_call_operand.vmem [shape: bf16[4,512,128], index: 0, kind: input, shape index: {}]
  %s1 = inlined_call_operand.vmem [shape: bf16[128,128], index: 1, kind: input, shape index: {}]
  %s2 = inlined_call_operand.vmem [shape: f32[1,128], index: 2, kind: input, shape index: {}]
  %s3 = inlined_call_operand.vmem [shape: f32[1,128], index: 3, kind: input, shape index: {}]
  %s4 = inlined_call_operand.vmem [shape: f32[512,128], index: 4, kind: output, shape index: {}]
  %s5 = sld [smem:[#allocation0]]
  $region90: #{lenet_pallas.3} parent=0
    _
  %s7 = ssub.s32 1, %s5
  %s8 = scalar_select 0, %s7, %s5
  $region1: #{lenet_pallas.3} parent=0
    #allocation2 [shape = 'u8[524288]{0}', space=vmem, size = 0x80000, scoped, tag = 'input window, operand 0']
    loop: start=0, step=1, limit=4
    $region2: #{lenet_pallas.3} parent=1 // loop_pre_header
      _
    $region3: #{lenet_pallas.3} parent=1 // loop_header
      %s10 = sphi 0, %s14
      %p11 = scmp.ge.s32.totalorder %s10, 4
      %s20 = sphi 0, %s22
      %s23 = sphi 0, %s20
      %s24 = sphi 0, %s23
      %s40 = sphi 0, %s24
      %s44 = sphi 0, %s44
      %s46 = sphi 0, %s44
      %s47 = sphi 0, %s46
      %s61 = sphi 0, %s47
      %s65 = sphi 0, %s65
      %s67 = sphi 0, %s65
      %s68 = sphi 0, %s67
      %s82 = sphi 0, %s68
      %s86 = sphi 0, %s86
      %s88 = sphi 0, %s86
      %s89 = sphi 0, %s88
      %s103 = sphi 0, %s89
      %s109 = sphi 0, %s111
      %s112 = sphi 0, %s109
      %s113 = sphi 0, %s112
      %s129 = sphi 0, %s113
    $region4: #{lenet_pallas.3} parent=1 // loop_header_branch
      %13 = sbr.rel (%p11) target = $region8
    $region5: #{lenet_pallas.3} parent=1 // loop_body
      %s15 = ssub.s32 %s10, 1
      %s16 = ssub.s32 %s10, 2
      %s17 = sadd.s32 %s10, 1
      %s18 = ssub.s32 %s10, %s17
      %p19 = scmp.eq.s32.totalorder %s18, 0
      %s21 = sadd.s32 %s20, 1
      %s22 = scalar_select %p19, %s20, %s21
      %p25 = pneg %p19
      %p26 = scmp.eq.s32.totalorder %s10, 1
      %p27 = por %p25, %p26
      %p28 = scmp.ne.s32.totalorder %s20, %s23
      %p29 = scmp.eq.s32.totalorder %s10, 0
      %p30 = por %p28, %p29
      %p31 = scmp.ne.s32.totalorder %s20, %s23
      %p32 = scmp.eq.s32.totalorder %s15, 1
      %p33 = por %p31, %p32
      %p34 = scmp.ne.s32.totalorder %s23, %s24
      %p35 = scmp.eq.s32.totalorder %s15, 0
      %p36 = por %p34, %p35
      %p37 = scmp.ne.s32.totalorder %s23, %s24
      %p38 = scmp.eq.s32.totalorder %s16, 1
      %p39 = por %p37, %p38
      %p41 = scmp.ne.s32.totalorder %s24, %s40
      %p42 = scmp.eq.s32.totalorder %s16, 0
      %p43 = por %p41, %p42
      %s45 = sadd.s32 %s44, 1
      %p48 = scmp.eq.s32.totalorder %s10, 1
      %p49 = scmp.ne.s32.totalorder %s44, %s46
      %p50 = scmp.eq.s32.totalorder %s10, 0
      %p51 = por %p49, %p50
      %p52 = scmp.ne.s32.totalorder %s44, %s46
      %p53 = scmp.eq.s32.totalorder %s15, 1
      %p54 = por %p52, %p53
      %p55 = scmp.ne.s32.totalorder %s46, %s47
      %p56 = scmp.eq.s32.totalorder %s15, 0
      %p57 = por %p55, %p56
      %p58 = scmp.ne.s32.totalorder %s46, %s47
      %p59 = scmp.eq.s32.totalorder %s16, 1
      %p60 = por %p58, %p59
      %p62 = scmp.ne.s32.totalorder %s47, %s61
      %p63 = scmp.eq.s32.totalorder %s16, 0
      %p64 = por %p62, %p63
      %s66 = sadd.s32 %s65, 1
      %p69 = scmp.eq.s32.totalorder %s10, 1
      %p70 = scmp.ne.s32.totalorder %s65, %s67
      %p71 = scmp.eq.s32.totalorder %s10, 0
      %p72 = por %p70, %p71
      %p73 = scmp.ne.s32.totalorder %s65, %s67
      %p74 = scmp.eq.s32.totalorder %s15, 1
      %p75 = por %p73, %p74
      %p76 = scmp.ne.s32.totalorder %s67, %s68
      %p77 = scmp.eq.s32.totalorder %s15, 0
      %p78 = por %p76, %p77
      %p79 = scmp.ne.s32.totalorder %s67, %s68
      %p80 = scmp.eq.s32.totalorder %s16, 1
      %p81 = por %p79, %p80
      %p83 = scmp.ne.s32.totalorder %s68, %s82
      %p84 = scmp.eq.s32.totalorder %s16, 0
      %p85 = por %p83, %p84
      %s87 = sadd.s32 %s86, 1
      %p90 = scmp.eq.s32.totalorder %s10, 1
      %p91 = scmp.ne.s32.totalorder %s86, %s88
      %p92 = scmp.eq.s32.totalorder %s10, 0
      %p93 = por %p91, %p92
      %p94 = scmp.ne.s32.totalorder %s86, %s88
      %p95 = scmp.eq.s32.totalorder %s15, 1
      %p96 = por %p94, %p95
      %p97 = scmp.ne.s32.totalorder %s88, %s89
      %p98 = scmp.eq.s32.totalorder %s15, 0
      %p99 = por %p97, %p98
      %p100 = scmp.ne.s32.totalorder %s88, %s89
      %p101 = scmp.eq.s32.totalorder %s16, 1
      %p102 = por %p100, %p101
      %p104 = scmp.ne.s32.totalorder %s89, %s103
      %p105 = scmp.eq.s32.totalorder %s16, 0
      %p106 = por %p104, %p105
      %s107 = ssub.s32 %s10, %s17
      %p108 = scmp.eq.s32.totalorder %s107, 0
      %s110 = sadd.s32 %s109, 1
      %s111 = scalar_select %p108, %s109, %s110
      %p114 = pneg %p108
      %p115 = scmp.eq.s32.totalorder %s10, 1
      %p116 = por %p114, %p115
      %p117 = scmp.ne.s32.totalorder %s109, %s112
      %p118 = scmp.eq.s32.totalorder %s10, 0
      %p119 = por %p117, %p118
      %p120 = scmp.ne.s32.totalorder %s109, %s112
      %p121 = scmp.eq.s32.totalorder %s15, 1
      %p122 = por %p120, %p121
      %p123 = scmp.ne.s32.totalorder %s112, %s113
      %p124 = scmp.eq.s32.totalorder %s15, 0
      %p125 = por %p123, %p124
      %p126 = scmp.ne.s32.totalorder %s112, %s113
      %p127 = scmp.eq.s32.totalorder %s16, 1
      %p128 = por %p126, %p127
      %p130 = scmp.ne.s32.totalorder %s113, %s129
      %p131 = scmp.eq.s32.totalorder %s16, 0
      %p132 = por %p130, %p131
      %p133 = scmp.le.s32.totalorder 1, %s10
      %p134 = scmp.lt.s32.totalorder %s10, 3
      %p135 = pnand %p133, %p134
      %p136 = pneg %p135
      // Predicated region
      $region9: #{lenet_pallas.3} parent=5 // pred_check
        _
      $region10: #{lenet_pallas.3} parent=5 // pred_check_branch
        %138 = sbr.rel (%p135) target = $region12
      $region11: #{lenet_pallas.3} parent=5 // pred_region
        %s139 = ssub.s32 %s10, 1
        // Predicated region
        $region13: #{lenet_pallas.3} parent=11 // pred_check
          %p140 = pneg %p57
        $region14: #{lenet_pallas.3} parent=11 // pred_check_branch
          %142 = sbr.rel (%p140) target = $region16
        $region15: #{lenet_pallas.3} parent=11 // pred_region
          _
        $region16: #{lenet_pallas.3} parent=11 // pred_fallthru
          _
        // Predicated region
        $region17: #{lenet_pallas.3} parent=11 // pred_check
          %p143 = pneg %p78
        $region18: #{lenet_pallas.3} parent=11 // pred_check_branch
          %145 = sbr.rel (%p143) target = $region20
        $region19: #{lenet_pallas.3} parent=11 // pred_region
          _
        $region20: #{lenet_pallas.3} parent=11 // pred_fallthru
          _
        // Predicated region
        $region21: #{lenet_pallas.3} parent=11 // pred_check
          %p146 = pneg %p99
        $region22: #{lenet_pallas.3} parent=11 // pred_check_branch
          %148 = sbr.rel (%p146) target = $region24
        $region23: #{lenet_pallas.3} parent=11 // pred_region
          _
        $region24: #{lenet_pallas.3} parent=11 // pred_fallthru
          _
      $region12: #{lenet_pallas.3} parent=5 // pred_fallthru
        _
      %p149 = scmp.lt.s32.totalorder %s10, 2
      // Predicated region
      $region25: #{lenet_pallas.3} parent=5 // pred_check
        %p150 = pneg %p149
      $region26: #{lenet_pallas.3} parent=5 // pred_check_branch
        %152 = sbr.rel (%p150) target = $region28
      $region27: #{lenet_pallas.3} parent=5 // pred_region
        // Predicated region
        $region29: #{lenet_pallas.3} parent=27 // pred_check
          %p153 = pneg %p30
        $region30: #{lenet_pallas.3} parent=27 // pred_check_branch
          %155 = sbr.rel (%p153) target = $region32
        $region31: #{lenet_pallas.3} parent=27 // pred_region
          %s156 = sand.u32 %s20, 1
          %s157 = sand.u32 %s20, 1
          %s158 = smul.addr %s157, 512
          %s159 = scalar_lea.vmem [#allocation2], %s158
          %s160 = smul.u32 32, %s10
          %s161 = smul.addr %s160, 4
          %s162 = scalar_lea.vmem %s0, %s161
          // Predicated region
          $region33: #{lenet_pallas.3} parent=31 // pred_check
            _
          $region34: #{lenet_pallas.3} parent=31 // pred_check_branch
            %164 = sbr.rel (0) target = $region36
          $region35: #{lenet_pallas.3} parent=31 // pred_region
            // Predicated region
            $region37: #{lenet_pallas.3} parent=35 // pred_check
              _
            $region38: #{lenet_pallas.3} parent=35 // pred_check_branch
              %166 = sbr.rel target = $region40
            $region39: #{lenet_pallas.3} parent=35 // pred_region
              // Predicated region
              $region52: #{lenet_pallas.3} parent=39 // pred_check
                _
              $region53: #{lenet_pallas.3} parent=39 // pred_check_branch
                %436 = sbr.rel (0) target = $region55
              $region54: #{lenet_pallas.3} parent=39 // pred_region
                loop: start=0, step=1, limit=1
                $region56: #{lenet_pallas.3} parent=54 // loop_pre_header
                  _
                $region57: #{lenet_pallas.3} parent=54 // loop_header
                  %s438 = sphi 0, %s442
                  %p439 = scmp.ge.s32.totalorder %s438, 1
                  %s443 = sphi %s162, %s162
                  %s444 = sphi %s159, %s159
                $region58: #{lenet_pallas.3} parent=54 // loop_header_branch
                  %441 = sbr.rel (%p439) target = $region62
                $region59: #{lenet_pallas.3} parent=54 // loop_body
                  _
                $region60: #{lenet_pallas.3} parent=54 // loop_footer
                  %s442 = sadd.s32 1, %s438
                $region61: #{lenet_pallas.3} parent=54 // loop_footer_branch
                  %437 = sbr.rel target = $region57
                $region62: #{lenet_pallas.3} parent=54 // loop_exit
                  _
                %s446 = ssub.s32 16, 1
                loop: start=0, step=1, limit=1
                $region63: #{lenet_pallas.3} parent=54 // loop_pre_header
                  _
                $region64: #{lenet_pallas.3} parent=54 // loop_header
                  %s448 = sphi 0, %s452
                  %p449 = scmp.ge.s32.totalorder %s448, 1
                  %s453 = sphi %s162, %s162
                  %s454 = sphi %s159, %s159
                $region65: #{lenet_pallas.3} parent=54 // loop_header_branch
                  %451 = sbr.rel (%p449) target = $region69
                $region66: #{lenet_pallas.3} parent=54 // loop_body
                  %v455 = vld [vmem:[%s453] sm:%s446]
                  %456 = vst [vmem:[%s454] sm:%s446] %v455
                  %v457 = vld [vmem:[%s453 + $0x4] sm:%s446]
                  %458 = vst [vmem:[%s454 + $0x4] sm:%s446] %v457
                  %v459 = vld [vmem:[%s453 + $0x8] sm:%s446]
                  %460 = vst [vmem:[%s454 + $0x8] sm:%s446] %v459
                  %v461 = vld [vmem:[%s453 + $0xc] sm:%s446]
                  %462 = vst [vmem:[%s454 + $0xc] sm:%s446] %v461
                  %v463 = vld [vmem:[%s453 + $0x10] sm:%s446]
                  %464 = vst [vmem:[%s454 + $0x10] sm:%s446] %v463
                  %v465 = vld [vmem:[%s453 + $0x14] sm:%s446]
                  %466 = vst [vmem:[%s454 + $0x14] sm:%s446] %v465
                  %v467 = vld [vmem:[%s453 + $0x18] sm:%s446]
                  %468 = vst [vmem:[%s454 + $0x18] sm:%s446] %v467
                  %v469 = vld [vmem:[%s453 + $0x1c] sm:%s446]
                  %470 = vst [vmem:[%s454 + $0x1c] sm:%s446] %v469
                  %v471 = vld [vmem:[%s453 + $0x20] sm:%s446]
                  %472 = vst [vmem:[%s454 + $0x20] sm:%s446] %v471
                  %v473 = vld [vmem:[%s453 + $0x24] sm:%s446]
                  %474 = vst [vmem:[%s454 + $0x24] sm:%s446] %v473
                  %v475 = vld [vmem:[%s453 + $0x28] sm:%s446]
                  %476 = vst [vmem:[%s454 + $0x28] sm:%s446] %v475
                  %v477 = vld [vmem:[%s453 + $0x2c] sm:%s446]
                  %478 = vst [vmem:[%s454 + $0x2c] sm:%s446] %v477
                  %v479 = vld [vmem:[%s453 + $0x30] sm:%s446]
                  %480 = vst [vmem:[%s454 + $0x30] sm:%s446] %v479
                  %v481 = vld [vmem:[%s453 + $0x34] sm:%s446]
                  %482 = vst [vmem:[%s454 + $0x34] sm:%s446] %v481
                  %v483 = vld [vmem:[%s453 + $0x38] sm:%s446]
                  %484 = vst [vmem:[%s454 + $0x38] sm:%s446] %v483
                  %v485 = vld [vmem:[%s453 + $0x3c] sm:%s446]
                  %486 = vst [vmem:[%s454 + $0x3c] sm:%s446] %v485
                  %v487 = vld [vmem:[%s453 + $0x40] sm:%s446]
                  %488 = vst [vmem:[%s454 + $0x40] sm:%s446] %v487
                  %v489 = vld [vmem:[%s453 + $0x44] sm:%s446]
                  %490 = vst [vmem:[%s454 + $0x44] sm:%s446] %v489
                  %v491 = vld [vmem:[%s453 + $0x48] sm:%s446]
                  %492 = vst [vmem:[%s454 + $0x48] sm:%s446] %v491
                  %v493 = vld [vmem:[%s453 + $0x4c] sm:%s446]
                  %494 = vst [vmem:[%s454 + $0x4c] sm:%s446] %v493
                  %v495 = vld [vmem:[%s453 + $0x50] sm:%s446]
                  %496 = vst [vmem:[%s454 + $0x50] sm:%s446] %v495
                  %v497 = vld [vmem:[%s453 + $0x54] sm:%s446]
                  %498 = vst [vmem:[%s454 + $0x54] sm:%s446] %v497
                  %v499 = vld [vmem:[%s453 + $0x58] sm:%s446]
                  %500 = vst [vmem:[%s454 + $0x58] sm:%s446] %v499
                  %v501 = vld [vmem:[%s453 + $0x5c] sm:%s446]
                  %502 = vst [vmem:[%s454 + $0x5c] sm:%s446] %v501
                  %v503 = vld [vmem:[%s453 + $0x60] sm:%s446]
                  %504 = vst [vmem:[%s454 + $0x60] sm:%s446] %v503
                  %v505 = vld [vmem:[%s453 + $0x64] sm:%s446]
                  %506 = vst [vmem:[%s454 + $0x64] sm:%s446] %v505
                  %v507 = vld [vmem:[%s453 + $0x68] sm:%s446]
                  %508 = vst [vmem:[%s454 + $0x68] sm:%s446] %v507
                  %v509 = vld [vmem:[%s453 + $0x6c] sm:%s446]
                  %510 = vst [vmem:[%s454 + $0x6c] sm:%s446] %v509
                  %v511 = vld [vmem:[%s453 + $0x70] sm:%s446]
                  %512 = vst [vmem:[%s454 + $0x70] sm:%s446] %v511
                  %v513 = vld [vmem:[%s453 + $0x74] sm:%s446]
                  %514 = vst [vmem:[%s454 + $0x74] sm:%s446] %v513
                  %v515 = vld [vmem:[%s453 + $0x78] sm:%s446]
                  %516 = vst [vmem:[%s454 + $0x78] sm:%s446] %v515
                  %v517 = vld [vmem:[%s453 + $0x7c] sm:%s446]
                  %518 = vst [vmem:[%s454 + $0x7c] sm:%s446] %v517
                  %v519 = vld [vmem:[%s453 + $0x100] sm:%s446]
                  %520 = vst [vmem:[%s454 + $0x80] sm:%s446] %v519
                  %v521 = vld [vmem:[%s453 + $0x104] sm:%s446]
                  %522 = vst [vmem:[%s454 + $0x84] sm:%s446] %v521
                  %v523 = vld [vmem:[%s453 + $0x108] sm:%s446]
                  %524 = vst [vmem:[%s454 + $0x88] sm:%s446] %v523
                  %v525 = vld [vmem:[%s453 + $0x10c] sm:%s446]
                  %526 = vst [vmem:[%s454 + $0x8c] sm:%s446] %v525
                  %v527 = vld [vmem:[%s453 + $0x110] sm:%s446]
                  %528 = vst [vmem:[%s454 + $0x90] sm:%s446] %v527
                  %v529 = vld [vmem:[%s453 + $0x114] sm:%s446]
                  %530 = vst [vmem:[%s454 + $0x94] sm:%s446] %v529
                  %v531 = vld [vmem:[%s453 + $0x118] sm:%s446]
                  %532 = vst [vmem:[%s454 + $0x98] sm:%s446] %v531
                  %v533 = vld [vmem:[%s453 + $0x11c] sm:%s446]
                  %534 = vst [vmem:[%s454 + $0x9c] sm:%s446] %v533
                  %v535 = vld [vmem:[%s453 + $0x120] sm:%s446]
                  %536 = vst [vmem:[%s454 + $0xa0] sm:%s446] %v535
                  %v537 = vld [vmem:[%s453 + $0x124] sm:%s446]
                  %538 = vst [vmem:[%s454 + $0xa4] sm:%s446] %v537
                  %v539 = vld [vmem:[%s453 + $0x128] sm:%s446]
                  %540 = vst [vmem:[%s454 + $0xa8] sm:%s446] %v539
                  %v541 = vld [vmem:[%s453 + $0x12c] sm:%s446]
                  %542 = vst [vmem:[%s454 + $0xac] sm:%s446] %v541
                  %v543 = vld [vmem:[%s453 + $0x130] sm:%s446]
                  %544 = vst [vmem:[%s454 + $0xb0] sm:%s446] %v543
                  %v545 = vld [vmem:[%s453 + $0x134] sm:%s446]
                  %546 = vst [vmem:[%s454 + $0xb4] sm:%s446] %v545
                  %v547 = vld [vmem:[%s453 + $0x138] sm:%s446]
                  %548 = vst [vmem:[%s454 + $0xb8] sm:%s446] %v547
                  %v549 = vld [vmem:[%s453 + $0x13c] sm:%s446]
                  %550 = vst [vmem:[%s454 + $0xbc] sm:%s446] %v549
                  %v551 = vld [vmem:[%s453 + $0x140] sm:%s446]
                  %552 = vst [vmem:[%s454 + $0xc0] sm:%s446] %v551
                  %v553 = vld [vmem:[%s453 + $0x144] sm:%s446]
                  %554 = vst [vmem:[%s454 + $0xc4] sm:%s446] %v553
                  %v555 = vld [vmem:[%s453 + $0x148] sm:%s446]
                  %556 = vst [vmem:[%s454 + $0xc8] sm:%s446] %v555
                  %v557 = vld [vmem:[%s453 + $0x14c] sm:%s446]
                  %558 = vst [vmem:[%s454 + $0xcc] sm:%s446] %v557
                  %v559 = vld [vmem:[%s453 + $0x150] sm:%s446]
                  %560 = vst [vmem:[%s454 + $0xd0] sm:%s446] %v559
                  %v561 = vld [vmem:[%s453 + $0x154] sm:%s446]
                  %562 = vst [vmem:[%s454 + $0xd4] sm:%s446] %v561
                  %v563 = vld [vmem:[%s453 + $0x158] sm:%s446]
                  %564 = vst [vmem:[%s454 + $0xd8] sm:%s446] %v563
                  %v565 = vld [vmem:[%s453 + $0x15c] sm:%s446]
                  %566 = vst [vmem:[%s454 + $0xdc] sm:%s446] %v565
                  %v567 = vld [vmem:[%s453 + $0x160] sm:%s446]
                  %568 = vst [vmem:[%s454 + $0xe0] sm:%s446] %v567
                  %v569 = vld [vmem:[%s453 + $0x164] sm:%s446]
                  %570 = vst [vmem:[%s454 + $0xe4] sm:%s446] %v569
                  %v571 = vld [vmem:[%s453 + $0x168] sm:%s446]
                  %572 = vst [vmem:[%s454 + $0xe8] sm:%s446] %v571
                  %v573 = vld [vmem:[%s453 + $0x16c] sm:%s446]
                  %574 = vst [vmem:[%s454 + $0xec] sm:%s446] %v573
                  %v575 = vld [vmem:[%s453 + $0x170] sm:%s446]
                  %576 = vst [vmem:[%s454 + $0xf0] sm:%s446] %v575
                  %v577 = vld [vmem:[%s453 + $0x174] sm:%s446]
                  %578 = vst [vmem:[%s454 + $0xf4] sm:%s446] %v577
                  %v579 = vld [vmem:[%s453 + $0x178] sm:%s446]
                  %580 = vst [vmem:[%s454 + $0xf8] sm:%s446] %v579
                  %v581 = vld [vmem:[%s453 + $0x17c] sm:%s446]
                  %582 = vst [vmem:[%s454 + $0xfc] sm:%s446] %v581
                  %v583 = vld [vmem:[%s453 + $0x200] sm:%s446]
                  %584 = vst [vmem:[%s454 + $0x100] sm:%s446] %v583
                  %v585 = vld [vmem:[%s453 + $0x204] sm:%s446]
                  %586 = vst [vmem:[%s454 + $0x104] sm:%s446] %v585
                  %v587 = vld [vmem:[%s453 + $0x208] sm:%s446]
                  %588 = vst [vmem:[%s454 + $0x108] sm:%s446] %v587
                  %v589 = vld [vmem:[%s453 + $0x20c] sm:%s446]
                  %590 = vst [vmem:[%s454 + $0x10c] sm:%s446] %v589
                  %v591 = vld [vmem:[%s453 + $0x210] sm:%s446]
                  %592 = vst [vmem:[%s454 + $0x110] sm:%s446] %v591
                  %v593 = vld [vmem:[%s453 + $0x214] sm:%s446]
                  %594 = vst [vmem:[%s454 + $0x114] sm:%s446] %v593
                  %v595 = vld [vmem:[%s453 + $0x218] sm:%s446]
                  %596 = vst [vmem:[%s454 + $0x118] sm:%s446] %v595
                  %v597 = vld [vmem:[%s453 + $0x21c] sm:%s446]
                  %598 = vst [vmem:[%s454 + $0x11c] sm:%s446] %v597
                  %v599 = vld [vmem:[%s453 + $0x220] sm:%s446]
                  %600 = vst [vmem:[%s454 + $0x120] sm:%s446] %v599
                  %v601 = vld [vmem:[%s453 + $0x224] sm:%s446]
                  %602 = vst [vmem:[%s454 + $0x124] sm:%s446] %v601
                  %v603 = vld [vmem:[%s453 + $0x228] sm:%s446]
                  %604 = vst [vmem:[%s454 + $0x128] sm:%s446] %v603
                  %v605 = vld [vmem:[%s453 + $0x22c] sm:%s446]
                  %606 = vst [vmem:[%s454 + $0x12c] sm:%s446] %v605
                  %v607 = vld [vmem:[%s453 + $0x230] sm:%s446]
                  %608 = vst [vmem:[%s454 + $0x130] sm:%s446] %v607
                  %v609 = vld [vmem:[%s453 + $0x234] sm:%s446]
                  %610 = vst [vmem:[%s454 + $0x134] sm:%s446] %v609
                  %v611 = vld [vmem:[%s453 + $0x238] sm:%s446]
                  %612 = vst [vmem:[%s454 + $0x138] sm:%s446] %v611
                  %v613 = vld [vmem:[%s453 + $0x23c] sm:%s446]
                  %614 = vst [vmem:[%s454 + $0x13c] sm:%s446] %v613
                  %v615 = vld [vmem:[%s453 + $0x240] sm:%s446]
                  %616 = vst [vmem:[%s454 + $0x140] sm:%s446] %v615
                  %v617 = vld [vmem:[%s453 + $0x244] sm:%s446]
                  %618 = vst [vmem:[%s454 + $0x144] sm:%s446] %v617
                  %v619 = vld [vmem:[%s453 + $0x248] sm:%s446]
                  %620 = vst [vmem:[%s454 + $0x148] sm:%s446] %v619
                  %v621 = vld [vmem:[%s453 + $0x24c] sm:%s446]
                  %622 = vst [vmem:[%s454 + $0x14c] sm:%s446] %v621
                  %v623 = vld [vmem:[%s453 + $0x250] sm:%s446]
                  %624 = vst [vmem:[%s454 + $0x150] sm:%s446] %v623
                  %v625 = vld [vmem:[%s453 + $0x254] sm:%s446]
                  %626 = vst [vmem:[%s454 + $0x154] sm:%s446] %v625
                  %v627 = vld [vmem:[%s453 + $0x258] sm:%s446]
                  %628 = vst [vmem:[%s454 + $0x158] sm:%s446] %v627
                  %v629 = vld [vmem:[%s453 + $0x25c] sm:%s446]
                  %630 = vst [vmem:[%s454 + $0x15c] sm:%s446] %v629
                  %v631 = vld [vmem:[%s453 + $0x260] sm:%s446]
                  %632 = vst [vmem:[%s454 + $0x160] sm:%s446] %v631
                  %v633 = vld [vmem:[%s453 + $0x264] sm:%s446]
                  %634 = vst [vmem:[%s454 + $0x164] sm:%s446] %v633
                  %v635 = vld [vmem:[%s453 + $0x268] sm:%s446]
                  %636 = vst [vmem:[%s454 + $0x168] sm:%s446] %v635
                  %v637 = vld [vmem:[%s453 + $0x26c] sm:%s446]
                  %638 = vst [vmem:[%s454 + $0x16c] sm:%s446] %v637
                  %v639 = vld [vmem:[%s453 + $0x270] sm:%s446]
                  %640 = vst [vmem:[%s454 + $0x170] sm:%s446] %v639
                  %v641 = vld [vmem:[%s453 + $0x274] sm:%s446]
                  %642 = vst [vmem:[%s454 + $0x174] sm:%s446] %v641
                  %v643 = vld [vmem:[%s453 + $0x278] sm:%s446]
                  %644 = vst [vmem:[%s454 + $0x178] sm:%s446] %v643
                  %v645 = vld [vmem:[%s453 + $0x27c] sm:%s446]
                  %646 = vst [vmem:[%s454 + $0x17c] sm:%s446] %v645
                  %v647 = vld [vmem:[%s453 + $0x300] sm:%s446]
                  %648 = vst [vmem:[%s454 + $0x180] sm:%s446] %v647
                  %v649 = vld [vmem:[%s453 + $0x304] sm:%s446]
                  %650 = vst [vmem:[%s454 + $0x184] sm:%s446] %v649
                  %v651 = vld [vmem:[%s453 + $0x308] sm:%s446]
                  %652 = vst [vmem:[%s454 + $0x188] sm:%s446] %v651
                  %v653 = vld [vmem:[%s453 + $0x30c] sm:%s446]
                  %654 = vst [vmem:[%s454 + $0x18c] sm:%s446] %v653
                  %v655 = vld [vmem:[%s453 + $0x310] sm:%s446]
                  %656 = vst [vmem:[%s454 + $0x190] sm:%s446] %v655
                  %v657 = vld [vmem:[%s453 + $0x314] sm:%s446]
                  %658 = vst [vmem:[%s454 + $0x194] sm:%s446] %v657
                  %v659 = vld [vmem:[%s453 + $0x318] sm:%s446]
                  %660 = vst [vmem:[%s454 + $0x198] sm:%s446] %v659
                  %v661 = vld [vmem:[%s453 + $0x31c] sm:%s446]
                  %662 = vst [vmem:[%s454 + $0x19c] sm:%s446] %v661
                  %v663 = vld [vmem:[%s453 + $0x320] sm:%s446]
                  %664 = vst [vmem:[%s454 + $0x1a0] sm:%s446] %v663
                  %v665 = vld [vmem:[%s453 + $0x324] sm:%s446]
                  %666 = vst [vmem:[%s454 + $0x1a4] sm:%s446] %v665
                  %v667 = vld [vmem:[%s453 + $0x328] sm:%s446]
                  %668 = vst [vmem:[%s454 + $0x1a8] sm:%s446] %v667
                  %v669 = vld [vmem:[%s453 + $0x32c] sm:%s446]
                  %670 = vst [vmem:[%s454 + $0x1ac] sm:%s446] %v669
                  %v671 = vld [vmem:[%s453 + $0x330] sm:%s446]
                  %672 = vst [vmem:[%s454 + $0x1b0] sm:%s446] %v671
                  %v673 = vld [vmem:[%s453 + $0x334] sm:%s446]
                  %674 = vst [vmem:[%s454 + $0x1b4] sm:%s446] %v673
                  %v675 = vld [vmem:[%s453 + $0x338] sm:%s446]
                  %676 = vst [vmem:[%s454 + $0x1b8] sm:%s446] %v675
                  %v677 = vld [vmem:[%s453 + $0x33c] sm:%s446]
                  %678 = vst [vmem:[%s454 + $0x1bc] sm:%s446] %v677
                  %v679 = vld [vmem:[%s453 + $0x340] sm:%s446]
                  %680 = vst [vmem:[%s454 + $0x1c0] sm:%s446] %v679
                  %v681 = vld [vmem:[%s453 + $0x344] sm:%s446]
                  %682 = vst [vmem:[%s454 + $0x1c4] sm:%s446] %v681
                  %v683 = vld [vmem:[%s453 + $0x348] sm:%s446]
                  %684 = vst [vmem:[%s454 + $0x1c8] sm:%s446] %v683
                  %v685 = vld [vmem:[%s453 + $0x34c] sm:%s446]
                  %686 = vst [vmem:[%s454 + $0x1cc] sm:%s446] %v685
                  %v687 = vld [vmem:[%s453 + $0x350] sm:%s446]
                  %688 = vst [vmem:[%s454 + $0x1d0] sm:%s446] %v687
                  %v689 = vld [vmem:[%s453 + $0x354] sm:%s446]
                  %690 = vst [vmem:[%s454 + $0x1d4] sm:%s446] %v689
                  %v691 = vld [vmem:[%s453 + $0x358] sm:%s446]
                  %692 = vst [vmem:[%s454 + $0x1d8] sm:%s446] %v691
                  %v693 = vld [vmem:[%s453 + $0x35c] sm:%s446]
                  %694 = vst [vmem:[%s454 + $0x1dc] sm:%s446] %v693
                  %v695 = vld [vmem:[%s453 + $0x360] sm:%s446]
                  %696 = vst [vmem:[%s454 + $0x1e0] sm:%s446] %v695
                  %v697 = vld [vmem:[%s453 + $0x364] sm:%s446]
                  %698 = vst [vmem:[%s454 + $0x1e4] sm:%s446] %v697
                  %v699 = vld [vmem:[%s453 + $0x368] sm:%s446]
                  %700 = vst [vmem:[%s454 + $0x1e8] sm:%s446] %v699
                  %v701 = vld [vmem:[%s453 + $0x36c] sm:%s446]
                  %702 = vst [vmem:[%s454 + $0x1ec] sm:%s446] %v701
                  %v703 = vld [vmem:[%s453 + $0x370] sm:%s446]
                  %704 = vst [vmem:[%s454 + $0x1f0] sm:%s446] %v703
                  %v705 = vld [vmem:[%s453 + $0x374] sm:%s446]
                  %706 = vst [vmem:[%s454 + $0x1f4] sm:%s446] %v705
                  %v707 = vld [vmem:[%s453 + $0x378] sm:%s446]
                  %708 = vst [vmem:[%s454 + $0x1f8] sm:%s446] %v707
                  %v709 = vld [vmem:[%s453 + $0x37c] sm:%s446]
                  %710 = vst [vmem:[%s454 + $0x1fc] sm:%s446] %v709
                $region67: #{lenet_pallas.3} parent=54 // loop_footer
                  %s452 = sadd.s32 1, %s448
                $region68: #{lenet_pallas.3} parent=54 // loop_footer_branch
                  %447 = sbr.rel target = $region64
                $region69: #{lenet_pallas.3} parent=54 // loop_exit
                  _
              $region55: #{lenet_pallas.3} parent=39 // pred_fallthru
                _
            $region40: #{lenet_pallas.3} parent=35 // pred_fallthru
              _
            // Predicated region
            $region41: #{lenet_pallas.3} parent=35 // pred_check
              _
            $region42: #{lenet_pallas.3} parent=35 // pred_check_branch
              %168 = sbr.rel (0) target = $region44
            $region43: #{lenet_pallas.3} parent=35 // pred_region
              %s170 = ssub.s32 16, 1
              loop: start=0, step=1, limit=1
              $region45: #{lenet_pallas.3} parent=43 // loop_pre_header
                _
              $region46: #{lenet_pallas.3} parent=43 // loop_header
                %s172 = sphi 0, %s176
                %p173 = scmp.ge.s32.totalorder %s172, 1
                %s177 = sphi %s162, %s162
                %s178 = sphi %s159, %s159
              $region47: #{lenet_pallas.3} parent=43 // loop_header_branch
                %175 = sbr.rel (%p173) target = $region51
              $region48: #{lenet_pallas.3} parent=43 // loop_body
                %v179 = vld [vmem:[%s177] sm:%s170]
                %180 = vst [vmem:[%s178] sm:%s170] %v179
                %v181 = vld [vmem:[%s177 + $0x4] sm:%s170]
                %182 = vst [vmem:[%s178 + $0x4] sm:%s170] %v181
                %v183 = vld [vmem:[%s177 + $0x8] sm:%s170]
                %184 = vst [vmem:[%s178 + $0x8] sm:%s170] %v183
                %v185 = vld [vmem:[%s177 + $0xc] sm:%s170]
                %186 = vst [vmem:[%s178 + $0xc] sm:%s170] %v185
                %v187 = vld [vmem:[%s177 + $0x10] sm:%s170]
                %188 = vst [vmem:[%s178 + $0x10] sm:%s170] %v187
                %v189 = vld [vmem:[%s177 + $0x14] sm:%s170]
                %190 = vst [vmem:[%s178 + $0x14] sm:%s170] %v189
                %v191 = vld [vmem:[%s177 + $0x18] sm:%s170]
                %192 = vst [vmem:[%s178 + $0x18] sm:%s170] %v191
                %v193 = vld [vmem:[%s177 + $0x1c] sm:%s170]
                %194 = vst [vmem:[%s178 + $0x1c] sm:%s170] %v193
                %v195 = vld [vmem:[%s177 + $0x20] sm:%s170]
                %196 = vst [vmem:[%s178 + $0x20] sm:%s170] %v195
                %v197 = vld [vmem:[%s177 + $0x24] sm:%s170]
                %198 = vst [vmem:[%s178 + $0x24] sm:%s170] %v197
                %v199 = vld [vmem:[%s177 + $0x28] sm:%s170]
                %200 = vst [vmem:[%s178 + $0x28] sm:%s170] %v199
                %v201 = vld [vmem:[%s177 + $0x2c] sm:%s170]
                %202 = vst [vmem:[%s178 + $0x2c] sm:%s170] %v201
                %v203 = vld [vmem:[%s177 + $0x30] sm:%s170]
                %204 = vst [vmem:[%s178 + $0x30] sm:%s170] %v203
                %v205 = vld [vmem:[%s177 + $0x34] sm:%s170]
                %206 = vst [vmem:[%s178 + $0x34] sm:%s170] %v205
                %v207 = vld [vmem:[%s177 + $0x38] sm:%s170]
                %208 = vst [vmem:[%s178 + $0x38] sm:%s170] %v207
                %v209 = vld [vmem:[%s177 + $0x3c] sm:%s170]
                %210 = vst [vmem:[%s178 + $0x3c] sm:%s170] %v209
                %v211 = vld [vmem:[%s177 + $0x40] sm:%s170]
                %212 = vst [vmem:[%s178 + $0x40] sm:%s170] %v211
                %v213 = vld [vmem:[%s177 + $0x44] sm:%s170]
                %214 = vst [vmem:[%s178 + $0x44] sm:%s170] %v213
                %v215 = vld [vmem:[%s177 + $0x48] sm:%s170]
                %216 = vst [vmem:[%s178 + $0x48] sm:%s170] %v215
                %v217 = vld [vmem:[%s177 + $0x4c] sm:%s170]
                %218 = vst [vmem:[%s178 + $0x4c] sm:%s170] %v217
                %v219 = vld [vmem:[%s177 + $0x50] sm:%s170]
                %220 = vst [vmem:[%s178 + $0x50] sm:%s170] %v219
                %v221 = vld [vmem:[%s177 + $0x54] sm:%s170]
                %222 = vst [vmem:[%s178 + $0x54] sm:%s170] %v221
                %v223 = vld [vmem:[%s177 + $0x58] sm:%s170]
                %224 = vst [vmem:[%s178 + $0x58] sm:%s170] %v223
                %v225 = vld [vmem:[%s177 + $0x5c] sm:%s170]
                %226 = vst [vmem:[%s178 + $0x5c] sm:%s170] %v225
                %v227 = vld [vmem:[%s177 + $0x60] sm:%s170]
                %228 = vst [vmem:[%s178 + $0x60] sm:%s170] %v227
                %v229 = vld [vmem:[%s177 + $0x64] sm:%s170]
                %230 = vst [vmem:[%s178 + $0x64] sm:%s170] %v229
                %v231 = vld [vmem:[%s177 + $0x68] sm:%s170]
                %232 = vst [vmem:[%s178 + $0x68] sm:%s170] %v231
                %v233 = vld [vmem:[%s177 + $0x6c] sm:%s170]
                %234 = vst [vmem:[%s178 + $0x6c] sm:%s170] %v233
                %v235 = vld [vmem:[%s177 + $0x70] sm:%s170]
                %236 = vst [vmem:[%s178 + $0x70] sm:%s170] %v235
                %v237 = vld [vmem:[%s177 + $0x74] sm:%s170]
                %238 = vst [vmem:[%s178 + $0x74] sm:%s170] %v237
                %v239 = vld [vmem:[%s177 + $0x78] sm:%s170]
                %240 = vst [vmem:[%s178 + $0x78] sm:%s170] %v239
                %v241 = vld [vmem:[%s177 + $0x7c] sm:%s170]
                %242 = vst [vmem:[%s178 + $0x7c] sm:%s170] %v241
                %v243 = vld [vmem:[%s177 + $0x100] sm:%s170]
                %244 = vst [vmem:[%s178 + $0x80] sm:%s170] %v243
                %v245 = vld [vmem:[%s177 + $0x104] sm:%s170]
                %246 = vst [vmem:[%s178 + $0x84] sm:%s170] %v245
                %v247 = vld [vmem:[%s177 + $0x108] sm:%s170]
                %248 = vst [vmem:[%s178 + $0x88] sm:%s170] %v247
                %v249 = vld [vmem:[%s177 + $0x10c] sm:%s170]
                %250 = vst [vmem:[%s178 + $0x8c] sm:%s170] %v249
                %v251 = vld [vmem:[%s177 + $0x110] sm:%s170]
                %252 = vst [vmem:[%s178 + $0x90] sm:%s170] %v251
                %v253 = vld [vmem:[%s177 + $0x114] sm:%s170]
                %254 = vst [vmem:[%s178 + $0x94] sm:%s170] %v253
                %v255 = vld [vmem:[%s177 + $0x118] sm:%s170]
                %256 = vst [vmem:[%s178 + $0x98] sm:%s170] %v255
                %v257 = vld [vmem:[%s177 + $0x11c] sm:%s170]
                %258 = vst [vmem:[%s178 + $0x9c] sm:%s170] %v257
                %v259 = vld [vmem:[%s177 + $0x120] sm:%s170]
                %260 = vst [vmem:[%s178 + $0xa0] sm:%s170] %v259
                %v261 = vld [vmem:[%s177 + $0x124] sm:%s170]
                %262 = vst [vmem:[%s178 + $0xa4] sm:%s170] %v261
                %v263 = vld [vmem:[%s177 + $0x128] sm:%s170]
                %264 = vst [vmem:[%s178 + $0xa8] sm:%s170] %v263
                %v265 = vld [vmem:[%s177 + $0x12c] sm:%s170]
                %266 = vst [vmem:[%s178 + $0xac] sm:%s170] %v265
                %v267 = vld [vmem:[%s177 + $0x130] sm:%s170]
                %268 = vst [vmem:[%s178 + $0xb0] sm:%s170] %v267
                %v269 = vld [vmem:[%s177 + $0x134] sm:%s170]
                %270 = vst [vmem:[%s178 + $0xb4] sm:%s170] %v269
                %v271 = vld [vmem:[%s177 + $0x138] sm:%s170]
                %272 = vst [vmem:[%s178 + $0xb8] sm:%s170] %v271
                %v273 = vld [vmem:[%s177 + $0x13c] sm:%s170]
                %274 = vst [vmem:[%s178 + $0xbc] sm:%s170] %v273
                %v275 = vld [vmem:[%s177 + $0x140] sm:%s170]
                %276 = vst [vmem:[%s178 + $0xc0] sm:%s170] %v275
                %v277 = vld [vmem:[%s177 + $0x144] sm:%s170]
                %278 = vst [vmem:[%s178 + $0xc4] sm:%s170] %v277
                %v279 = vld [vmem:[%s177 + $0x148] sm:%s170]
                %280 = vst [vmem:[%s178 + $0xc8] sm:%s170] %v279
                %v281 = vld [vmem:[%s177 + $0x14c] sm:%s170]
                %282 = vst [vmem:[%s178 + $0xcc] sm:%s170] %v281
                %v283 = vld [vmem:[%s177 + $0x150] sm:%s170]
                %284 = vst [vmem:[%s178 + $0xd0] sm:%s170] %v283
                %v285 = vld [vmem:[%s177 + $0x154] sm:%s170]
                %286 = vst [vmem:[%s178 + $0xd4] sm:%s170] %v285
                %v287 = vld [vmem:[%s177 + $0x158] sm:%s170]
                %288 = vst [vmem:[%s178 + $0xd8] sm:%s170] %v287
                %v289 = vld [vmem:[%s177 + $0x15c] sm:%s170]
                %290 = vst [vmem:[%s178 + $0xdc] sm:%s170] %v289
                %v291 = vld [vmem:[%s177 + $0x160] sm:%s170]
                %292 = vst [vmem:[%s178 + $0xe0] sm:%s170] %v291
                %v293 = vld [vmem:[%s177 + $0x164] sm:%s170]
                %294 = vst [vmem:[%s178 + $0xe4] sm:%s170] %v293
                %v295 = vld [vmem:[%s177 + $0x168] sm:%s170]
                %296 = vst [vmem:[%s178 + $0xe8] sm:%s170] %v295
                %v297 = vld [vmem:[%s177 + $0x16c] sm:%s170]
                %298 = vst [vmem:[%s178 + $0xec] sm:%s170] %v297
                %v299 = vld [vmem:[%s177 + $0x170] sm:%s170]
                %300 = vst [vmem:[%s178 + $0xf0] sm:%s170] %v299
                %v301 = vld [vmem:[%s177 + $0x174] sm:%s170]
                %302 = vst [vmem:[%s178 + $0xf4] sm:%s170] %v301
                %v303 = vld [vmem:[%s177 + $0x178] sm:%s170]
                %304 = vst [vmem:[%s178 + $0xf8] sm:%s170] %v303
                %v305 = vld [vmem:[%s177 + $0x17c] sm:%s170]
                %306 = vst [vmem:[%s178 + $0xfc] sm:%s170] %v305
                %v307 = vld [vmem:[%s177 + $0x200] sm:%s170]
                %308 = vst [vmem:[%s178 + $0x100] sm:%s170] %v307
                %v309 = vld [vmem:[%s177 + $0x204] sm:%s170]
                %310 = vst [vmem:[%s178 + $0x104] sm:%s170] %v309
                %v311 = vld [vmem:[%s177 + $0x208] sm:%s170]
                %312 = vst [vmem:[%s178 + $0x108] sm:%s170] %v311
                %v313 = vld [vmem:[%s177 + $0x20c] sm:%s170]
                %314 = vst [vmem:[%s178 + $0x10c] sm:%s170] %v313
                %v315 = vld [vmem:[%s177 + $0x210] sm:%s170]
                %316 = vst [vmem:[%s178 + $0x110] sm:%s170] %v315
                %v317 = vld [vmem:[%s177 + $0x214] sm:%s170]
                %318 = vst [vmem:[%s178 + $0x114] sm:%s170] %v317
                %v319 = vld [vmem:[%s177 + $0x218] sm:%s170]
                %320 = vst [vmem:[%s178 + $0x118] sm:%s170] %v319
                %v321 = vld [vmem:[%s177 + $0x21c] sm:%s170]
                %322 = vst [vmem:[%s178 + $0x11c] sm:%s170] %v321
                %v323 = vld [vmem:[%s177 + $0x220] sm:%s170]
                %324 = vst [vmem:[%s178 + $0x120] sm:%s170] %v323
                %v325 = vld [vmem:[%s177 + $0x224] sm:%s170]
                %326 = vst [vmem:[%s178 + $0x124] sm:%s170] %v325
                %v327 = vld [vmem:[%s177 + $0x228] sm:%s170]
                %328 = vst [vmem:[%s178 + $0x128] sm:%s170] %v327
                %v329 = vld [vmem:[%s177 + $0x22c] sm:%s170]
                %330 = vst [vmem:[%s178 + $0x12c] sm:%s170] %v329
                %v331 = vld [vmem:[%s177 + $0x230] sm:%s170]
                %332 = vst [vmem:[%s178 + $0x130] sm:%s170] %v331
                %v333 = vld [vmem:[%s177 + $0x234] sm:%s170]
                %334 = vst [vmem:[%s178 + $0x134] sm:%s170] %v333
                %v335 = vld [vmem:[%s177 + $0x238] sm:%s170]
                %336 = vst [vmem:[%s178 + $0x138] sm:%s170] %v335
                %v337 = vld [vmem:[%s177 + $0x23c] sm:%s170]
                %338 = vst [vmem:[%s178 + $0x13c] sm:%s170] %v337
                %v339 = vld [vmem:[%s177 + $0x240] sm:%s170]
                %340 = vst [vmem:[%s178 + $0x140] sm:%s170] %v339
                %v341 = vld [vmem:[%s177 + $0x244] sm:%s170]
                %342 = vst [vmem:[%s178 + $0x144] sm:%s170] %v341
                %v343 = vld [vmem:[%s177 + $0x248] sm:%s170]
                %344 = vst [vmem:[%s178 + $0x148] sm:%s170] %v343
                %v345 = vld [vmem:[%s177 + $0x24c] sm:%s170]
                %346 = vst [vmem:[%s178 + $0x14c] sm:%s170] %v345
                %v347 = vld [vmem:[%s177 + $0x250] sm:%s170]
                %348 = vst [vmem:[%s178 + $0x150] sm:%s170] %v347
                %v349 = vld [vmem:[%s177 + $0x254] sm:%s170]
                %350 = vst [vmem:[%s178 + $0x154] sm:%s170] %v349
                %v351 = vld [vmem:[%s177 + $0x258] sm:%s170]
                %352 = vst [vmem:[%s178 + $0x158] sm:%s170] %v351
                %v353 = vld [vmem:[%s177 + $0x25c] sm:%s170]
                %354 = vst [vmem:[%s178 + $0x15c] sm:%s170] %v353
                %v355 = vld [vmem:[%s177 + $0x260] sm:%s170]
                %356 = vst [vmem:[%s178 + $0x160] sm:%s170] %v355
                %v357 = vld [vmem:[%s177 + $0x264] sm:%s170]
                %358 = vst [vmem:[%s178 + $0x164] sm:%s170] %v357
                %v359 = vld [vmem:[%s177 + $0x268] sm:%s170]
                %360 = vst [vmem:[%s178 + $0x168] sm:%s170] %v359
                %v361 = vld [vmem:[%s177 + $0x26c] sm:%s170]
                %362 = vst [vmem:[%s178 + $0x16c] sm:%s170] %v361
                %v363 = vld [vmem:[%s177 + $0x270] sm:%s170]
                %364 = vst [vmem:[%s178 + $0x170] sm:%s170] %v363
                %v365 = vld [vmem:[%s177 + $0x274] sm:%s170]
                %366 = vst [vmem:[%s178 + $0x174] sm:%s170] %v365
                %v367 = vld [vmem:[%s177 + $0x278] sm:%s170]
                %368 = vst [vmem:[%s178 + $0x178] sm:%s170] %v367
                %v369 = vld [vmem:[%s177 + $0x27c] sm:%s170]
                %370 = vst [vmem:[%s178 + $0x17c] sm:%s170] %v369
                %v371 = vld [vmem:[%s177 + $0x300] sm:%s170]
                %372 = vst [vmem:[%s178 + $0x180] sm:%s170] %v371
                %v373 = vld [vmem:[%s177 + $0x304] sm:%s170]
                %374 = vst [vmem:[%s178 + $0x184] sm:%s170] %v373
                %v375 = vld [vmem:[%s177 + $0x308] sm:%s170]
                %376 = vst [vmem:[%s178 + $0x188] sm:%s170] %v375
                %v377 = vld [vmem:[%s177 + $0x30c] sm:%s170]
                %378 = vst [vmem:[%s178 + $0x18c] sm:%s170] %v377
                %v379 = vld [vmem:[%s177 + $0x310] sm:%s170]
                %380 = vst [vmem:[%s178 + $0x190] sm:%s170] %v379
                %v381 = vld [vmem:[%s177 + $0x314] sm:%s170]
                %382 = vst [vmem:[%s178 + $0x194] sm:%s170] %v381
                %v383 = vld [vmem:[%s177 + $0x318] sm:%s170]
                %384 = vst [vmem:[%s178 + $0x198] sm:%s170] %v383
                %v385 = vld [vmem:[%s177 + $0x31c] sm:%s170]
                %386 = vst [vmem:[%s178 + $0x19c] sm:%s170] %v385
                %v387 = vld [vmem:[%s177 + $0x320] sm:%s170]
                %388 = vst [vmem:[%s178 + $0x1a0] sm:%s170] %v387
                %v389 = vld [vmem:[%s177 + $0x324] sm:%s170]
                %390 = vst [vmem:[%s178 + $0x1a4] sm:%s170] %v389
                %v391 = vld [vmem:[%s177 + $0x328] sm:%s170]
                %392 = vst [vmem:[%s178 + $0x1a8] sm:%s170] %v391
                %v393 = vld [vmem:[%s177 + $0x32c] sm:%s170]
                %394 = vst [vmem:[%s178 + $0x1ac] sm:%s170] %v393
                %v395 = vld [vmem:[%s177 + $0x330] sm:%s170]
                %396 = vst [vmem:[%s178 + $0x1b0] sm:%s170] %v395
                %v397 = vld [vmem:[%s177 + $0x334] sm:%s170]
                %398 = vst [vmem:[%s178 + $0x1b4] sm:%s170] %v397
                %v399 = vld [vmem:[%s177 + $0x338] sm:%s170]
                %400 = vst [vmem:[%s178 + $0x1b8] sm:%s170] %v399
                %v401 = vld [vmem:[%s177 + $0x33c] sm:%s170]
                %402 = vst [vmem:[%s178 + $0x1bc] sm:%s170] %v401
                %v403 = vld [vmem:[%s177 + $0x340] sm:%s170]
                %404 = vst [vmem:[%s178 + $0x1c0] sm:%s170] %v403
                %v405 = vld [vmem:[%s177 + $0x344] sm:%s170]
                %406 = vst [vmem:[%s178 + $0x1c4] sm:%s170] %v405
                %v407 = vld [vmem:[%s177 + $0x348] sm:%s170]
                %408 = vst [vmem:[%s178 + $0x1c8] sm:%s170] %v407
                %v409 = vld [vmem:[%s177 + $0x34c] sm:%s170]
                %410 = vst [vmem:[%s178 + $0x1cc] sm:%s170] %v409
                %v411 = vld [vmem:[%s177 + $0x350] sm:%s170]
                %412 = vst [vmem:[%s178 + $0x1d0] sm:%s170] %v411
                %v413 = vld [vmem:[%s177 + $0x354] sm:%s170]
                %414 = vst [vmem:[%s178 + $0x1d4] sm:%s170] %v413
                %v415 = vld [vmem:[%s177 + $0x358] sm:%s170]
                %416 = vst [vmem:[%s178 + $0x1d8] sm:%s170] %v415
                %v417 = vld [vmem:[%s177 + $0x35c] sm:%s170]
                %418 = vst [vmem:[%s178 + $0x1dc] sm:%s170] %v417
                %v419 = vld [vmem:[%s177 + $0x360] sm:%s170]
                %420 = vst [vmem:[%s178 + $0x1e0] sm:%s170] %v419
                %v421 = vld [vmem:[%s177 + $0x364] sm:%s170]
                %422 = vst [vmem:[%s178 + $0x1e4] sm:%s170] %v421
                %v423 = vld [vmem:[%s177 + $0x368] sm:%s170]
                %424 = vst [vmem:[%s178 + $0x1e8] sm:%s170] %v423
                %v425 = vld [vmem:[%s177 + $0x36c] sm:%s170]
                %426 = vst [vmem:[%s178 + $0x1ec] sm:%s170] %v425
                %v427 = vld [vmem:[%s177 + $0x370] sm:%s170]
                %428 = vst [vmem:[%s178 + $0x1f0] sm:%s170] %v427
                %v429 = vld [vmem:[%s177 + $0x374] sm:%s170]
                %430 = vst [vmem:[%s178 + $0x1f4] sm:%s170] %v429
                %v431 = vld [vmem:[%s177 + $0x378] sm:%s170]
                %432 = vst [vmem:[%s178 + $0x1f8] sm:%s170] %v431
                %v433 = vld [vmem:[%s177 + $0x37c] sm:%s170]
                %434 = vst [vmem:[%s178 + $0x1fc] sm:%s170] %v433
              $region49: #{lenet_pallas.3} parent=43 // loop_footer
                %s176 = sadd.s32 1, %s172
              $region50: #{lenet_pallas.3} parent=43 // loop_footer_branch
                %171 = sbr.rel target = $region46
              $region51: #{lenet_pallas.3} parent=43 // loop_exit
                _
            $region44: #{lenet_pallas.3} parent=35 // pred_fallthru
              _
          $region36: #{lenet_pallas.3} parent=31 // pred_fallthru
            _
          %711 = vnop
        $region32: #{lenet_pallas.3} parent=27 // pred_fallthru
          _
      $region28: #{lenet_pallas.3} parent=5 // pred_fallthru
        _
      %p712 = scmp.le.s32.totalorder 1, %s10
      %p713 = scmp.lt.s32.totalorder %s10, 3
      %p714 = pnand %p712, %p713
      %p715 = pneg %p714
      // Predicated region
      $region70: #{lenet_pallas.3} parent=5 // pred_check
        _
      $region71: #{lenet_pallas.3} parent=5 // pred_check_branch
        %717 = sbr.rel (%p714) target = $region73
      $region72: #{lenet_pallas.3} parent=5 // pred_region
        %s718 = ssub.s32 %s10, 1
        %s719 = sand.u32 %s23, 1
        %s720 = sand.u32 %s23, 1
        %s721 = smul.addr %s720, 512
        %s722 = scalar_lea.vmem [#allocation2], %s721
        // Predicated region
        $region74: #{lenet_pallas.3} parent=72 // pred_check
          %p723 = pneg %p36
        $region75: #{lenet_pallas.3} parent=72 // pred_check_branch
          %725 = sbr.rel (%p723) target = $region77
        $region76: #{lenet_pallas.3} parent=72 // pred_region
          _
        $region77: #{lenet_pallas.3} parent=72 // pred_fallthru
          _
        %s726 = sand.u32 %s23, 1
        %s727 = sand.u32 %s23, 1
        %s728 = smul.addr %s727, 512
        %s729 = scalar_lea.vmem [#allocation2], %s728
        %p730 = pneg %p36
        %p731 = pneg %p33
        %p732 = pneg %p57
        %p733 = pneg %p54
        %p734 = pneg %p78
        %p735 = pneg %p75
        %p736 = pneg %p99
        %p737 = pneg %p96
        %p738 = pneg %p125
        %p739 = pneg %p122
        %s740 = smul.u32 32, %s15
        %p741 = scmp.lt.s32.totalorder %s740, 63
        %s742 = scalar_select %p741, %s740, 63
        %s743 = smul.addr %s742, 8
        %s744 = scalar_lea.vmem %s4, %s743
        %s745 = smul.u32 32, %s15
        %s746 = smul.u32 32, %s15
        %p747 = scmp.lt.s32.totalorder %s746, 63
        %s748 = scalar_select %p747, %s746, 63
        %s749 = smul.addr %s748, 8
        %s750 = scalar_lea.vmem %s4, %s749
        %s751 = smul.u32 32, %s15
        %v753 = vld [vmem:[%s1] sm:$0xf]
        %v754 = vld [vmem:[%s1 + $0x4] sm:$0xf]
        %v755 = vld [vmem:[%s1 + $0x8] sm:$0xf]
        %v756 = vld [vmem:[%s1 + $0xc] sm:$0xf]
        %v757 = vld [vmem:[%s1 + $0x10] sm:$0xf]
        %v758 = vld [vmem:[%s1 + $0x14] sm:$0xf]
        %v759 = vld [vmem:[%s1 + $0x18] sm:$0xf]
        %v760 = vld [vmem:[%s1 + $0x1c] sm:$0xf]
        %v761 = vld [vmem:[%s1 + $0x20] sm:$0xf]
        %v762 = vld [vmem:[%s1 + $0x24] sm:$0xf]
        %v763 = vld [vmem:[%s1 + $0x28] sm:$0xf]
        %v764 = vld [vmem:[%s1 + $0x2c] sm:$0xf]
        %v765 = vld [vmem:[%s1 + $0x30] sm:$0xf]
        %v766 = vld [vmem:[%s1 + $0x34] sm:$0xf]
        %v767 = vld [vmem:[%s1 + $0x38] sm:$0xf]
        %v768 = vld [vmem:[%s1 + $0x3c] sm:$0xf]
        %v769 = vld [vmem:[%s2] sm:$0x1]
        %v770 = vld [vmem:[%s3] sm:$0x1]
        %v771 = vld [vmem:[%s722] sm:$0xf]
        %v772 = vld [vmem:[%s722 + $0x4] sm:$0xf]
        %v773 = vld [vmem:[%s722 + $0x8] sm:$0xf]
        %v774 = vld [vmem:[%s722 + $0xc] sm:$0xf]
        %v775 = vld [vmem:[%s722 + $0x10] sm:$0xf]
        %v776 = vld [vmem:[%s722 + $0x14] sm:$0xf]
        %v777 = vld [vmem:[%s722 + $0x18] sm:$0xf]
        %v778 = vld [vmem:[%s722 + $0x1c] sm:$0xf]
        %v779 = vld [vmem:[%s722 + $0x20] sm:$0xf]
        %v780 = vld [vmem:[%s722 + $0x24] sm:$0xf]
        %v781 = vld [vmem:[%s722 + $0x28] sm:$0xf]
        %v782 = vld [vmem:[%s722 + $0x2c] sm:$0xf]
        %v783 = vld [vmem:[%s722 + $0x30] sm:$0xf]
        %v784 = vld [vmem:[%s722 + $0x34] sm:$0xf]
        %v785 = vld [vmem:[%s722 + $0x38] sm:$0xf]
        %v786 = vld [vmem:[%s722 + $0x3c] sm:$0xf]
        %v787 = vld [vmem:[%s722 + $0x40] sm:$0xf]
        %v788 = vld [vmem:[%s722 + $0x44] sm:$0xf]
        %v789 = vld [vmem:[%s722 + $0x48] sm:$0xf]
        %v790 = vld [vmem:[%s722 + $0x4c] sm:$0xf]
        %v791 = vld [vmem:[%s722 + $0x50] sm:$0xf]
        %v792 = vld [vmem:[%s722 + $0x54] sm:$0xf]
        %v793 = vld [vmem:[%s722 + $0x58] sm:$0xf]
        %v794 = vld [vmem:[%s722 + $0x5c] sm:$0xf]
        %v795 = vld [vmem:[%s722 + $0x60] sm:$0xf]
        %v796 = vld [vmem:[%s722 + $0x64] sm:$0xf]
        %v797 = vld [vmem:[%s722 + $0x68] sm:$0xf]
        %v798 = vld [vmem:[%s722 + $0x6c] sm:$0xf]
        %v799 = vld [vmem:[%s722 + $0x70] sm:$0xf]
        %v800 = vld [vmem:[%s722 + $0x74] sm:$0xf]
        %v801 = vld [vmem:[%s722 + $0x78] sm:$0xf]
        %v802 = vld [vmem:[%s722 + $0x7c] sm:$0xf]
        %v835 = vunpack.c.l.b16 %v771
        %v836 = vunpack.c.l.b16 %v772
        %v837 = vunpack.c.l.b16 %v773
        %v838 = vunpack.c.l.b16 %v774
        %v839 = vunpack.c.l.b16 %v775
        %v840 = vunpack.c.l.b16 %v776
        %v841 = vunpack.c.l.b16 %v777
        %v842 = vunpack.c.l.b16 %v778
        %v843 = vunpack.c.l.b16 %v779
        %v844 = vunpack.c.l.b16 %v780
        %v845 = vunpack.c.l.b16 %v781
        %v846 = vunpack.c.l.b16 %v782
        %v847 = vunpack.c.l.b16 %v783
        %v848 = vunpack.c.l.b16 %v784
        %v849 = vunpack.c.l.b16 %v785
        %v850 = vunpack.c.l.b16 %v786
        %v851 = vunpack.c.l.b16 %v787
        %v852 = vunpack.c.l.b16 %v788
        %v853 = vunpack.c.l.b16 %v789
        %v854 = vunpack.c.l.b16 %v790
        %v855 = vunpack.c.l.b16 %v791
        %v856 = vunpack.c.l.b16 %v792
        %v857 = vunpack.c.l.b16 %v793
        %v858 = vunpack.c.l.b16 %v794
        %v859 = vunpack.c.l.b16 %v795
        %v860 = vunpack.c.l.b16 %v796
        %v861 = vunpack.c.l.b16 %v797
        %v862 = vunpack.c.l.b16 %v798
        %v863 = vunpack.c.l.b16 %v799
        %v864 = vunpack.c.l.b16 %v800
        %v865 = vunpack.c.l.b16 %v801
        %v866 = vunpack.c.l.b16 %v802
        %v867 = vpack.c.b16 %v836, %v835
        %v868 = vpack.c.b16 %v838, %v837
        %v869 = vpack.c.b16 %v840, %v839
        %v870 = vpack.c.b16 %v842, %v841
        %v871 = vpack.c.b16 %v844, %v843
        %v872 = vpack.c.b16 %v846, %v845
        %v873 = vpack.c.b16 %v848, %v847
        %v874 = vpack.c.b16 %v850, %v849
        %v875 = vpack.c.b16 %v852, %v851
        %v876 = vpack.c.b16 %v854, %v853
        %v877 = vpack.c.b16 %v856, %v855
        %v878 = vpack.c.b16 %v858, %v857
        %v879 = vpack.c.b16 %v860, %v859
        %v880 = vpack.c.b16 %v862, %v861
        %v881 = vpack.c.b16 %v864, %v863
        %v882 = vpack.c.b16 %v866, %v865
        %v915 = vunpack.c.l.b16 %v753
        %v916 = vunpack.c.l.b16 %v754
        %v917 = vunpack.c.l.b16 %v755
        %v918 = vunpack.c.l.b16 %v756
        %v919 = vunpack.c.l.b16 %v757
        %v920 = vunpack.c.l.b16 %v758
        %v921 = vunpack.c.l.b16 %v759
        %v922 = vunpack.c.l.b16 %v760
        %v923 = vunpack.c.l.b16 %v761
        %v924 = vunpack.c.l.b16 %v762
        %v925 = vunpack.c.l.b16 %v763
        %v926 = vunpack.c.l.b16 %v764
        %v927 = vunpack.c.l.b16 %v765
        %v928 = vunpack.c.l.b16 %v766
        %v929 = vunpack.c.l.b16 %v767
        %v930 = vunpack.c.l.b16 %v768
        %v931 = vpack.c.b16 %v916, %v915
        %v932 = vpack.c.b16 %v918, %v917
        %v933 = vpack.c.b16 %v920, %v919
        %v934 = vpack.c.b16 %v922, %v921
        %v935 = vpack.c.b16 %v924, %v923
        %v936 = vpack.c.b16 %v926, %v925
        %v937 = vpack.c.b16 %v928, %v927
        %v938 = vpack.c.b16 %v930, %v929
        %947 = vmatprep.subr.bf16.mxu0 0
        %948 = vmatpush1.bf16.msra.mxu0 %v938
        %949 = vmatprep.subr.bf16.mxu0 0
        %950 = vmatpush1.bf16.msra.mxu0 %v937
        %951 = vmatprep.subr.bf16.mxu0 0
        %952 = vmatpush1.bf16.msra.mxu0 %v936
        %953 = vmatprep.subr.bf16.mxu0 0
        %954 = vmatpush1.bf16.msra.mxu0 %v935
        %955 = vmatprep.subr.bf16.mxu0 0
        %956 = vmatpush1.bf16.msra.mxu0 %v934
        %957 = vmatprep.subr.bf16.mxu0 0
        %958 = vmatpush1.bf16.msra.mxu0 %v933
        %959 = vmatprep.subr.bf16.mxu0 0
        %960 = vmatpush1.bf16.msra.mxu0 %v932
        %961 = vmatprep.subr.bf16.mxu0 0
        %962 = vmatpush1.bf16.msra.mxu0 %v931
        %963 = vmatprep.subr.bf16.mxu0 0
        %964 = vmatpush2.bf16.msra.mxu0 0
        %965 = vmatprep.subr.bf16.mxu0 0
        %966 = vmatpush2.bf16.msra.mxu0 0
        %967 = vmatprep.subr.bf16.mxu0 0
        %968 = vmatpush2.bf16.msra.mxu0 0
        %969 = vmatprep.subr.bf16.mxu0 0
        %970 = vmatpush2.bf16.msra.mxu0 0
        %971 = vmatprep.subr.bf16.mxu0 0
        %972 = vmatpush2.bf16.msra.mxu0 0
        %973 = vmatprep.subr.bf16.mxu0 0
        %974 = vmatpush2.bf16.msra.mxu0 0
        %975 = vmatprep.subr.bf16.mxu0 0
        %976 = vmatpush2.bf16.msra.mxu0 0
        %977 = vmatprep.subr.bf16.mxu0 0
        %978 = vmatpush2.bf16.msra.mxu0 0
        %979 = vmatprep.mubr.bf16.mxu0 0
        %980 = vmatmul.mubr.bf16.gmra.mxu0 %v867
        %v981 = vpop.f32.mrf.mxu0
        %v982 = vadd.f32 0.0, %v981
        %v983 = vpop.f32.mrf.mxu0
        %v984 = vpop.f32.mrf.mxu0
        %v985 = vadd.f32 0.0, %v984
        %v986 = vpop.f32.mrf.mxu0
        %987 = vmatprep.mubr.bf16.mxu0 0
        %988 = vmatmul.mubr.bf16.gmra.mxu0 %v868
        %v989 = vpop.f32.mrf.mxu0
        %v990 = vadd.f32 0.0, %v989
        %v991 = vpop.f32.mrf.mxu0
        %v992 = vpop.f32.mrf.mxu0
        %v993 = vadd.f32 0.0, %v992
        %v994 = vpop.f32.mrf.mxu0
        %995 = vmatprep.mubr.bf16.mxu0 0
        %996 = vmatmul.mubr.bf16.gmra.mxu0 %v869
        %v997 = vpop.f32.mrf.mxu0
        %v998 = vadd.f32 0.0, %v997
        %v999 = vpop.f32.mrf.mxu0
        %v1000 = vpop.f32.mrf.mxu0
        %v1001 = vadd.f32 0.0, %v1000
        %v1002 = vpop.f32.mrf.mxu0
        %1003 = vmatprep.mubr.bf16.mxu0 0
        %1004 = vmatmul.mubr.bf16.gmra.mxu0 %v870
        %v1005 = vpop.f32.mrf.mxu0
        %v1006 = vadd.f32 0.0, %v1005
        %v1007 = vpop.f32.mrf.mxu0
        %v1008 = vpop.f32.mrf.mxu0
        %v1009 = vadd.f32 0.0, %v1008
        %v1010 = vpop.f32.mrf.mxu0
        %1011 = vmatprep.mubr.bf16.mxu0 0
        %1012 = vmatmul.mubr.bf16.gmra.mxu0 %v871
        %v1013 = vpop.f32.mrf.mxu0
        %v1014 = vadd.f32 0.0, %v1013
        %v1015 = vpop.f32.mrf.mxu0
        %v1016 = vpop.f32.mrf.mxu0
        %v1017 = vadd.f32 0.0, %v1016
        %v1018 = vpop.f32.mrf.mxu0
        %1019 = vmatprep.mubr.bf16.mxu0 0
        %1020 = vmatmul.mubr.bf16.gmra.mxu0 %v872
        %v1021 = vpop.f32.mrf.mxu0
        %v1022 = vadd.f32 0.0, %v1021
        %v1023 = vpop.f32.mrf.mxu0
        %v1024 = vpop.f32.mrf.mxu0
        %v1025 = vadd.f32 0.0, %v1024
        %v1026 = vpop.f32.mrf.mxu0
        %1027 = vmatprep.mubr.bf16.mxu0 0
        %1028 = vmatmul.mubr.bf16.gmra.mxu0 %v873
        %v1029 = vpop.f32.mrf.mxu0
        %v1030 = vadd.f32 0.0, %v1029
        %v1031 = vpop.f32.mrf.mxu0
        %v1032 = vpop.f32.mrf.mxu0
        %v1033 = vadd.f32 0.0, %v1032
        %v1034 = vpop.f32.mrf.mxu0
        %1035 = vmatprep.mubr.bf16.mxu0 0
        %1036 = vmatmul.mubr.bf16.gmra.mxu0 %v874
        %v1037 = vpop.f32.mrf.mxu0
        %v1038 = vadd.f32 0.0, %v1037
        %v1039 = vpop.f32.mrf.mxu0
        %v1040 = vpop.f32.mrf.mxu0
        %v1041 = vadd.f32 0.0, %v1040
        %v1042 = vpop.f32.mrf.mxu0
        %1043 = vmatprep.mubr.bf16.mxu0 0
        %1044 = vmatmul.mubr.bf16.gmra.mxu0 %v875
        %v1045 = vpop.f32.mrf.mxu0
        %v1046 = vadd.f32 0.0, %v1045
        %v1047 = vpop.f32.mrf.mxu0
        %v1048 = vpop.f32.mrf.mxu0
        %v1049 = vadd.f32 0.0, %v1048
        %v1050 = vpop.f32.mrf.mxu0
        %1051 = vmatprep.mubr.bf16.mxu0 0
        %1052 = vmatmul.mubr.bf16.gmra.mxu0 %v876
        %v1053 = vpop.f32.mrf.mxu0
        %v1054 = vadd.f32 0.0, %v1053
        %v1055 = vpop.f32.mrf.mxu0
        %v1056 = vpop.f32.mrf.mxu0
        %v1057 = vadd.f32 0.0, %v1056
        %v1058 = vpop.f32.mrf.mxu0
        %1059 = vmatprep.mubr.bf16.mxu0 0
        %1060 = vmatmul.mubr.bf16.gmra.mxu0 %v877
        %v1061 = vpop.f32.mrf.mxu0
        %v1062 = vadd.f32 0.0, %v1061
        %v1063 = vpop.f32.mrf.mxu0
        %v1064 = vpop.f32.mrf.mxu0
        %v1065 = vadd.f32 0.0, %v1064
        %v1066 = vpop.f32.mrf.mxu0
        %1067 = vmatprep.mubr.bf16.mxu0 0
        %1068 = vmatmul.mubr.bf16.gmra.mxu0 %v878
        %v1069 = vpop.f32.mrf.mxu0
        %v1070 = vadd.f32 0.0, %v1069
        %v1071 = vpop.f32.mrf.mxu0
        %v1072 = vpop.f32.mrf.mxu0
        %v1073 = vadd.f32 0.0, %v1072
        %v1074 = vpop.f32.mrf.mxu0
        %1075 = vmatprep.mubr.bf16.mxu0 0
        %1076 = vmatmul.mubr.bf16.gmra.mxu0 %v879
        %v1077 = vpop.f32.mrf.mxu0
        %v1078 = vadd.f32 0.0, %v1077
        %v1079 = vpop.f32.mrf.mxu0
        %v1080 = vpop.f32.mrf.mxu0
        %v1081 = vadd.f32 0.0, %v1080
        %v1082 = vpop.f32.mrf.mxu0
        %1083 = vmatprep.mubr.bf16.mxu0 0
        %1084 = vmatmul.mubr.bf16.gmra.mxu0 %v880
        %v1085 = vpop.f32.mrf.mxu0
        %v1086 = vadd.f32 0.0, %v1085
        %v1087 = vpop.f32.mrf.mxu0
        %v1088 = vpop.f32.mrf.mxu0
        %v1089 = vadd.f32 0.0, %v1088
        %v1090 = vpop.f32.mrf.mxu0
        %1091 = vmatprep.mubr.bf16.mxu0 0
        %1092 = vmatmul.mubr.bf16.gmra.mxu0 %v881
        %v1093 = vpop.f32.mrf.mxu0
        %v1094 = vadd.f32 0.0, %v1093
        %v1095 = vpop.f32.mrf.mxu0
        %v1096 = vpop.f32.mrf.mxu0
        %v1097 = vadd.f32 0.0, %v1096
        %v1098 = vpop.f32.mrf.mxu0
        %1099 = vmatprep.mubr.bf16.mxu0 0
        %1100 = vmatmul.mubr.bf16.gmra.mxu0 %v882
        %v1101 = vpop.f32.mrf.mxu0
        %v1102 = vadd.f32 0.0, %v1101
        %v1103 = vpop.f32.mrf.mxu0
        %v1104 = vpop.f32.mrf.mxu0
        %v1105 = vadd.f32 0.0, %v1104
        %v1106 = vpop.f32.mrf.mxu0
        %1107 = vdwg.mxu0
        %v1109 = vlaneseq
        %v1110 = vshrl.u32 %v1109, 7
        %v1111 = vsub.s32 0, %v1110
        %v1112 = vrot.slane %v769, %v1111
        %v1114 = vmul.f32 %v982, %v1112
        %v1115 = vmul.f32 %v985, %v1112
        %v1116 = vmul.f32 %v990, %v1112
        %v1117 = vmul.f32 %v993, %v1112
        %v1118 = vmul.f32 %v998, %v1112
        %v1119 = vmul.f32 %v1001, %v1112
        %v1120 = vmul.f32 %v1006, %v1112
        %v1121 = vmul.f32 %v1009, %v1112
        %v1122 = vmul.f32 %v1014, %v1112
        %v1123 = vmul.f32 %v1017, %v1112
        %v1124 = vmul.f32 %v1022, %v1112
        %v1125 = vmul.f32 %v1025, %v1112
        %v1126 = vmul.f32 %v1030, %v1112
        %v1127 = vmul.f32 %v1033, %v1112
        %v1128 = vmul.f32 %v1038, %v1112
        %v1129 = vmul.f32 %v1041, %v1112
        %v1130 = vmul.f32 %v1046, %v1112
        %v1131 = vmul.f32 %v1049, %v1112
        %v1132 = vmul.f32 %v1054, %v1112
        %v1133 = vmul.f32 %v1057, %v1112
        %v1134 = vmul.f32 %v1062, %v1112
        %v1135 = vmul.f32 %v1065, %v1112
        %v1136 = vmul.f32 %v1070, %v1112
        %v1137 = vmul.f32 %v1073, %v1112
        %v1138 = vmul.f32 %v1078, %v1112
        %v1139 = vmul.f32 %v1081, %v1112
        %v1140 = vmul.f32 %v1086, %v1112
        %v1141 = vmul.f32 %v1089, %v1112
        %v1142 = vmul.f32 %v1094, %v1112
        %v1143 = vmul.f32 %v1097, %v1112
        %v1144 = vmul.f32 %v1102, %v1112
        %v1145 = vmul.f32 %v1105, %v1112
        %v1147 = vlaneseq
        %v1148 = vshrl.u32 %v1147, 7
        %v1149 = vsub.s32 0, %v1148
        %v1150 = vrot.slane %v770, %v1149
        %v1152 = vadd.f32 %v1114, %v1150
        %v1153 = vadd.f32 %v1115, %v1150
        %v1154 = vadd.f32 %v1116, %v1150
        %v1155 = vadd.f32 %v1117, %v1150
        %v1156 = vadd.f32 %v1118, %v1150
        %v1157 = vadd.f32 %v1119, %v1150
        %v1158 = vadd.f32 %v1120, %v1150
        %v1159 = vadd.f32 %v1121, %v1150
        %v1160 = vadd.f32 %v1122, %v1150
        %v1161 = vadd.f32 %v1123, %v1150
        %v1162 = vadd.f32 %v1124, %v1150
        %v1163 = vadd.f32 %v1125, %v1150
        %v1164 = vadd.f32 %v1126, %v1150
        %v1165 = vadd.f32 %v1127, %v1150
        %v1166 = vadd.f32 %v1128, %v1150
        %v1167 = vadd.f32 %v1129, %v1150
        %v1168 = vadd.f32 %v1130, %v1150
        %v1169 = vadd.f32 %v1131, %v1150
        %v1170 = vadd.f32 %v1132, %v1150
        %v1171 = vadd.f32 %v1133, %v1150
        %v1172 = vadd.f32 %v1134, %v1150
        %v1173 = vadd.f32 %v1135, %v1150
        %v1174 = vadd.f32 %v1136, %v1150
        %v1175 = vadd.f32 %v1137, %v1150
        %v1176 = vadd.f32 %v1138, %v1150
        %v1177 = vadd.f32 %v1139, %v1150
        %v1178 = vadd.f32 %v1140, %v1150
        %v1179 = vadd.f32 %v1141, %v1150
        %v1180 = vadd.f32 %v1142, %v1150
        %v1181 = vadd.f32 %v1143, %v1150
        %v1182 = vadd.f32 %v1144, %v1150
        %v1183 = vadd.f32 %v1145, %v1150
        %v1184 = vmax.f32 %v1152, 0.0
        %v1185 = vmax.f32 %v1153, 0.0
        %v1186 = vmax.f32 %v1154, 0.0
        %v1187 = vmax.f32 %v1155, 0.0
        %v1188 = vmax.f32 %v1156, 0.0
        %v1189 = vmax.f32 %v1157, 0.0
        %v1190 = vmax.f32 %v1158, 0.0
        %v1191 = vmax.f32 %v1159, 0.0
        %v1192 = vmax.f32 %v1160, 0.0
        %v1193 = vmax.f32 %v1161, 0.0
        %v1194 = vmax.f32 %v1162, 0.0
        %v1195 = vmax.f32 %v1163, 0.0
        %v1196 = vmax.f32 %v1164, 0.0
        %v1197 = vmax.f32 %v1165, 0.0
        %v1198 = vmax.f32 %v1166, 0.0
        %v1199 = vmax.f32 %v1167, 0.0
        %v1200 = vmax.f32 %v1168, 0.0
        %v1201 = vmax.f32 %v1169, 0.0
        %v1202 = vmax.f32 %v1170, 0.0
        %v1203 = vmax.f32 %v1171, 0.0
        %v1204 = vmax.f32 %v1172, 0.0
        %v1205 = vmax.f32 %v1173, 0.0
        %v1206 = vmax.f32 %v1174, 0.0
        %v1207 = vmax.f32 %v1175, 0.0
        %v1208 = vmax.f32 %v1176, 0.0
        %v1209 = vmax.f32 %v1177, 0.0
        %v1210 = vmax.f32 %v1178, 0.0
        %v1211 = vmax.f32 %v1179, 0.0
        %v1212 = vmax.f32 %v1180, 0.0
        %v1213 = vmax.f32 %v1181, 0.0
        %v1214 = vmax.f32 %v1182, 0.0
        %v1215 = vmax.f32 %v1183, 0.0
        %s1216 = scalar_lea.vmem %s722, 128 [#allocation2]
        %v1217 = vld [vmem:[%s1216] sm:$0xf]
        %v1218 = vld [vmem:[%s1216 + $0x4] sm:$0xf]
        %v1219 = vld [vmem:[%s1216 + $0x8] sm:$0xf]
        %v1220 = vld [vmem:[%s1216 + $0xc] sm:$0xf]
        %v1221 = vld [vmem:[%s1216 + $0x10] sm:$0xf]
        %v1222 = vld [vmem:[%s1216 + $0x14] sm:$0xf]
        %v1223 = vld [vmem:[%s1216 + $0x18] sm:$0xf]
        %v1224 = vld [vmem:[%s1216 + $0x1c] sm:$0xf]
        %v1225 = vld [vmem:[%s1216 + $0x20] sm:$0xf]
        %v1226 = vld [vmem:[%s1216 + $0x24] sm:$0xf]
        %v1227 = vld [vmem:[%s1216 + $0x28] sm:$0xf]
        %v1228 = vld [vmem:[%s1216 + $0x2c] sm:$0xf]
        %v1229 = vld [vmem:[%s1216 + $0x30] sm:$0xf]
        %v1230 = vld [vmem:[%s1216 + $0x34] sm:$0xf]
        %v1231 = vld [vmem:[%s1216 + $0x38] sm:$0xf]
        %v1232 = vld [vmem:[%s1216 + $0x3c] sm:$0xf]
        %v1233 = vld [vmem:[%s1216 + $0x40] sm:$0xf]
        %v1234 = vld [vmem:[%s1216 + $0x44] sm:$0xf]
        %v1235 = vld [vmem:[%s1216 + $0x48] sm:$0xf]
        %v1236 = vld [vmem:[%s1216 + $0x4c] sm:$0xf]
        %v1237 = vld [vmem:[%s1216 + $0x50] sm:$0xf]
        %v1238 = vld [vmem:[%s1216 + $0x54] sm:$0xf]
        %v1239 = vld [vmem:[%s1216 + $0x58] sm:$0xf]
        %v1240 = vld [vmem:[%s1216 + $0x5c] sm:$0xf]
        %v1241 = vld [vmem:[%s1216 + $0x60] sm:$0xf]
        %v1242 = vld [vmem:[%s1216 + $0x64] sm:$0xf]
        %v1243 = vld [vmem:[%s1216 + $0x68] sm:$0xf]
        %v1244 = vld [vmem:[%s1216 + $0x6c] sm:$0xf]
        %v1245 = vld [vmem:[%s1216 + $0x70] sm:$0xf]
        %v1246 = vld [vmem:[%s1216 + $0x74] sm:$0xf]
        %v1247 = vld [vmem:[%s1216 + $0x78] sm:$0xf]
        %v1248 = vld [vmem:[%s1216 + $0x7c] sm:$0xf]
        %v1281 = vunpack.c.l.b16 %v1217
        %v1282 = vunpack.c.l.b16 %v1218
        %v1283 = vunpack.c.l.b16 %v1219
        %v1284 = vunpack.c.l.b16 %v1220
        %v1285 = vunpack.c.l.b16 %v1221
        %v1286 = vunpack.c.l.b16 %v1222
        %v1287 = vunpack.c.l.b16 %v1223
        %v1288 = vunpack.c.l.b16 %v1224
        %v1289 = vunpack.c.l.b16 %v1225
        %v1290 = vunpack.c.l.b16 %v1226
        %v1291 = vunpack.c.l.b16 %v1227
        %v1292 = vunpack.c.l.b16 %v1228
        %v1293 = vunpack.c.l.b16 %v1229
        %v1294 = vunpack.c.l.b16 %v1230
        %v1295 = vunpack.c.l.b16 %v1231
        %v1296 = vunpack.c.l.b16 %v1232
        %v1297 = vunpack.c.l.b16 %v1233
        %v1298 = vunpack.c.l.b16 %v1234
        %v1299 = vunpack.c.l.b16 %v1235
        %v1300 = vunpack.c.l.b16 %v1236
        %v1301 = vunpack.c.l.b16 %v1237
        %v1302 = vunpack.c.l.b16 %v1238
        %v1303 = vunpack.c.l.b16 %v1239
        %v1304 = vunpack.c.l.b16 %v1240
        %v1305 = vunpack.c.l.b16 %v1241
        %v1306 = vunpack.c.l.b16 %v1242
        %v1307 = vunpack.c.l.b16 %v1243
        %v1308 = vunpack.c.l.b16 %v1244
        %v1309 = vunpack.c.l.b16 %v1245
        %v1310 = vunpack.c.l.b16 %v1246
        %v1311 = vunpack.c.l.b16 %v1247
        %v1312 = vunpack.c.l.b16 %v1248
        %v1313 = vpack.c.b16 %v1282, %v1281
        %v1314 = vpack.c.b16 %v1284, %v1283
        %v1315 = vpack.c.b16 %v1286, %v1285
        %v1316 = vpack.c.b16 %v1288, %v1287
        %v1317 = vpack.c.b16 %v1290, %v1289
        %v1318 = vpack.c.b16 %v1292, %v1291
        %v1319 = vpack.c.b16 %v1294, %v1293
        %v1320 = vpack.c.b16 %v1296, %v1295
        %v1321 = vpack.c.b16 %v1298, %v1297
        %v1322 = vpack.c.b16 %v1300, %v1299
        %v1323 = vpack.c.b16 %v1302, %v1301
        %v1324 = vpack.c.b16 %v1304, %v1303
        %v1325 = vpack.c.b16 %v1306, %v1305
        %v1326 = vpack.c.b16 %v1308, %v1307
        %v1327 = vpack.c.b16 %v1310, %v1309
        %v1328 = vpack.c.b16 %v1312, %v1311
        %1345 = vmatprep.subr.bf16.mxu0 0
        %1346 = vmatpush1.bf16.msra.mxu0 %v938
        %1347 = vmatprep.subr.bf16.mxu0 0
        %1348 = vmatpush1.bf16.msra.mxu0 %v937
        %1349 = vmatprep.subr.bf16.mxu0 0
        %1350 = vmatpush1.bf16.msra.mxu0 %v936
        %1351 = vmatprep.subr.bf16.mxu0 0
        %1352 = vmatpush1.bf16.msra.mxu0 %v935
        %1353 = vmatprep.subr.bf16.mxu0 0
        %1354 = vmatpush1.bf16.msra.mxu0 %v934
        %1355 = vmatprep.subr.bf16.mxu0 0
        %1356 = vmatpush1.bf16.msra.mxu0 %v933
        %1357 = vmatprep.subr.bf16.mxu0 0
        %1358 = vmatpush1.bf16.msra.mxu0 %v932
        %1359 = vmatprep.subr.bf16.mxu0 0
        %1360 = vmatpush1.bf16.msra.mxu0 %v931
        %1361 = vmatprep.subr.bf16.mxu0 0
        %1362 = vmatpush2.bf16.msra.mxu0 0
        %1363 = vmatprep.subr.bf16.mxu0 0
        %1364 = vmatpush2.bf16.msra.mxu0 0
        %1365 = vmatprep.subr.bf16.mxu0 0
        %1366 = vmatpush2.bf16.msra.mxu0 0
        %1367 = vmatprep.subr.bf16.mxu0 0
        %1368 = vmatpush2.bf16.msra.mxu0 0
        %1369 = vmatprep.subr.bf16.mxu0 0
        %1370 = vmatpush2.bf16.msra.mxu0 0
        %1371 = vmatprep.subr.bf16.mxu0 0
        %1372 = vmatpush2.bf16.msra.mxu0 0
        %1373 = vmatprep.subr.bf16.mxu0 0
        %1374 = vmatpush2.bf16.msra.mxu0 0
        %1375 = vmatprep.subr.bf16.mxu0 0
        %1376 = vmatpush2.bf16.msra.mxu0 0
        %1377 = vmatprep.mubr.bf16.mxu0 0
        %1378 = vmatmul.mubr.bf16.gmra.mxu0 %v1313
        %v1379 = vpop.f32.mrf.mxu0
        %v1380 = vadd.f32 0.0, %v1379
        %v1381 = vpop.f32.mrf.mxu0
        %v1382 = vpop.f32.mrf.mxu0
        %v1383 = vadd.f32 0.0, %v1382
        %v1384 = vpop.f32.mrf.mxu0
        %1385 = vmatprep.mubr.bf16.mxu0 0
        %1386 = vmatmul.mubr.bf16.gmra.mxu0 %v1314
        %v1387 = vpop.f32.mrf.mxu0
        %v1388 = vadd.f32 0.0, %v1387
        %v1389 = vpop.f32.mrf.mxu0
        %v1390 = vpop.f32.mrf.mxu0
        %v1391 = vadd.f32 0.0, %v1390
        %v1392 = vpop.f32.mrf.mxu0
        %1393 = vmatprep.mubr.bf16.mxu0 0
        %1394 = vmatmul.mubr.bf16.gmra.mxu0 %v1315
        %v1395 = vpop.f32.mrf.mxu0
        %v1396 = vadd.f32 0.0, %v1395
        %v1397 = vpop.f32.mrf.mxu0
        %v1398 = vpop.f32.mrf.mxu0
        %v1399 = vadd.f32 0.0, %v1398
        %v1400 = vpop.f32.mrf.mxu0
        %1401 = vmatprep.mubr.bf16.mxu0 0
        %1402 = vmatmul.mubr.bf16.gmra.mxu0 %v1316
        %v1403 = vpop.f32.mrf.mxu0
        %v1404 = vadd.f32 0.0, %v1403
        %v1405 = vpop.f32.mrf.mxu0
        %v1406 = vpop.f32.mrf.mxu0
        %v1407 = vadd.f32 0.0, %v1406
        %v1408 = vpop.f32.mrf.mxu0
        %1409 = vmatprep.mubr.bf16.mxu0 0
        %1410 = vmatmul.mubr.bf16.gmra.mxu0 %v1317
        %v1411 = vpop.f32.mrf.mxu0
        %v1412 = vadd.f32 0.0, %v1411
        %v1413 = vpop.f32.mrf.mxu0
        %v1414 = vpop.f32.mrf.mxu0
        %v1415 = vadd.f32 0.0, %v1414
        %v1416 = vpop.f32.mrf.mxu0
        %1417 = vmatprep.mubr.bf16.mxu0 0
        %1418 = vmatmul.mubr.bf16.gmra.mxu0 %v1318
        %v1419 = vpop.f32.mrf.mxu0
        %v1420 = vadd.f32 0.0, %v1419
        %v1421 = vpop.f32.mrf.mxu0
        %v1422 = vpop.f32.mrf.mxu0
        %v1423 = vadd.f32 0.0, %v1422
        %v1424 = vpop.f32.mrf.mxu0
        %1425 = vmatprep.mubr.bf16.mxu0 0
        %1426 = vmatmul.mubr.bf16.gmra.mxu0 %v1319
        %v1427 = vpop.f32.mrf.mxu0
        %v1428 = vadd.f32 0.0, %v1427
        %v1429 = vpop.f32.mrf.mxu0
        %v1430 = vpop.f32.mrf.mxu0
        %v1431 = vadd.f32 0.0, %v1430
        %v1432 = vpop.f32.mrf.mxu0
        %1433 = vmatprep.mubr.bf16.mxu0 0
        %1434 = vmatmul.mubr.bf16.gmra.mxu0 %v1320
        %v1435 = vpop.f32.mrf.mxu0
        %v1436 = vadd.f32 0.0, %v1435
        %v1437 = vpop.f32.mrf.mxu0
        %v1438 = vpop.f32.mrf.mxu0
        %v1439 = vadd.f32 0.0, %v1438
        %v1440 = vpop.f32.mrf.mxu0
        %1441 = vmatprep.mubr.bf16.mxu0 0
        %1442 = vmatmul.mubr.bf16.gmra.mxu0 %v1321
        %v1443 = vpop.f32.mrf.mxu0
        %v1444 = vadd.f32 0.0, %v1443
        %v1445 = vpop.f32.mrf.mxu0
        %v1446 = vpop.f32.mrf.mxu0
        %v1447 = vadd.f32 0.0, %v1446
        %v1448 = vpop.f32.mrf.mxu0
        %1449 = vmatprep.mubr.bf16.mxu0 0
        %1450 = vmatmul.mubr.bf16.gmra.mxu0 %v1322
        %v1451 = vpop.f32.mrf.mxu0
        %v1452 = vadd.f32 0.0, %v1451
        %v1453 = vpop.f32.mrf.mxu0
        %v1454 = vpop.f32.mrf.mxu0
        %v1455 = vadd.f32 0.0, %v1454
        %v1456 = vpop.f32.mrf.mxu0
        %1457 = vmatprep.mubr.bf16.mxu0 0
        %1458 = vmatmul.mubr.bf16.gmra.mxu0 %v1323
        %v1459 = vpop.f32.mrf.mxu0
        %v1460 = vadd.f32 0.0, %v1459
        %v1461 = vpop.f32.mrf.mxu0
        %v1462 = vpop.f32.mrf.mxu0
        %v1463 = vadd.f32 0.0, %v1462
        %v1464 = vpop.f32.mrf.mxu0
        %1465 = vmatprep.mubr.bf16.mxu0 0
        %1466 = vmatmul.mubr.bf16.gmra.mxu0 %v1324
        %v1467 = vpop.f32.mrf.mxu0
        %v1468 = vadd.f32 0.0, %v1467
        %v1469 = vpop.f32.mrf.mxu0
        %v1470 = vpop.f32.mrf.mxu0
        %v1471 = vadd.f32 0.0, %v1470
        %v1472 = vpop.f32.mrf.mxu0
        %1473 = vmatprep.mubr.bf16.mxu0 0
        %1474 = vmatmul.mubr.bf16.gmra.mxu0 %v1325
        %v1475 = vpop.f32.mrf.mxu0
        %v1476 = vadd.f32 0.0, %v1475
        %v1477 = vpop.f32.mrf.mxu0
        %v1478 = vpop.f32.mrf.mxu0
        %v1479 = vadd.f32 0.0, %v1478
        %v1480 = vpop.f32.mrf.mxu0
        %1481 = vmatprep.mubr.bf16.mxu0 0
        %1482 = vmatmul.mubr.bf16.gmra.mxu0 %v1326
        %v1483 = vpop.f32.mrf.mxu0
        %v1484 = vadd.f32 0.0, %v1483
        %v1485 = vpop.f32.mrf.mxu0
        %v1486 = vpop.f32.mrf.mxu0
        %v1487 = vadd.f32 0.0, %v1486
        %v1488 = vpop.f32.mrf.mxu0
        %1489 = vmatprep.mubr.bf16.mxu0 0
        %1490 = vmatmul.mubr.bf16.gmra.mxu0 %v1327
        %v1491 = vpop.f32.mrf.mxu0
        %v1492 = vadd.f32 0.0, %v1491
        %v1493 = vpop.f32.mrf.mxu0
        %v1494 = vpop.f32.mrf.mxu0
        %v1495 = vadd.f32 0.0, %v1494
        %v1496 = vpop.f32.mrf.mxu0
        %1497 = vmatprep.mubr.bf16.mxu0 0
        %1498 = vmatmul.mubr.bf16.gmra.mxu0 %v1328
        %v1499 = vpop.f32.mrf.mxu0
        %v1500 = vadd.f32 0.0, %v1499
        %v1501 = vpop.f32.mrf.mxu0
        %v1502 = vpop.f32.mrf.mxu0
        %v1503 = vadd.f32 0.0, %v1502
        %v1504 = vpop.f32.mrf.mxu0
        %1505 = vdwg.mxu0
        %v1506 = vmul.f32 %v1380, %v1112
        %v1507 = vmul.f32 %v1383, %v1112
        %v1508 = vmul.f32 %v1388, %v1112
        %v1509 = vmul.f32 %v1391, %v1112
        %v1510 = vmul.f32 %v1396, %v1112
        %v1511 = vmul.f32 %v1399, %v1112
        %v1512 = vmul.f32 %v1404, %v1112
        %v1513 = vmul.f32 %v1407, %v1112
        %v1514 = vmul.f32 %v1412, %v1112
        %v1515 = vmul.f32 %v1415, %v1112
        %v1516 = vmul.f32 %v1420, %v1112
        %v1517 = vmul.f32 %v1423, %v1112
        %v1518 = vmul.f32 %v1428, %v1112
        %v1519 = vmul.f32 %v1431, %v1112
        %v1520 = vmul.f32 %v1436, %v1112
        %v1521 = vmul.f32 %v1439, %v1112
        %v1522 = vmul.f32 %v1444, %v1112
        %v1523 = vmul.f32 %v1447, %v1112
        %v1524 = vmul.f32 %v1452, %v1112
        %v1525 = vmul.f32 %v1455, %v1112
        %v1526 = vmul.f32 %v1460, %v1112
        %v1527 = vmul.f32 %v1463, %v1112
        %v1528 = vmul.f32 %v1468, %v1112
        %v1529 = vmul.f32 %v1471, %v1112
        %v1530 = vmul.f32 %v1476, %v1112
        %v1531 = vmul.f32 %v1479, %v1112
        %v1532 = vmul.f32 %v1484, %v1112
        %v1533 = vmul.f32 %v1487, %v1112
        %v1534 = vmul.f32 %v1492, %v1112
        %v1535 = vmul.f32 %v1495, %v1112
        %v1536 = vmul.f32 %v1500, %v1112
        %v1537 = vmul.f32 %v1503, %v1112
        %v1538 = vadd.f32 %v1506, %v1150
        %v1539 = vadd.f32 %v1507, %v1150
        %v1540 = vadd.f32 %v1508, %v1150
        %v1541 = vadd.f32 %v1509, %v1150
        %v1542 = vadd.f32 %v1510, %v1150
        %v1543 = vadd.f32 %v1511, %v1150
        %v1544 = vadd.f32 %v1512, %v1150
        %v1545 = vadd.f32 %v1513, %v1150
        %v1546 = vadd.f32 %v1514, %v1150
        %v1547 = vadd.f32 %v1515, %v1150
        %v1548 = vadd.f32 %v1516, %v1150
        %v1549 = vadd.f32 %v1517, %v1150
        %v1550 = vadd.f32 %v1518, %v1150
        %v1551 = vadd.f32 %v1519, %v1150
        %v1552 = vadd.f32 %v1520, %v1150
        %v1553 = vadd.f32 %v1521, %v1150
        %v1554 = vadd.f32 %v1522, %v1150
        %v1555 = vadd.f32 %v1523, %v1150
        %v1556 = vadd.f32 %v1524, %v1150
        %v1557 = vadd.f32 %v1525, %v1150
        %v1558 = vadd.f32 %v1526, %v1150
        %v1559 = vadd.f32 %v1527, %v1150
        %v1560 = vadd.f32 %v1528, %v1150
        %v1561 = vadd.f32 %v1529, %v1150
        %v1562 = vadd.f32 %v1530, %v1150
        %v1563 = vadd.f32 %v1531, %v1150
        %v1564 = vadd.f32 %v1532, %v1150
        %v1565 = vadd.f32 %v1533, %v1150
        %v1566 = vadd.f32 %v1534, %v1150
        %v1567 = vadd.f32 %v1535, %v1150
        %v1568 = vadd.f32 %v1536, %v1150
        %v1569 = vadd.f32 %v1537, %v1150
        %v1570 = vmax.f32 %v1538, 0.0
        %v1571 = vmax.f32 %v1539, 0.0
        %v1572 = vmax.f32 %v1540, 0.0
        %v1573 = vmax.f32 %v1541, 0.0
        %v1574 = vmax.f32 %v1542, 0.0
        %v1575 = vmax.f32 %v1543, 0.0
        %v1576 = vmax.f32 %v1544, 0.0
        %v1577 = vmax.f32 %v1545, 0.0
        %v1578 = vmax.f32 %v1546, 0.0
        %v1579 = vmax.f32 %v1547, 0.0
        %v1580 = vmax.f32 %v1548, 0.0
        %v1581 = vmax.f32 %v1549, 0.0
        %v1582 = vmax.f32 %v1550, 0.0
        %v1583 = vmax.f32 %v1551, 0.0
        %v1584 = vmax.f32 %v1552, 0.0
        %v1585 = vmax.f32 %v1553, 0.0
        %v1586 = vmax.f32 %v1554, 0.0
        %v1587 = vmax.f32 %v1555, 0.0
        %v1588 = vmax.f32 %v1556, 0.0
        %v1589 = vmax.f32 %v1557, 0.0
        %v1590 = vmax.f32 %v1558, 0.0
        %v1591 = vmax.f32 %v1559, 0.0
        %v1592 = vmax.f32 %v1560, 0.0
        %v1593 = vmax.f32 %v1561, 0.0
        %v1594 = vmax.f32 %v1562, 0.0
        %v1595 = vmax.f32 %v1563, 0.0
        %v1596 = vmax.f32 %v1564, 0.0
        %v1597 = vmax.f32 %v1565, 0.0
        %v1598 = vmax.f32 %v1566, 0.0
        %v1599 = vmax.f32 %v1567, 0.0
        %v1600 = vmax.f32 %v1568, 0.0
        %v1601 = vmax.f32 %v1569, 0.0
        %v1602 = vmax.f32 %v1184, %v1570
        %v1603 = vmax.f32 %v1185, %v1571
        %v1604 = vmax.f32 %v1186, %v1572
        %v1605 = vmax.f32 %v1187, %v1573
        %v1606 = vmax.f32 %v1188, %v1574
        %v1607 = vmax.f32 %v1189, %v1575
        %v1608 = vmax.f32 %v1190, %v1576
        %v1609 = vmax.f32 %v1191, %v1577
        %v1610 = vmax.f32 %v1192, %v1578
        %v1611 = vmax.f32 %v1193, %v1579
        %v1612 = vmax.f32 %v1194, %v1580
        %v1613 = vmax.f32 %v1195, %v1581
        %v1614 = vmax.f32 %v1196, %v1582
        %v1615 = vmax.f32 %v1197, %v1583
        %v1616 = vmax.f32 %v1198, %v1584
        %v1617 = vmax.f32 %v1199, %v1585
        %v1618 = vmax.f32 %v1200, %v1586
        %v1619 = vmax.f32 %v1201, %v1587
        %v1620 = vmax.f32 %v1202, %v1588
        %v1621 = vmax.f32 %v1203, %v1589
        %v1622 = vmax.f32 %v1204, %v1590
        %v1623 = vmax.f32 %v1205, %v1591
        %v1624 = vmax.f32 %v1206, %v1592
        %v1625 = vmax.f32 %v1207, %v1593
        %v1626 = vmax.f32 %v1208, %v1594
        %v1627 = vmax.f32 %v1209, %v1595
        %v1628 = vmax.f32 %v1210, %v1596
        %v1629 = vmax.f32 %v1211, %v1597
        %v1630 = vmax.f32 %v1212, %v1598
        %v1631 = vmax.f32 %v1213, %v1599
        %v1632 = vmax.f32 %v1214, %v1600
        %v1633 = vmax.f32 %v1215, %v1601
        %s1634 = scalar_lea.vmem %s722, 256 [#allocation2]
        %v1635 = vld [vmem:[%s1634] sm:$0xf]
        %v1636 = vld [vmem:[%s1634 + $0x4] sm:$0xf]
        %v1637 = vld [vmem:[%s1634 + $0x8] sm:$0xf]
        %v1638 = vld [vmem:[%s1634 + $0xc] sm:$0xf]
        %v1639 = vld [vmem:[%s1634 + $0x10] sm:$0xf]
        %v1640 = vld [vmem:[%s1634 + $0x14] sm:$0xf]
        %v1641 = vld [vmem:[%s1634 + $0x18] sm:$0xf]
        %v1642 = vld [vmem:[%s1634 + $0x1c] sm:$0xf]
        %v1643 = vld [vmem:[%s1634 + $0x20] sm:$0xf]
        %v1644 = vld [vmem:[%s1634 + $0x24] sm:$0xf]
        %v1645 = vld [vmem:[%s1634 + $0x28] sm:$0xf]
        %v1646 = vld [vmem:[%s1634 + $0x2c] sm:$0xf]
        %v1647 = vld [vmem:[%s1634 + $0x30] sm:$0xf]
        %v1648 = vld [vmem:[%s1634 + $0x34] sm:$0xf]
        %v1649 = vld [vmem:[%s1634 + $0x38] sm:$0xf]
        %v1650 = vld [vmem:[%s1634 + $0x3c] sm:$0xf]
        %v1651 = vld [vmem:[%s1634 + $0x40] sm:$0xf]
        %v1652 = vld [vmem:[%s1634 + $0x44] sm:$0xf]
        %v1653 = vld [vmem:[%s1634 + $0x48] sm:$0xf]
        %v1654 = vld [vmem:[%s1634 + $0x4c] sm:$0xf]
        %v1655 = vld [vmem:[%s1634 + $0x50] sm:$0xf]
        %v1656 = vld [vmem:[%s1634 + $0x54] sm:$0xf]
        %v1657 = vld [vmem:[%s1634 + $0x58] sm:$0xf]
        %v1658 = vld [vmem:[%s1634 + $0x5c] sm:$0xf]
        %v1659 = vld [vmem:[%s1634 + $0x60] sm:$0xf]
        %v1660 = vld [vmem:[%s1634 + $0x64] sm:$0xf]
        %v1661 = vld [vmem:[%s1634 + $0x68] sm:$0xf]
        %v1662 = vld [vmem:[%s1634 + $0x6c] sm:$0xf]
        %v1663 = vld [vmem:[%s1634 + $0x70] sm:$0xf]
        %v1664 = vld [vmem:[%s1634 + $0x74] sm:$0xf]
        %v1665 = vld [vmem:[%s1634 + $0x78] sm:$0xf]
        %v1666 = vld [vmem:[%s1634 + $0x7c] sm:$0xf]
        %v1699 = vunpack.c.l.b16 %v1635
        %v1700 = vunpack.c.l.b16 %v1636
        %v1701 = vunpack.c.l.b16 %v1637
        %v1702 = vunpack.c.l.b16 %v1638
        %v1703 = vunpack.c.l.b16 %v1639
        %v1704 = vunpack.c.l.b16 %v1640
        %v1705 = vunpack.c.l.b16 %v1641
        %v1706 = vunpack.c.l.b16 %v1642
        %v1707 = vunpack.c.l.b16 %v1643
        %v1708 = vunpack.c.l.b16 %v1644
        %v1709 = vunpack.c.l.b16 %v1645
        %v1710 = vunpack.c.l.b16 %v1646
        %v1711 = vunpack.c.l.b16 %v1647
        %v1712 = vunpack.c.l.b16 %v1648
        %v1713 = vunpack.c.l.b16 %v1649
        %v1714 = vunpack.c.l.b16 %v1650
        %v1715 = vunpack.c.l.b16 %v1651
        %v1716 = vunpack.c.l.b16 %v1652
        %v1717 = vunpack.c.l.b16 %v1653
        %v1718 = vunpack.c.l.b16 %v1654
        %v1719 = vunpack.c.l.b16 %v1655
        %v1720 = vunpack.c.l.b16 %v1656
        %v1721 = vunpack.c.l.b16 %v1657
        %v1722 = vunpack.c.l.b16 %v1658
        %v1723 = vunpack.c.l.b16 %v1659
        %v1724 = vunpack.c.l.b16 %v1660
        %v1725 = vunpack.c.l.b16 %v1661
        %v1726 = vunpack.c.l.b16 %v1662
        %v1727 = vunpack.c.l.b16 %v1663
        %v1728 = vunpack.c.l.b16 %v1664
        %v1729 = vunpack.c.l.b16 %v1665
        %v1730 = vunpack.c.l.b16 %v1666
        %v1731 = vpack.c.b16 %v1700, %v1699
        %v1732 = vpack.c.b16 %v1702, %v1701
        %v1733 = vpack.c.b16 %v1704, %v1703
        %v1734 = vpack.c.b16 %v1706, %v1705
        %v1735 = vpack.c.b16 %v1708, %v1707
        %v1736 = vpack.c.b16 %v1710, %v1709
        %v1737 = vpack.c.b16 %v1712, %v1711
        %v1738 = vpack.c.b16 %v1714, %v1713
        %v1739 = vpack.c.b16 %v1716, %v1715
        %v1740 = vpack.c.b16 %v1718, %v1717
        %v1741 = vpack.c.b16 %v1720, %v1719
        %v1742 = vpack.c.b16 %v1722, %v1721
        %v1743 = vpack.c.b16 %v1724, %v1723
        %v1744 = vpack.c.b16 %v1726, %v1725
        %v1745 = vpack.c.b16 %v1728, %v1727
        %v1746 = vpack.c.b16 %v1730, %v1729
        %1763 = vmatprep.subr.bf16.mxu0 0
        %1764 = vmatpush1.bf16.msra.mxu0 %v938
        %1765 = vmatprep.subr.bf16.mxu0 0
        %1766 = vmatpush1.bf16.msra.mxu0 %v937
        %1767 = vmatprep.subr.bf16.mxu0 0
        %1768 = vmatpush1.bf16.msra.mxu0 %v936
        %1769 = vmatprep.subr.bf16.mxu0 0
        %1770 = vmatpush1.bf16.msra.mxu0 %v935
        %1771 = vmatprep.subr.bf16.mxu0 0
        %1772 = vmatpush1.bf16.msra.mxu0 %v934
        %1773 = vmatprep.subr.bf16.mxu0 0
        %1774 = vmatpush1.bf16.msra.mxu0 %v933
        %1775 = vmatprep.subr.bf16.mxu0 0
        %1776 = vmatpush1.bf16.msra.mxu0 %v932
        %1777 = vmatprep.subr.bf16.mxu0 0
        %1778 = vmatpush1.bf16.msra.mxu0 %v931
        %1779 = vmatprep.subr.bf16.mxu0 0
        %1780 = vmatpush2.bf16.msra.mxu0 0
        %1781 = vmatprep.subr.bf16.mxu0 0
        %1782 = vmatpush2.bf16.msra.mxu0 0
        %1783 = vmatprep.subr.bf16.mxu0 0
        %1784 = vmatpush2.bf16.msra.mxu0 0
        %1785 = vmatprep.subr.bf16.mxu0 0
        %1786 = vmatpush2.bf16.msra.mxu0 0
        %1787 = vmatprep.subr.bf16.mxu0 0
        %1788 = vmatpush2.bf16.msra.mxu0 0
        %1789 = vmatprep.subr.bf16.mxu0 0
        %1790 = vmatpush2.bf16.msra.mxu0 0
        %1791 = vmatprep.subr.bf16.mxu0 0
        %1792 = vmatpush2.bf16.msra.mxu0 0
        %1793 = vmatprep.subr.bf16.mxu0 0
        %1794 = vmatpush2.bf16.msra.mxu0 0
        %1795 = vmatprep.mubr.bf16.mxu0 0
        %1796 = vmatmul.mubr.bf16.gmra.mxu0 %v1731
        %v1797 = vpop.f32.mrf.mxu0
        %v1798 = vadd.f32 0.0, %v1797
        %v1799 = vpop.f32.mrf.mxu0
        %v1800 = vpop.f32.mrf.mxu0
        %v1801 = vadd.f32 0.0, %v1800
        %v1802 = vpop.f32.mrf.mxu0
        %1803 = vmatprep.mubr.bf16.mxu0 0
        %1804 = vmatmul.mubr.bf16.gmra.mxu0 %v1732
        %v1805 = vpop.f32.mrf.mxu0
        %v1806 = vadd.f32 0.0, %v1805
        %v1807 = vpop.f32.mrf.mxu0
        %v1808 = vpop.f32.mrf.mxu0
        %v1809 = vadd.f32 0.0, %v1808
        %v1810 = vpop.f32.mrf.mxu0
        %1811 = vmatprep.mubr.bf16.mxu0 0
        %1812 = vmatmul.mubr.bf16.gmra.mxu0 %v1733
        %v1813 = vpop.f32.mrf.mxu0
        %v1814 = vadd.f32 0.0, %v1813
        %v1815 = vpop.f32.mrf.mxu0
        %v1816 = vpop.f32.mrf.mxu0
        %v1817 = vadd.f32 0.0, %v1816
        %v1818 = vpop.f32.mrf.mxu0
        %1819 = vmatprep.mubr.bf16.mxu0 0
        %1820 = vmatmul.mubr.bf16.gmra.mxu0 %v1734
        %v1821 = vpop.f32.mrf.mxu0
        %v1822 = vadd.f32 0.0, %v1821
        %v1823 = vpop.f32.mrf.mxu0
        %v1824 = vpop.f32.mrf.mxu0
        %v1825 = vadd.f32 0.0, %v1824
        %v1826 = vpop.f32.mrf.mxu0
        %1827 = vmatprep.mubr.bf16.mxu0 0
        %1828 = vmatmul.mubr.bf16.gmra.mxu0 %v1735
        %v1829 = vpop.f32.mrf.mxu0
        %v1830 = vadd.f32 0.0, %v1829
        %v1831 = vpop.f32.mrf.mxu0
        %v1832 = vpop.f32.mrf.mxu0
        %v1833 = vadd.f32 0.0, %v1832
        %v1834 = vpop.f32.mrf.mxu0
        %1835 = vmatprep.mubr.bf16.mxu0 0
        %1836 = vmatmul.mubr.bf16.gmra.mxu0 %v1736
        %v1837 = vpop.f32.mrf.mxu0
        %v1838 = vadd.f32 0.0, %v1837
        %v1839 = vpop.f32.mrf.mxu0
        %v1840 = vpop.f32.mrf.mxu0
        %v1841 = vadd.f32 0.0, %v1840
        %v1842 = vpop.f32.mrf.mxu0
        %1843 = vmatprep.mubr.bf16.mxu0 0
        %1844 = vmatmul.mubr.bf16.gmra.mxu0 %v1737
        %v1845 = vpop.f32.mrf.mxu0
        %v1846 = vadd.f32 0.0, %v1845
        %v1847 = vpop.f32.mrf.mxu0
        %v1848 = vpop.f32.mrf.mxu0
        %v1849 = vadd.f32 0.0, %v1848
        %v1850 = vpop.f32.mrf.mxu0
        %1851 = vmatprep.mubr.bf16.mxu0 0
        %1852 = vmatmul.mubr.bf16.gmra.mxu0 %v1738
        %v1853 = vpop.f32.mrf.mxu0
        %v1854 = vadd.f32 0.0, %v1853
        %v1855 = vpop.f32.mrf.mxu0
        %v1856 = vpop.f32.mrf.mxu0
        %v1857 = vadd.f32 0.0, %v1856
        %v1858 = vpop.f32.mrf.mxu0
        %1859 = vmatprep.mubr.bf16.mxu0 0
        %1860 = vmatmul.mubr.bf16.gmra.mxu0 %v1739
        %v1861 = vpop.f32.mrf.mxu0
        %v1862 = vadd.f32 0.0, %v1861
        %v1863 = vpop.f32.mrf.mxu0
        %v1864 = vpop.f32.mrf.mxu0
        %v1865 = vadd.f32 0.0, %v1864
        %v1866 = vpop.f32.mrf.mxu0
        %1867 = vmatprep.mubr.bf16.mxu0 0
        %1868 = vmatmul.mubr.bf16.gmra.mxu0 %v1740
        %v1869 = vpop.f32.mrf.mxu0
        %v1870 = vadd.f32 0.0, %v1869
        %v1871 = vpop.f32.mrf.mxu0
        %v1872 = vpop.f32.mrf.mxu0
        %v1873 = vadd.f32 0.0, %v1872
        %v1874 = vpop.f32.mrf.mxu0
        %1875 = vmatprep.mubr.bf16.mxu0 0
        %1876 = vmatmul.mubr.bf16.gmra.mxu0 %v1741
        %v1877 = vpop.f32.mrf.mxu0
        %v1878 = vadd.f32 0.0, %v1877
        %v1879 = vpop.f32.mrf.mxu0
        %v1880 = vpop.f32.mrf.mxu0
        %v1881 = vadd.f32 0.0, %v1880
        %v1882 = vpop.f32.mrf.mxu0
        %1883 = vmatprep.mubr.bf16.mxu0 0
        %1884 = vmatmul.mubr.bf16.gmra.mxu0 %v1742
        %v1885 = vpop.f32.mrf.mxu0
        %v1886 = vadd.f32 0.0, %v1885
        %v1887 = vpop.f32.mrf.mxu0
        %v1888 = vpop.f32.mrf.mxu0
        %v1889 = vadd.f32 0.0, %v1888
        %v1890 = vpop.f32.mrf.mxu0
        %1891 = vmatprep.mubr.bf16.mxu0 0
        %1892 = vmatmul.mubr.bf16.gmra.mxu0 %v1743
        %v1893 = vpop.f32.mrf.mxu0
        %v1894 = vadd.f32 0.0, %v1893
        %v1895 = vpop.f32.mrf.mxu0
        %v1896 = vpop.f32.mrf.mxu0
        %v1897 = vadd.f32 0.0, %v1896
        %v1898 = vpop.f32.mrf.mxu0
        %1899 = vmatprep.mubr.bf16.mxu0 0
        %1900 = vmatmul.mubr.bf16.gmra.mxu0 %v1744
        %v1901 = vpop.f32.mrf.mxu0
        %v1902 = vadd.f32 0.0, %v1901
        %v1903 = vpop.f32.mrf.mxu0
        %v1904 = vpop.f32.mrf.mxu0
        %v1905 = vadd.f32 0.0, %v1904
        %v1906 = vpop.f32.mrf.mxu0
        %1907 = vmatprep.mubr.bf16.mxu0 0
        %1908 = vmatmul.mubr.bf16.gmra.mxu0 %v1745
        %v1909 = vpop.f32.mrf.mxu0
        %v1910 = vadd.f32 0.0, %v1909
        %v1911 = vpop.f32.mrf.mxu0
        %v1912 = vpop.f32.mrf.mxu0
        %v1913 = vadd.f32 0.0, %v1912
        %v1914 = vpop.f32.mrf.mxu0
        %1915 = vmatprep.mubr.bf16.mxu0 0
        %1916 = vmatmul.mubr.bf16.gmra.mxu0 %v1746
        %v1917 = vpop.f32.mrf.mxu0
        %v1918 = vadd.f32 0.0, %v1917
        %v1919 = vpop.f32.mrf.mxu0
        %v1920 = vpop.f32.mrf.mxu0
        %v1921 = vadd.f32 0.0, %v1920
        %v1922 = vpop.f32.mrf.mxu0
        %1923 = vdwg.mxu0
        %v1924 = vmul.f32 %v1798, %v1112
        %v1925 = vmul.f32 %v1801, %v1112
        %v1926 = vmul.f32 %v1806, %v1112
        %v1927 = vmul.f32 %v1809, %v1112
        %v1928 = vmul.f32 %v1814, %v1112
        %v1929 = vmul.f32 %v1817, %v1112
        %v1930 = vmul.f32 %v1822, %v1112
        %v1931 = vmul.f32 %v1825, %v1112
        %v1932 = vmul.f32 %v1830, %v1112
        %v1933 = vmul.f32 %v1833, %v1112
        %v1934 = vmul.f32 %v1838, %v1112
        %v1935 = vmul.f32 %v1841, %v1112
        %v1936 = vmul.f32 %v1846, %v1112
        %v1937 = vmul.f32 %v1849, %v1112
        %v1938 = vmul.f32 %v1854, %v1112
        %v1939 = vmul.f32 %v1857, %v1112
        %v1940 = vmul.f32 %v1862, %v1112
        %v1941 = vmul.f32 %v1865, %v1112
        %v1942 = vmul.f32 %v1870, %v1112
        %v1943 = vmul.f32 %v1873, %v1112
        %v1944 = vmul.f32 %v1878, %v1112
        %v1945 = vmul.f32 %v1881, %v1112
        %v1946 = vmul.f32 %v1886, %v1112
        %v1947 = vmul.f32 %v1889, %v1112
        %v1948 = vmul.f32 %v1894, %v1112
        %v1949 = vmul.f32 %v1897, %v1112
        %v1950 = vmul.f32 %v1902, %v1112
        %v1951 = vmul.f32 %v1905, %v1112
        %v1952 = vmul.f32 %v1910, %v1112
        %v1953 = vmul.f32 %v1913, %v1112
        %v1954 = vmul.f32 %v1918, %v1112
        %v1955 = vmul.f32 %v1921, %v1112
        %v1956 = vadd.f32 %v1924, %v1150
        %v1957 = vadd.f32 %v1925, %v1150
        %v1958 = vadd.f32 %v1926, %v1150
        %v1959 = vadd.f32 %v1927, %v1150
        %v1960 = vadd.f32 %v1928, %v1150
        %v1961 = vadd.f32 %v1929, %v1150
        %v1962 = vadd.f32 %v1930, %v1150
        %v1963 = vadd.f32 %v1931, %v1150
        %v1964 = vadd.f32 %v1932, %v1150
        %v1965 = vadd.f32 %v1933, %v1150
        %v1966 = vadd.f32 %v1934, %v1150
        %v1967 = vadd.f32 %v1935, %v1150
        %v1968 = vadd.f32 %v1936, %v1150
        %v1969 = vadd.f32 %v1937, %v1150
        %v1970 = vadd.f32 %v1938, %v1150
        %v1971 = vadd.f32 %v1939, %v1150
        %v1972 = vadd.f32 %v1940, %v1150
        %v1973 = vadd.f32 %v1941, %v1150
        %v1974 = vadd.f32 %v1942, %v1150
        %v1975 = vadd.f32 %v1943, %v1150
        %v1976 = vadd.f32 %v1944, %v1150
        %v1977 = vadd.f32 %v1945, %v1150
        %v1978 = vadd.f32 %v1946, %v1150
        %v1979 = vadd.f32 %v1947, %v1150
        %v1980 = vadd.f32 %v1948, %v1150
        %v1981 = vadd.f32 %v1949, %v1150
        %v1982 = vadd.f32 %v1950, %v1150
        %v1983 = vadd.f32 %v1951, %v1150
        %v1984 = vadd.f32 %v1952, %v1150
        %v1985 = vadd.f32 %v1953, %v1150
        %v1986 = vadd.f32 %v1954, %v1150
        %v1987 = vadd.f32 %v1955, %v1150
        %v1988 = vmax.f32 %v1956, 0.0
        %v1989 = vmax.f32 %v1957, 0.0
        %v1990 = vmax.f32 %v1958, 0.0
        %v1991 = vmax.f32 %v1959, 0.0
        %v1992 = vmax.f32 %v1960, 0.0
        %v1993 = vmax.f32 %v1961, 0.0
        %v1994 = vmax.f32 %v1962, 0.0
        %v1995 = vmax.f32 %v1963, 0.0
        %v1996 = vmax.f32 %v1964, 0.0
        %v1997 = vmax.f32 %v1965, 0.0
        %v1998 = vmax.f32 %v1966, 0.0
        %v1999 = vmax.f32 %v1967, 0.0
        %v2000 = vmax.f32 %v1968, 0.0
        %v2001 = vmax.f32 %v1969, 0.0
        %v2002 = vmax.f32 %v1970, 0.0
        %v2003 = vmax.f32 %v1971, 0.0
        %v2004 = vmax.f32 %v1972, 0.0
        %v2005 = vmax.f32 %v1973, 0.0
        %v2006 = vmax.f32 %v1974, 0.0
        %v2007 = vmax.f32 %v1975, 0.0
        %v2008 = vmax.f32 %v1976, 0.0
        %v2009 = vmax.f32 %v1977, 0.0
        %v2010 = vmax.f32 %v1978, 0.0
        %v2011 = vmax.f32 %v1979, 0.0
        %v2012 = vmax.f32 %v1980, 0.0
        %v2013 = vmax.f32 %v1981, 0.0
        %v2014 = vmax.f32 %v1982, 0.0
        %v2015 = vmax.f32 %v1983, 0.0
        %v2016 = vmax.f32 %v1984, 0.0
        %v2017 = vmax.f32 %v1985, 0.0
        %v2018 = vmax.f32 %v1986, 0.0
        %v2019 = vmax.f32 %v1987, 0.0
        %s2020 = scalar_lea.vmem %s722, 384 [#allocation2]
        %v2021 = vld [vmem:[%s2020] sm:$0xf]
        %v2022 = vld [vmem:[%s2020 + $0x4] sm:$0xf]
        %v2023 = vld [vmem:[%s2020 + $0x8] sm:$0xf]
        %v2024 = vld [vmem:[%s2020 + $0xc] sm:$0xf]
        %v2025 = vld [vmem:[%s2020 + $0x10] sm:$0xf]
        %v2026 = vld [vmem:[%s2020 + $0x14] sm:$0xf]
        %v2027 = vld [vmem:[%s2020 + $0x18] sm:$0xf]
        %v2028 = vld [vmem:[%s2020 + $0x1c] sm:$0xf]
        %v2029 = vld [vmem:[%s2020 + $0x20] sm:$0xf]
        %v2030 = vld [vmem:[%s2020 + $0x24] sm:$0xf]
        %v2031 = vld [vmem:[%s2020 + $0x28] sm:$0xf]
        %v2032 = vld [vmem:[%s2020 + $0x2c] sm:$0xf]
        %v2033 = vld [vmem:[%s2020 + $0x30] sm:$0xf]
        %v2034 = vld [vmem:[%s2020 + $0x34] sm:$0xf]
        %v2035 = vld [vmem:[%s2020 + $0x38] sm:$0xf]
        %v2036 = vld [vmem:[%s2020 + $0x3c] sm:$0xf]
        %v2037 = vld [vmem:[%s2020 + $0x40] sm:$0xf]
        %v2038 = vld [vmem:[%s2020 + $0x44] sm:$0xf]
        %v2039 = vld [vmem:[%s2020 + $0x48] sm:$0xf]
        %v2040 = vld [vmem:[%s2020 + $0x4c] sm:$0xf]
        %v2041 = vld [vmem:[%s2020 + $0x50] sm:$0xf]
        %v2042 = vld [vmem:[%s2020 + $0x54] sm:$0xf]
        %v2043 = vld [vmem:[%s2020 + $0x58] sm:$0xf]
        %v2044 = vld [vmem:[%s2020 + $0x5c] sm:$0xf]
        %v2045 = vld [vmem:[%s2020 + $0x60] sm:$0xf]
        %v2046 = vld [vmem:[%s2020 + $0x64] sm:$0xf]
        %v2047 = vld [vmem:[%s2020 + $0x68] sm:$0xf]
        %v2048 = vld [vmem:[%s2020 + $0x6c] sm:$0xf]
        %v2049 = vld [vmem:[%s2020 + $0x70] sm:$0xf]
        %v2050 = vld [vmem:[%s2020 + $0x74] sm:$0xf]
        %v2051 = vld [vmem:[%s2020 + $0x78] sm:$0xf]
        %v2052 = vld [vmem:[%s2020 + $0x7c] sm:$0xf]
        %v2085 = vunpack.c.l.b16 %v2021
        %v2086 = vunpack.c.l.b16 %v2022
        %v2087 = vunpack.c.l.b16 %v2023
        %v2088 = vunpack.c.l.b16 %v2024
        %v2089 = vunpack.c.l.b16 %v2025
        %v2090 = vunpack.c.l.b16 %v2026
        %v2091 = vunpack.c.l.b16 %v2027
        %v2092 = vunpack.c.l.b16 %v2028
        %v2093 = vunpack.c.l.b16 %v2029
        %v2094 = vunpack.c.l.b16 %v2030
        %v2095 = vunpack.c.l.b16 %v2031
        %v2096 = vunpack.c.l.b16 %v2032
        %v2097 = vunpack.c.l.b16 %v2033
        %v2098 = vunpack.c.l.b16 %v2034
        %v2099 = vunpack.c.l.b16 %v2035
        %v2100 = vunpack.c.l.b16 %v2036
        %v2101 = vunpack.c.l.b16 %v2037
        %v2102 = vunpack.c.l.b16 %v2038
        %v2103 = vunpack.c.l.b16 %v2039
        %v2104 = vunpack.c.l.b16 %v2040
        %v2105 = vunpack.c.l.b16 %v2041
        %v2106 = vunpack.c.l.b16 %v2042
        %v2107 = vunpack.c.l.b16 %v2043
        %v2108 = vunpack.c.l.b16 %v2044
        %v2109 = vunpack.c.l.b16 %v2045
        %v2110 = vunpack.c.l.b16 %v2046
        %v2111 = vunpack.c.l.b16 %v2047
        %v2112 = vunpack.c.l.b16 %v2048
        %v2113 = vunpack.c.l.b16 %v2049
        %v2114 = vunpack.c.l.b16 %v2050
        %v2115 = vunpack.c.l.b16 %v2051
        %v2116 = vunpack.c.l.b16 %v2052
        %v2117 = vpack.c.b16 %v2086, %v2085
        %v2118 = vpack.c.b16 %v2088, %v2087
        %v2119 = vpack.c.b16 %v2090, %v2089
        %v2120 = vpack.c.b16 %v2092, %v2091
        %v2121 = vpack.c.b16 %v2094, %v2093
        %v2122 = vpack.c.b16 %v2096, %v2095
        %v2123 = vpack.c.b16 %v2098, %v2097
        %v2124 = vpack.c.b16 %v2100, %v2099
        %v2125 = vpack.c.b16 %v2102, %v2101
        %v2126 = vpack.c.b16 %v2104, %v2103
        %v2127 = vpack.c.b16 %v2106, %v2105
        %v2128 = vpack.c.b16 %v2108, %v2107
        %v2129 = vpack.c.b16 %v2110, %v2109
        %v2130 = vpack.c.b16 %v2112, %v2111
        %v2131 = vpack.c.b16 %v2114, %v2113
        %v2132 = vpack.c.b16 %v2116, %v2115
        %2149 = vmatprep.subr.bf16.mxu0 0
        %2150 = vmatpush1.bf16.msra.mxu0 %v938
        %2151 = vmatprep.subr.bf16.mxu0 0
        %2152 = vmatpush1.bf16.msra.mxu0 %v937
        %2153 = vmatprep.subr.bf16.mxu0 0
        %2154 = vmatpush1.bf16.msra.mxu0 %v936
        %2155 = vmatprep.subr.bf16.mxu0 0
        %2156 = vmatpush1.bf16.msra.mxu0 %v935
        %2157 = vmatprep.subr.bf16.mxu0 0
        %2158 = vmatpush1.bf16.msra.mxu0 %v934
        %2159 = vmatprep.subr.bf16.mxu0 0
        %2160 = vmatpush1.bf16.msra.mxu0 %v933
        %2161 = vmatprep.subr.bf16.mxu0 0
        %2162 = vmatpush1.bf16.msra.mxu0 %v932
        %2163 = vmatprep.subr.bf16.mxu0 0
        %2164 = vmatpush1.bf16.msra.mxu0 %v931
        %2165 = vmatprep.subr.bf16.mxu0 0
        %2166 = vmatpush2.bf16.msra.mxu0 0
        %2167 = vmatprep.subr.bf16.mxu0 0
        %2168 = vmatpush2.bf16.msra.mxu0 0
        %2169 = vmatprep.subr.bf16.mxu0 0
        %2170 = vmatpush2.bf16.msra.mxu0 0
        %2171 = vmatprep.subr.bf16.mxu0 0
        %2172 = vmatpush2.bf16.msra.mxu0 0
        %2173 = vmatprep.subr.bf16.mxu0 0
        %2174 = vmatpush2.bf16.msra.mxu0 0
        %2175 = vmatprep.subr.bf16.mxu0 0
        %2176 = vmatpush2.bf16.msra.mxu0 0
        %2177 = vmatprep.subr.bf16.mxu0 0
        %2178 = vmatpush2.bf16.msra.mxu0 0
        %2179 = vmatprep.subr.bf16.mxu0 0
        %2180 = vmatpush2.bf16.msra.mxu0 0
        %2181 = vmatprep.mubr.bf16.mxu0 0
        %2182 = vmatmul.mubr.bf16.gmra.mxu0 %v2117
        %v2183 = vpop.f32.mrf.mxu0
        %v2184 = vadd.f32 0.0, %v2183
        %v2185 = vpop.f32.mrf.mxu0
        %v2186 = vpop.f32.mrf.mxu0
        %v2187 = vadd.f32 0.0, %v2186
        %v2188 = vpop.f32.mrf.mxu0
        %2189 = vmatprep.mubr.bf16.mxu0 0
        %2190 = vmatmul.mubr.bf16.gmra.mxu0 %v2118
        %v2191 = vpop.f32.mrf.mxu0
        %v2192 = vadd.f32 0.0, %v2191
        %v2193 = vpop.f32.mrf.mxu0
        %v2194 = vpop.f32.mrf.mxu0
        %v2195 = vadd.f32 0.0, %v2194
        %v2196 = vpop.f32.mrf.mxu0
        %2197 = vmatprep.mubr.bf16.mxu0 0
        %2198 = vmatmul.mubr.bf16.gmra.mxu0 %v2119
        %v2199 = vpop.f32.mrf.mxu0
        %v2200 = vadd.f32 0.0, %v2199
        %v2201 = vpop.f32.mrf.mxu0
        %v2202 = vpop.f32.mrf.mxu0
        %v2203 = vadd.f32 0.0, %v2202
        %v2204 = vpop.f32.mrf.mxu0
        %2205 = vmatprep.mubr.bf16.mxu0 0
        %2206 = vmatmul.mubr.bf16.gmra.mxu0 %v2120
        %v2207 = vpop.f32.mrf.mxu0
        %v2208 = vadd.f32 0.0, %v2207
        %v2209 = vpop.f32.mrf.mxu0
        %v2210 = vpop.f32.mrf.mxu0
        %v2211 = vadd.f32 0.0, %v2210
        %v2212 = vpop.f32.mrf.mxu0
        %2213 = vmatprep.mubr.bf16.mxu0 0
        %2214 = vmatmul.mubr.bf16.gmra.mxu0 %v2121
        %v2215 = vpop.f32.mrf.mxu0
        %v2216 = vadd.f32 0.0, %v2215
        %v2217 = vpop.f32.mrf.mxu0
        %v2218 = vpop.f32.mrf.mxu0
        %v2219 = vadd.f32 0.0, %v2218
        %v2220 = vpop.f32.mrf.mxu0
        %2221 = vmatprep.mubr.bf16.mxu0 0
        %2222 = vmatmul.mubr.bf16.gmra.mxu0 %v2122
        %v2223 = vpop.f32.mrf.mxu0
        %v2224 = vadd.f32 0.0, %v2223
        %v2225 = vpop.f32.mrf.mxu0
        %v2226 = vpop.f32.mrf.mxu0
        %v2227 = vadd.f32 0.0, %v2226
        %v2228 = vpop.f32.mrf.mxu0
        %2229 = vmatprep.mubr.bf16.mxu0 0
        %2230 = vmatmul.mubr.bf16.gmra.mxu0 %v2123
        %v2231 = vpop.f32.mrf.mxu0
        %v2232 = vadd.f32 0.0, %v2231
        %v2233 = vpop.f32.mrf.mxu0
        %v2234 = vpop.f32.mrf.mxu0
        %v2235 = vadd.f32 0.0, %v2234
        %v2236 = vpop.f32.mrf.mxu0
        %2237 = vmatprep.mubr.bf16.mxu0 0
        %2238 = vmatmul.mubr.bf16.gmra.mxu0 %v2124
        %v2239 = vpop.f32.mrf.mxu0
        %v2240 = vadd.f32 0.0, %v2239
        %v2241 = vpop.f32.mrf.mxu0
        %v2242 = vpop.f32.mrf.mxu0
        %v2243 = vadd.f32 0.0, %v2242
        %v2244 = vpop.f32.mrf.mxu0
        %2245 = vmatprep.mubr.bf16.mxu0 0
        %2246 = vmatmul.mubr.bf16.gmra.mxu0 %v2125
        %v2247 = vpop.f32.mrf.mxu0
        %v2248 = vadd.f32 0.0, %v2247
        %v2249 = vpop.f32.mrf.mxu0
        %v2250 = vpop.f32.mrf.mxu0
        %v2251 = vadd.f32 0.0, %v2250
        %v2252 = vpop.f32.mrf.mxu0
        %2253 = vmatprep.mubr.bf16.mxu0 0
        %2254 = vmatmul.mubr.bf16.gmra.mxu0 %v2126
        %v2255 = vpop.f32.mrf.mxu0
        %v2256 = vadd.f32 0.0, %v2255
        %v2257 = vpop.f32.mrf.mxu0
        %v2258 = vpop.f32.mrf.mxu0
        %v2259 = vadd.f32 0.0, %v2258
        %v2260 = vpop.f32.mrf.mxu0
        %2261 = vmatprep.mubr.bf16.mxu0 0
        %2262 = vmatmul.mubr.bf16.gmra.mxu0 %v2127
        %v2263 = vpop.f32.mrf.mxu0
        %v2264 = vadd.f32 0.0, %v2263
        %v2265 = vpop.f32.mrf.mxu0
        %v2266 = vpop.f32.mrf.mxu0
        %v2267 = vadd.f32 0.0, %v2266
        %v2268 = vpop.f32.mrf.mxu0
        %2269 = vmatprep.mubr.bf16.mxu0 0
        %2270 = vmatmul.mubr.bf16.gmra.mxu0 %v2128
        %v2271 = vpop.f32.mrf.mxu0
        %v2272 = vadd.f32 0.0, %v2271
        %v2273 = vpop.f32.mrf.mxu0
        %v2274 = vpop.f32.mrf.mxu0
        %v2275 = vadd.f32 0.0, %v2274
        %v2276 = vpop.f32.mrf.mxu0
        %2277 = vmatprep.mubr.bf16.mxu0 0
        %2278 = vmatmul.mubr.bf16.gmra.mxu0 %v2129
        %v2279 = vpop.f32.mrf.mxu0
        %v2280 = vadd.f32 0.0, %v2279
        %v2281 = vpop.f32.mrf.mxu0
        %v2282 = vpop.f32.mrf.mxu0
        %v2283 = vadd.f32 0.0, %v2282
        %v2284 = vpop.f32.mrf.mxu0
        %2285 = vmatprep.mubr.bf16.mxu0 0
        %2286 = vmatmul.mubr.bf16.gmra.mxu0 %v2130
        %v2287 = vpop.f32.mrf.mxu0
        %v2288 = vadd.f32 0.0, %v2287
        %v2289 = vpop.f32.mrf.mxu0
        %v2290 = vpop.f32.mrf.mxu0
        %v2291 = vadd.f32 0.0, %v2290
        %v2292 = vpop.f32.mrf.mxu0
        %2293 = vmatprep.mubr.bf16.mxu0 0
        %2294 = vmatmul.mubr.bf16.gmra.mxu0 %v2131
        %v2295 = vpop.f32.mrf.mxu0
        %v2296 = vadd.f32 0.0, %v2295
        %v2297 = vpop.f32.mrf.mxu0
        %v2298 = vpop.f32.mrf.mxu0
        %v2299 = vadd.f32 0.0, %v2298
        %v2300 = vpop.f32.mrf.mxu0
        %2301 = vmatprep.mubr.bf16.mxu0 0
        %2302 = vmatmul.mubr.bf16.gmra.mxu0 %v2132
        %v2303 = vpop.f32.mrf.mxu0
        %v2304 = vadd.f32 0.0, %v2303
        %v2305 = vpop.f32.mrf.mxu0
        %v2306 = vpop.f32.mrf.mxu0
        %v2307 = vadd.f32 0.0, %v2306
        %v2308 = vpop.f32.mrf.mxu0
        %2309 = vdwg.mxu0
        %v2310 = vmul.f32 %v2184, %v1112
        %v2311 = vmul.f32 %v2187, %v1112
        %v2312 = vmul.f32 %v2192, %v1112
        %v2313 = vmul.f32 %v2195, %v1112
        %v2314 = vmul.f32 %v2200, %v1112
        %v2315 = vmul.f32 %v2203, %v1112
        %v2316 = vmul.f32 %v2208, %v1112
        %v2317 = vmul.f32 %v2211, %v1112
        %v2318 = vmul.f32 %v2216, %v1112
        %v2319 = vmul.f32 %v2219, %v1112
        %v2320 = vmul.f32 %v2224, %v1112
        %v2321 = vmul.f32 %v2227, %v1112
        %v2322 = vmul.f32 %v2232, %v1112
        %v2323 = vmul.f32 %v2235, %v1112
        %v2324 = vmul.f32 %v2240, %v1112
        %v2325 = vmul.f32 %v2243, %v1112
        %v2326 = vmul.f32 %v2248, %v1112
        %v2327 = vmul.f32 %v2251, %v1112
        %v2328 = vmul.f32 %v2256, %v1112
        %v2329 = vmul.f32 %v2259, %v1112
        %v2330 = vmul.f32 %v2264, %v1112
        %v2331 = vmul.f32 %v2267, %v1112
        %v2332 = vmul.f32 %v2272, %v1112
        %v2333 = vmul.f32 %v2275, %v1112
        %v2334 = vmul.f32 %v2280, %v1112
        %v2335 = vmul.f32 %v2283, %v1112
        %v2336 = vmul.f32 %v2288, %v1112
        %v2337 = vmul.f32 %v2291, %v1112
        %v2338 = vmul.f32 %v2296, %v1112
        %v2339 = vmul.f32 %v2299, %v1112
        %v2340 = vmul.f32 %v2304, %v1112
        %v2341 = vmul.f32 %v2307, %v1112
        %v2342 = vadd.f32 %v2310, %v1150
        %v2343 = vadd.f32 %v2311, %v1150
        %v2344 = vadd.f32 %v2312, %v1150
        %v2345 = vadd.f32 %v2313, %v1150
        %v2346 = vadd.f32 %v2314, %v1150
        %v2347 = vadd.f32 %v2315, %v1150
        %v2348 = vadd.f32 %v2316, %v1150
        %v2349 = vadd.f32 %v2317, %v1150
        %v2350 = vadd.f32 %v2318, %v1150
        %v2351 = vadd.f32 %v2319, %v1150
        %v2352 = vadd.f32 %v2320, %v1150
        %v2353 = vadd.f32 %v2321, %v1150
        %v2354 = vadd.f32 %v2322, %v1150
        %v2355 = vadd.f32 %v2323, %v1150
        %v2356 = vadd.f32 %v2324, %v1150
        %v2357 = vadd.f32 %v2325, %v1150
        %v2358 = vadd.f32 %v2326, %v1150
        %v2359 = vadd.f32 %v2327, %v1150
        %v2360 = vadd.f32 %v2328, %v1150
        %v2361 = vadd.f32 %v2329, %v1150
        %v2362 = vadd.f32 %v2330, %v1150
        %v2363 = vadd.f32 %v2331, %v1150
        %v2364 = vadd.f32 %v2332, %v1150
        %v2365 = vadd.f32 %v2333, %v1150
        %v2366 = vadd.f32 %v2334, %v1150
        %v2367 = vadd.f32 %v2335, %v1150
        %v2368 = vadd.f32 %v2336, %v1150
        %v2369 = vadd.f32 %v2337, %v1150
        %v2370 = vadd.f32 %v2338, %v1150
        %v2371 = vadd.f32 %v2339, %v1150
        %v2372 = vadd.f32 %v2340, %v1150
        %v2373 = vadd.f32 %v2341, %v1150
        %v2374 = vmax.f32 %v2342, 0.0
        %v2375 = vmax.f32 %v2343, 0.0
        %v2376 = vmax.f32 %v2344, 0.0
        %v2377 = vmax.f32 %v2345, 0.0
        %v2378 = vmax.f32 %v2346, 0.0
        %v2379 = vmax.f32 %v2347, 0.0
        %v2380 = vmax.f32 %v2348, 0.0
        %v2381 = vmax.f32 %v2349, 0.0
        %v2382 = vmax.f32 %v2350, 0.0
        %v2383 = vmax.f32 %v2351, 0.0
        %v2384 = vmax.f32 %v2352, 0.0
        %v2385 = vmax.f32 %v2353, 0.0
        %v2386 = vmax.f32 %v2354, 0.0
        %v2387 = vmax.f32 %v2355, 0.0
        %v2388 = vmax.f32 %v2356, 0.0
        %v2389 = vmax.f32 %v2357, 0.0
        %v2390 = vmax.f32 %v2358, 0.0
        %v2391 = vmax.f32 %v2359, 0.0
        %v2392 = vmax.f32 %v2360, 0.0
        %v2393 = vmax.f32 %v2361, 0.0
        %v2394 = vmax.f32 %v2362, 0.0
        %v2395 = vmax.f32 %v2363, 0.0
        %v2396 = vmax.f32 %v2364, 0.0
        %v2397 = vmax.f32 %v2365, 0.0
        %v2398 = vmax.f32 %v2366, 0.0
        %v2399 = vmax.f32 %v2367, 0.0
        %v2400 = vmax.f32 %v2368, 0.0
        %v2401 = vmax.f32 %v2369, 0.0
        %v2402 = vmax.f32 %v2370, 0.0
        %v2403 = vmax.f32 %v2371, 0.0
        %v2404 = vmax.f32 %v2372, 0.0
        %v2405 = vmax.f32 %v2373, 0.0
        %v2406 = vmax.f32 %v1988, %v2374
        %v2407 = vmax.f32 %v1989, %v2375
        %v2408 = vmax.f32 %v1990, %v2376
        %v2409 = vmax.f32 %v1991, %v2377
        %v2410 = vmax.f32 %v1992, %v2378
        %v2411 = vmax.f32 %v1993, %v2379
        %v2412 = vmax.f32 %v1994, %v2380
        %v2413 = vmax.f32 %v1995, %v2381
        %v2414 = vmax.f32 %v1996, %v2382
        %v2415 = vmax.f32 %v1997, %v2383
        %v2416 = vmax.f32 %v1998, %v2384
        %v2417 = vmax.f32 %v1999, %v2385
        %v2418 = vmax.f32 %v2000, %v2386
        %v2419 = vmax.f32 %v2001, %v2387
        %v2420 = vmax.f32 %v2002, %v2388
        %v2421 = vmax.f32 %v2003, %v2389
        %v2422 = vmax.f32 %v2004, %v2390
        %v2423 = vmax.f32 %v2005, %v2391
        %v2424 = vmax.f32 %v2006, %v2392
        %v2425 = vmax.f32 %v2007, %v2393
        %v2426 = vmax.f32 %v2008, %v2394
        %v2427 = vmax.f32 %v2009, %v2395
        %v2428 = vmax.f32 %v2010, %v2396
        %v2429 = vmax.f32 %v2011, %v2397
        %v2430 = vmax.f32 %v2012, %v2398
        %v2431 = vmax.f32 %v2013, %v2399
        %v2432 = vmax.f32 %v2014, %v2400
        %v2433 = vmax.f32 %v2015, %v2401
        %v2434 = vmax.f32 %v2016, %v2402
        %v2435 = vmax.f32 %v2017, %v2403
        %v2436 = vmax.f32 %v2018, %v2404
        %v2437 = vmax.f32 %v2019, %v2405
        %v2438 = vmax.f32 %v1602, %v2406
        %v2439 = vmax.f32 %v1603, %v2407
        %v2440 = vmax.f32 %v1604, %v2408
        %v2441 = vmax.f32 %v1605, %v2409
        %v2442 = vmax.f32 %v1606, %v2410
        %v2443 = vmax.f32 %v1607, %v2411
        %v2444 = vmax.f32 %v1608, %v2412
        %v2445 = vmax.f32 %v1609, %v2413
        %v2446 = vmax.f32 %v1610, %v2414
        %v2447 = vmax.f32 %v1611, %v2415
        %v2448 = vmax.f32 %v1612, %v2416
        %v2449 = vmax.f32 %v1613, %v2417
        %v2450 = vmax.f32 %v1614, %v2418
        %v2451 = vmax.f32 %v1615, %v2419
        %v2452 = vmax.f32 %v1616, %v2420
        %v2453 = vmax.f32 %v1617, %v2421
        %v2454 = vmax.f32 %v1618, %v2422
        %v2455 = vmax.f32 %v1619, %v2423
        %v2456 = vmax.f32 %v1620, %v2424
        %v2457 = vmax.f32 %v1621, %v2425
        %v2458 = vmax.f32 %v1622, %v2426
        %v2459 = vmax.f32 %v1623, %v2427
        %v2460 = vmax.f32 %v1624, %v2428
        %v2461 = vmax.f32 %v1625, %v2429
        %v2462 = vmax.f32 %v1626, %v2430
        %v2463 = vmax.f32 %v1627, %v2431
        %v2464 = vmax.f32 %v1628, %v2432
        %v2465 = vmax.f32 %v1629, %v2433
        %v2466 = vmax.f32 %v1630, %v2434
        %v2467 = vmax.f32 %v1631, %v2435
        %v2468 = vmax.f32 %v1632, %v2436
        %v2469 = vmax.f32 %v1633, %v2437
        %2470 = vst [vmem:[%s750] sm:$0xff] %v2438
        %2471 = vst [vmem:[%s750 + $0x8] sm:$0xff] %v2439
        %2472 = vst [vmem:[%s750 + $0x10] sm:$0xff] %v2440
        %2473 = vst [vmem:[%s750 + $0x18] sm:$0xff] %v2441
        %2474 = vst [vmem:[%s750 + $0x20] sm:$0xff] %v2442
        %2475 = vst [vmem:[%s750 + $0x28] sm:$0xff] %v2443
        %2476 = vst [vmem:[%s750 + $0x30] sm:$0xff] %v2444
        %2477 = vst [vmem:[%s750 + $0x38] sm:$0xff] %v2445
        %2478 = vst [vmem:[%s750 + $0x40] sm:$0xff] %v2446
        %2479 = vst [vmem:[%s750 + $0x48] sm:$0xff] %v2447
        %2480 = vst [vmem:[%s750 + $0x50] sm:$0xff] %v2448
        %2481 = vst [vmem:[%s750 + $0x58] sm:$0xff] %v2449
        %2482 = vst [vmem:[%s750 + $0x60] sm:$0xff] %v2450
        %2483 = vst [vmem:[%s750 + $0x68] sm:$0xff] %v2451
        %2484 = vst [vmem:[%s750 + $0x70] sm:$0xff] %v2452
        %2485 = vst [vmem:[%s750 + $0x78] sm:$0xff] %v2453
        %2486 = vst [vmem:[%s750 + $0x80] sm:$0xff] %v2454
        %2487 = vst [vmem:[%s750 + $0x88] sm:$0xff] %v2455
        %2488 = vst [vmem:[%s750 + $0x90] sm:$0xff] %v2456
        %2489 = vst [vmem:[%s750 + $0x98] sm:$0xff] %v2457
        %2490 = vst [vmem:[%s750 + $0xa0] sm:$0xff] %v2458
        %2491 = vst [vmem:[%s750 + $0xa8] sm:$0xff] %v2459
        %2492 = vst [vmem:[%s750 + $0xb0] sm:$0xff] %v2460
        %2493 = vst [vmem:[%s750 + $0xb8] sm:$0xff] %v2461
        %2494 = vst [vmem:[%s750 + $0xc0] sm:$0xff] %v2462
        %2495 = vst [vmem:[%s750 + $0xc8] sm:$0xff] %v2463
        %2496 = vst [vmem:[%s750 + $0xd0] sm:$0xff] %v2464
        %2497 = vst [vmem:[%s750 + $0xd8] sm:$0xff] %v2465
        %2498 = vst [vmem:[%s750 + $0xe0] sm:$0xff] %v2466
        %2499 = vst [vmem:[%s750 + $0xe8] sm:$0xff] %v2467
        %2500 = vst [vmem:[%s750 + $0xf0] sm:$0xff] %v2468
        %2501 = vst [vmem:[%s750 + $0xf8] sm:$0xff] %v2469
        %s2502 = smul.u32 32, %s15
        %p2503 = scmp.lt.s32.totalorder %s2502, 63
        %s2504 = scalar_select %p2503, %s2502, 63
        %s2505 = smul.addr %s2504, 8
        %s2506 = scalar_lea.vmem %s4, %s2505
        // Predicated region
        $region78: #{lenet_pallas.3} parent=72 // pred_check
          %p2507 = pneg %p122
        $region79: #{lenet_pallas.3} parent=72 // pred_check_branch
          %2509 = sbr.rel (%p2507) target = $region81
        $region80: #{lenet_pallas.3} parent=72 // pred_region
          %s2510 = smul.u32 32, %s15
        $region81: #{lenet_pallas.3} parent=72 // pred_fallthru
          _
      $region73: #{lenet_pallas.3} parent=5 // pred_fallthru
        _
      %p2511 = scmp.le.s32.totalorder 2, %s10
      // Predicated region
      $region82: #{lenet_pallas.3} parent=5 // pred_check
        %p2512 = pneg %p2511
      $region83: #{lenet_pallas.3} parent=5 // pred_check_branch
        %2514 = sbr.rel (%p2512) target = $region85
      $region84: #{lenet_pallas.3} parent=5 // pred_region
        %s2515 = ssub.s32 %s10, 2
        // Predicated region
        $region86: #{lenet_pallas.3} parent=84 // pred_check
          %p2516 = pneg %p128
        $region87: #{lenet_pallas.3} parent=84 // pred_check_branch
          %2518 = sbr.rel (%p2516) target = $region89
        $region88: #{lenet_pallas.3} parent=84 // pred_region
          %s2519 = smul.u32 32, %s16
          %p2520 = scmp.lt.s32.totalorder %s2519, 63
          %s2521 = scalar_select %p2520, %s2519, 63
          %s2522 = smul.addr %s2521, 8
          %s2523 = scalar_lea.vmem %s4, %s2522
        $region89: #{lenet_pallas.3} parent=84 // pred_fallthru
          _
      $region85: #{lenet_pallas.3} parent=5 // pred_fallthru
        _
    $region6: #{lenet_pallas.3} parent=1 // loop_footer
      %s14 = sadd.s32 1, %s10
    $region7: #{lenet_pallas.3} parent=1 // loop_footer_branch
      %9 = sbr.rel target = $region3
    $region8: #{lenet_pallas.3} parent=1 // loop_exit
      _

// kernel: lenet_pallas.4
$region0: #{lenet_pallas.4}
  #allocation0 [shape = 'u32[]', space=smem, size = 0x4, offset = 0x4, fixed_abs, tag = 'smem constant byte address 0x4 - core index']
  #allocation1 [shape = 'u32[144,128]{1,0:T(1,128)}', space=vmem, size = 0x12000, scoped, tag = 'internal scratch']
  %s0 = inlined_call_operand.vmem [shape: bf16[4,128,512], index: 0, kind: input, shape index: {}]
  %s1 = inlined_call_operand.vmem [shape: bf16[512,128], index: 1, kind: input, shape index: {}]
  %s2 = inlined_call_operand.vmem [shape: f32[1,128], index: 2, kind: input, shape index: {}]
  %s3 = inlined_call_operand.vmem [shape: f32[1,128], index: 3, kind: input, shape index: {}]
  %s4 = inlined_call_operand.vmem [shape: f32[128,128], index: 4, kind: output, shape index: {}]
  %s5 = sld [smem:[#allocation0]]
  $region72: #{lenet_pallas.4} parent=0
    _
  %s7 = ssub.s32 1, %s5
  %s8 = scalar_select 0, %s7, %s5
  $region1: #{lenet_pallas.4} parent=0
    #allocation2 [shape = 'u8[524288]{0}', space=vmem, size = 0x80000, scoped, tag = 'input window, operand 0']
    loop: start=0, step=1, limit=4
    $region2: #{lenet_pallas.4} parent=1 // loop_pre_header
      _
    $region3: #{lenet_pallas.4} parent=1 // loop_header
      %s10 = sphi 0, %s14
      %p11 = scmp.ge.s32.totalorder %s10, 4
      %s20 = sphi 0, %s22
      %s23 = sphi 0, %s20
      %s24 = sphi 0, %s23
      %s40 = sphi 0, %s24
      %s44 = sphi 0, %s44
      %s46 = sphi 0, %s44
      %s47 = sphi 0, %s46
      %s61 = sphi 0, %s47
      %s65 = sphi 0, %s65
      %s67 = sphi 0, %s65
      %s68 = sphi 0, %s67
      %s82 = sphi 0, %s68
      %s86 = sphi 0, %s86
      %s88 = sphi 0, %s86
      %s89 = sphi 0, %s88
      %s103 = sphi 0, %s89
      %s109 = sphi 0, %s111
      %s112 = sphi 0, %s109
      %s113 = sphi 0, %s112
      %s129 = sphi 0, %s113
    $region4: #{lenet_pallas.4} parent=1 // loop_header_branch
      %13 = sbr.rel (%p11) target = $region8
    $region5: #{lenet_pallas.4} parent=1 // loop_body
      %s15 = ssub.s32 %s10, 1
      %s16 = ssub.s32 %s10, 2
      %s17 = sadd.s32 %s10, 1
      %s18 = ssub.s32 %s10, %s17
      %p19 = scmp.eq.s32.totalorder %s18, 0
      %s21 = sadd.s32 %s20, 1
      %s22 = scalar_select %p19, %s20, %s21
      %p25 = pneg %p19
      %p26 = scmp.eq.s32.totalorder %s10, 1
      %p27 = por %p25, %p26
      %p28 = scmp.ne.s32.totalorder %s20, %s23
      %p29 = scmp.eq.s32.totalorder %s10, 0
      %p30 = por %p28, %p29
      %p31 = scmp.ne.s32.totalorder %s20, %s23
      %p32 = scmp.eq.s32.totalorder %s15, 1
      %p33 = por %p31, %p32
      %p34 = scmp.ne.s32.totalorder %s23, %s24
      %p35 = scmp.eq.s32.totalorder %s15, 0
      %p36 = por %p34, %p35
      %p37 = scmp.ne.s32.totalorder %s23, %s24
      %p38 = scmp.eq.s32.totalorder %s16, 1
      %p39 = por %p37, %p38
      %p41 = scmp.ne.s32.totalorder %s24, %s40
      %p42 = scmp.eq.s32.totalorder %s16, 0
      %p43 = por %p41, %p42
      %s45 = sadd.s32 %s44, 1
      %p48 = scmp.eq.s32.totalorder %s10, 1
      %p49 = scmp.ne.s32.totalorder %s44, %s46
      %p50 = scmp.eq.s32.totalorder %s10, 0
      %p51 = por %p49, %p50
      %p52 = scmp.ne.s32.totalorder %s44, %s46
      %p53 = scmp.eq.s32.totalorder %s15, 1
      %p54 = por %p52, %p53
      %p55 = scmp.ne.s32.totalorder %s46, %s47
      %p56 = scmp.eq.s32.totalorder %s15, 0
      %p57 = por %p55, %p56
      %p58 = scmp.ne.s32.totalorder %s46, %s47
      %p59 = scmp.eq.s32.totalorder %s16, 1
      %p60 = por %p58, %p59
      %p62 = scmp.ne.s32.totalorder %s47, %s61
      %p63 = scmp.eq.s32.totalorder %s16, 0
      %p64 = por %p62, %p63
      %s66 = sadd.s32 %s65, 1
      %p69 = scmp.eq.s32.totalorder %s10, 1
      %p70 = scmp.ne.s32.totalorder %s65, %s67
      %p71 = scmp.eq.s32.totalorder %s10, 0
      %p72 = por %p70, %p71
      %p73 = scmp.ne.s32.totalorder %s65, %s67
      %p74 = scmp.eq.s32.totalorder %s15, 1
      %p75 = por %p73, %p74
      %p76 = scmp.ne.s32.totalorder %s67, %s68
      %p77 = scmp.eq.s32.totalorder %s15, 0
      %p78 = por %p76, %p77
      %p79 = scmp.ne.s32.totalorder %s67, %s68
      %p80 = scmp.eq.s32.totalorder %s16, 1
      %p81 = por %p79, %p80
      %p83 = scmp.ne.s32.totalorder %s68, %s82
      %p84 = scmp.eq.s32.totalorder %s16, 0
      %p85 = por %p83, %p84
      %s87 = sadd.s32 %s86, 1
      %p90 = scmp.eq.s32.totalorder %s10, 1
      %p91 = scmp.ne.s32.totalorder %s86, %s88
      %p92 = scmp.eq.s32.totalorder %s10, 0
      %p93 = por %p91, %p92
      %p94 = scmp.ne.s32.totalorder %s86, %s88
      %p95 = scmp.eq.s32.totalorder %s15, 1
      %p96 = por %p94, %p95
      %p97 = scmp.ne.s32.totalorder %s88, %s89
      %p98 = scmp.eq.s32.totalorder %s15, 0
      %p99 = por %p97, %p98
      %p100 = scmp.ne.s32.totalorder %s88, %s89
      %p101 = scmp.eq.s32.totalorder %s16, 1
      %p102 = por %p100, %p101
      %p104 = scmp.ne.s32.totalorder %s89, %s103
      %p105 = scmp.eq.s32.totalorder %s16, 0
      %p106 = por %p104, %p105
      %s107 = ssub.s32 %s10, %s17
      %p108 = scmp.eq.s32.totalorder %s107, 0
      %s110 = sadd.s32 %s109, 1
      %s111 = scalar_select %p108, %s109, %s110
      %p114 = pneg %p108
      %p115 = scmp.eq.s32.totalorder %s10, 1
      %p116 = por %p114, %p115
      %p117 = scmp.ne.s32.totalorder %s109, %s112
      %p118 = scmp.eq.s32.totalorder %s10, 0
      %p119 = por %p117, %p118
      %p120 = scmp.ne.s32.totalorder %s109, %s112
      %p121 = scmp.eq.s32.totalorder %s15, 1
      %p122 = por %p120, %p121
      %p123 = scmp.ne.s32.totalorder %s112, %s113
      %p124 = scmp.eq.s32.totalorder %s15, 0
      %p125 = por %p123, %p124
      %p126 = scmp.ne.s32.totalorder %s112, %s113
      %p127 = scmp.eq.s32.totalorder %s16, 1
      %p128 = por %p126, %p127
      %p130 = scmp.ne.s32.totalorder %s113, %s129
      %p131 = scmp.eq.s32.totalorder %s16, 0
      %p132 = por %p130, %p131
      %p133 = scmp.le.s32.totalorder 1, %s10
      %p134 = scmp.lt.s32.totalorder %s10, 3
      %p135 = pnand %p133, %p134
      %p136 = pneg %p135
      // Predicated region
      $region9: #{lenet_pallas.4} parent=5 // pred_check
        _
      $region10: #{lenet_pallas.4} parent=5 // pred_check_branch
        %138 = sbr.rel (%p135) target = $region12
      $region11: #{lenet_pallas.4} parent=5 // pred_region
        %s139 = ssub.s32 %s10, 1
        // Predicated region
        $region13: #{lenet_pallas.4} parent=11 // pred_check
          %p140 = pneg %p57
        $region14: #{lenet_pallas.4} parent=11 // pred_check_branch
          %142 = sbr.rel (%p140) target = $region16
        $region15: #{lenet_pallas.4} parent=11 // pred_region
          _
        $region16: #{lenet_pallas.4} parent=11 // pred_fallthru
          _
        // Predicated region
        $region17: #{lenet_pallas.4} parent=11 // pred_check
          %p143 = pneg %p78
        $region18: #{lenet_pallas.4} parent=11 // pred_check_branch
          %145 = sbr.rel (%p143) target = $region20
        $region19: #{lenet_pallas.4} parent=11 // pred_region
          _
        $region20: #{lenet_pallas.4} parent=11 // pred_fallthru
          _
        // Predicated region
        $region21: #{lenet_pallas.4} parent=11 // pred_check
          %p146 = pneg %p99
        $region22: #{lenet_pallas.4} parent=11 // pred_check_branch
          %148 = sbr.rel (%p146) target = $region24
        $region23: #{lenet_pallas.4} parent=11 // pred_region
          _
        $region24: #{lenet_pallas.4} parent=11 // pred_fallthru
          _
      $region12: #{lenet_pallas.4} parent=5 // pred_fallthru
        _
      %p149 = scmp.lt.s32.totalorder %s10, 2
      // Predicated region
      $region25: #{lenet_pallas.4} parent=5 // pred_check
        %p150 = pneg %p149
      $region26: #{lenet_pallas.4} parent=5 // pred_check_branch
        %152 = sbr.rel (%p150) target = $region28
      $region27: #{lenet_pallas.4} parent=5 // pred_region
        // Predicated region
        $region29: #{lenet_pallas.4} parent=27 // pred_check
          %p153 = pneg %p30
        $region30: #{lenet_pallas.4} parent=27 // pred_check_branch
          %155 = sbr.rel (%p153) target = $region32
        $region31: #{lenet_pallas.4} parent=27 // pred_region
          %s156 = sand.u32 %s20, 1
          %s157 = sand.u32 %s20, 1
          %s158 = smul.addr %s157, 512
          %s159 = scalar_lea.vmem [#allocation2], %s158
          %s160 = smul.u32 8, %s10
          %s161 = smul.addr %s160, 4
          %s162 = smul.addr %s161, 4
          %s163 = scalar_lea.vmem %s0, %s162
          // Predicated region
          $region33: #{lenet_pallas.4} parent=31 // pred_check
            _
          $region34: #{lenet_pallas.4} parent=31 // pred_check_branch
            %165 = sbr.rel (0) target = $region36
          $region35: #{lenet_pallas.4} parent=31 // pred_region
            // Predicated region
            $region37: #{lenet_pallas.4} parent=35 // pred_check
              _
            $region38: #{lenet_pallas.4} parent=35 // pred_check_branch
              %167 = sbr.rel (0) target = $region40
            $region39: #{lenet_pallas.4} parent=35 // pred_region
              loop: start=0, step=1, limit=1
              $region41: #{lenet_pallas.4} parent=39 // loop_pre_header
                _
              $region42: #{lenet_pallas.4} parent=39 // loop_header
                %s169 = sphi 0, %s173
                %p170 = scmp.ge.s32.totalorder %s169, 1
                %s174 = sphi %s163, %s163
                %s175 = sphi %s159, %s159
              $region43: #{lenet_pallas.4} parent=39 // loop_header_branch
                %172 = sbr.rel (%p170) target = $region47
              $region44: #{lenet_pallas.4} parent=39 // loop_body
                %v176 = vld [vmem:[%s174] sm:$0xff]
                %177 = vst [vmem:[%s175] sm:$0xff] %v176
                %v178 = vld [vmem:[%s174 + $0x8] sm:$0xff]
                %179 = vst [vmem:[%s175 + $0x8] sm:$0xff] %v178
                %v180 = vld [vmem:[%s174 + $0x10] sm:$0xff]
                %181 = vst [vmem:[%s175 + $0x10] sm:$0xff] %v180
                %v182 = vld [vmem:[%s174 + $0x18] sm:$0xff]
                %183 = vst [vmem:[%s175 + $0x18] sm:$0xff] %v182
                %v184 = vld [vmem:[%s174 + $0x20] sm:$0xff]
                %185 = vst [vmem:[%s175 + $0x20] sm:$0xff] %v184
                %v186 = vld [vmem:[%s174 + $0x28] sm:$0xff]
                %187 = vst [vmem:[%s175 + $0x28] sm:$0xff] %v186
                %v188 = vld [vmem:[%s174 + $0x30] sm:$0xff]
                %189 = vst [vmem:[%s175 + $0x30] sm:$0xff] %v188
                %v190 = vld [vmem:[%s174 + $0x38] sm:$0xff]
                %191 = vst [vmem:[%s175 + $0x38] sm:$0xff] %v190
                %v192 = vld [vmem:[%s174 + $0x40] sm:$0xff]
                %193 = vst [vmem:[%s175 + $0x40] sm:$0xff] %v192
                %v194 = vld [vmem:[%s174 + $0x48] sm:$0xff]
                %195 = vst [vmem:[%s175 + $0x48] sm:$0xff] %v194
                %v196 = vld [vmem:[%s174 + $0x50] sm:$0xff]
                %197 = vst [vmem:[%s175 + $0x50] sm:$0xff] %v196
                %v198 = vld [vmem:[%s174 + $0x58] sm:$0xff]
                %199 = vst [vmem:[%s175 + $0x58] sm:$0xff] %v198
                %v200 = vld [vmem:[%s174 + $0x60] sm:$0xff]
                %201 = vst [vmem:[%s175 + $0x60] sm:$0xff] %v200
                %v202 = vld [vmem:[%s174 + $0x68] sm:$0xff]
                %203 = vst [vmem:[%s175 + $0x68] sm:$0xff] %v202
                %v204 = vld [vmem:[%s174 + $0x70] sm:$0xff]
                %205 = vst [vmem:[%s175 + $0x70] sm:$0xff] %v204
                %v206 = vld [vmem:[%s174 + $0x78] sm:$0xff]
                %207 = vst [vmem:[%s175 + $0x78] sm:$0xff] %v206
                %v208 = vld [vmem:[%s174 + $0x100] sm:$0xff]
                %209 = vst [vmem:[%s175 + $0x80] sm:$0xff] %v208
                %v210 = vld [vmem:[%s174 + $0x108] sm:$0xff]
                %211 = vst [vmem:[%s175 + $0x88] sm:$0xff] %v210
                %v212 = vld [vmem:[%s174 + $0x110] sm:$0xff]
                %213 = vst [vmem:[%s175 + $0x90] sm:$0xff] %v212
                %v214 = vld [vmem:[%s174 + $0x118] sm:$0xff]
                %215 = vst [vmem:[%s175 + $0x98] sm:$0xff] %v214
                %v216 = vld [vmem:[%s174 + $0x120] sm:$0xff]
                %217 = vst [vmem:[%s175 + $0xa0] sm:$0xff] %v216
                %v218 = vld [vmem:[%s174 + $0x128] sm:$0xff]
                %219 = vst [vmem:[%s175 + $0xa8] sm:$0xff] %v218
                %v220 = vld [vmem:[%s174 + $0x130] sm:$0xff]
                %221 = vst [vmem:[%s175 + $0xb0] sm:$0xff] %v220
                %v222 = vld [vmem:[%s174 + $0x138] sm:$0xff]
                %223 = vst [vmem:[%s175 + $0xb8] sm:$0xff] %v222
                %v224 = vld [vmem:[%s174 + $0x140] sm:$0xff]
                %225 = vst [vmem:[%s175 + $0xc0] sm:$0xff] %v224
                %v226 = vld [vmem:[%s174 + $0x148] sm:$0xff]
                %227 = vst [vmem:[%s175 + $0xc8] sm:$0xff] %v226
                %v228 = vld [vmem:[%s174 + $0x150] sm:$0xff]
                %229 = vst [vmem:[%s175 + $0xd0] sm:$0xff] %v228
                %v230 = vld [vmem:[%s174 + $0x158] sm:$0xff]
                %231 = vst [vmem:[%s175 + $0xd8] sm:$0xff] %v230
                %v232 = vld [vmem:[%s174 + $0x160] sm:$0xff]
                %233 = vst [vmem:[%s175 + $0xe0] sm:$0xff] %v232
                %v234 = vld [vmem:[%s174 + $0x168] sm:$0xff]
                %235 = vst [vmem:[%s175 + $0xe8] sm:$0xff] %v234
                %v236 = vld [vmem:[%s174 + $0x170] sm:$0xff]
                %237 = vst [vmem:[%s175 + $0xf0] sm:$0xff] %v236
                %v238 = vld [vmem:[%s174 + $0x178] sm:$0xff]
                %239 = vst [vmem:[%s175 + $0xf8] sm:$0xff] %v238
                %v240 = vld [vmem:[%s174 + $0x200] sm:$0xff]
                %241 = vst [vmem:[%s175 + $0x100] sm:$0xff] %v240
                %v242 = vld [vmem:[%s174 + $0x208] sm:$0xff]
                %243 = vst [vmem:[%s175 + $0x108] sm:$0xff] %v242
                %v244 = vld [vmem:[%s174 + $0x210] sm:$0xff]
                %245 = vst [vmem:[%s175 + $0x110] sm:$0xff] %v244
                %v246 = vld [vmem:[%s174 + $0x218] sm:$0xff]
                %247 = vst [vmem:[%s175 + $0x118] sm:$0xff] %v246
                %v248 = vld [vmem:[%s174 + $0x220] sm:$0xff]
                %249 = vst [vmem:[%s175 + $0x120] sm:$0xff] %v248
                %v250 = vld [vmem:[%s174 + $0x228] sm:$0xff]
                %251 = vst [vmem:[%s175 + $0x128] sm:$0xff] %v250
                %v252 = vld [vmem:[%s174 + $0x230] sm:$0xff]
                %253 = vst [vmem:[%s175 + $0x130] sm:$0xff] %v252
                %v254 = vld [vmem:[%s174 + $0x238] sm:$0xff]
                %255 = vst [vmem:[%s175 + $0x138] sm:$0xff] %v254
                %v256 = vld [vmem:[%s174 + $0x240] sm:$0xff]
                %257 = vst [vmem:[%s175 + $0x140] sm:$0xff] %v256
                %v258 = vld [vmem:[%s174 + $0x248] sm:$0xff]
                %259 = vst [vmem:[%s175 + $0x148] sm:$0xff] %v258
                %v260 = vld [vmem:[%s174 + $0x250] sm:$0xff]
                %261 = vst [vmem:[%s175 + $0x150] sm:$0xff] %v260
                %v262 = vld [vmem:[%s174 + $0x258] sm:$0xff]
                %263 = vst [vmem:[%s175 + $0x158] sm:$0xff] %v262
                %v264 = vld [vmem:[%s174 + $0x260] sm:$0xff]
                %265 = vst [vmem:[%s175 + $0x160] sm:$0xff] %v264
                %v266 = vld [vmem:[%s174 + $0x268] sm:$0xff]
                %267 = vst [vmem:[%s175 + $0x168] sm:$0xff] %v266
                %v268 = vld [vmem:[%s174 + $0x270] sm:$0xff]
                %269 = vst [vmem:[%s175 + $0x170] sm:$0xff] %v268
                %v270 = vld [vmem:[%s174 + $0x278] sm:$0xff]
                %271 = vst [vmem:[%s175 + $0x178] sm:$0xff] %v270
                %v272 = vld [vmem:[%s174 + $0x300] sm:$0xff]
                %273 = vst [vmem:[%s175 + $0x180] sm:$0xff] %v272
                %v274 = vld [vmem:[%s174 + $0x308] sm:$0xff]
                %275 = vst [vmem:[%s175 + $0x188] sm:$0xff] %v274
                %v276 = vld [vmem:[%s174 + $0x310] sm:$0xff]
                %277 = vst [vmem:[%s175 + $0x190] sm:$0xff] %v276
                %v278 = vld [vmem:[%s174 + $0x318] sm:$0xff]
                %279 = vst [vmem:[%s175 + $0x198] sm:$0xff] %v278
                %v280 = vld [vmem:[%s174 + $0x320] sm:$0xff]
                %281 = vst [vmem:[%s175 + $0x1a0] sm:$0xff] %v280
                %v282 = vld [vmem:[%s174 + $0x328] sm:$0xff]
                %283 = vst [vmem:[%s175 + $0x1a8] sm:$0xff] %v282
                %v284 = vld [vmem:[%s174 + $0x330] sm:$0xff]
                %285 = vst [vmem:[%s175 + $0x1b0] sm:$0xff] %v284
                %v286 = vld [vmem:[%s174 + $0x338] sm:$0xff]
                %287 = vst [vmem:[%s175 + $0x1b8] sm:$0xff] %v286
                %v288 = vld [vmem:[%s174 + $0x340] sm:$0xff]
                %289 = vst [vmem:[%s175 + $0x1c0] sm:$0xff] %v288
                %v290 = vld [vmem:[%s174 + $0x348] sm:$0xff]
                %291 = vst [vmem:[%s175 + $0x1c8] sm:$0xff] %v290
                %v292 = vld [vmem:[%s174 + $0x350] sm:$0xff]
                %293 = vst [vmem:[%s175 + $0x1d0] sm:$0xff] %v292
                %v294 = vld [vmem:[%s174 + $0x358] sm:$0xff]
                %295 = vst [vmem:[%s175 + $0x1d8] sm:$0xff] %v294
                %v296 = vld [vmem:[%s174 + $0x360] sm:$0xff]
                %297 = vst [vmem:[%s175 + $0x1e0] sm:$0xff] %v296
                %v298 = vld [vmem:[%s174 + $0x368] sm:$0xff]
                %299 = vst [vmem:[%s175 + $0x1e8] sm:$0xff] %v298
                %v300 = vld [vmem:[%s174 + $0x370] sm:$0xff]
                %301 = vst [vmem:[%s175 + $0x1f0] sm:$0xff] %v300
                %v302 = vld [vmem:[%s174 + $0x378] sm:$0xff]
                %303 = vst [vmem:[%s175 + $0x1f8] sm:$0xff] %v302
              $region45: #{lenet_pallas.4} parent=39 // loop_footer
                %s173 = sadd.s32 1, %s169
              $region46: #{lenet_pallas.4} parent=39 // loop_footer_branch
                %168 = sbr.rel target = $region42
              $region47: #{lenet_pallas.4} parent=39 // loop_exit
                _
            $region40: #{lenet_pallas.4} parent=35 // pred_fallthru
              _
            // Predicated region
            $region48: #{lenet_pallas.4} parent=35 // pred_check
              _
            $region49: #{lenet_pallas.4} parent=35 // pred_check_branch
              %305 = sbr.rel target = $region51
            $region50: #{lenet_pallas.4} parent=35 // pred_region
              _
            $region51: #{lenet_pallas.4} parent=35 // pred_fallthru
              _
          $region36: #{lenet_pallas.4} parent=31 // pred_fallthru
            _
          %306 = vnop
        $region32: #{lenet_pallas.4} parent=27 // pred_fallthru
          _
      $region28: #{lenet_pallas.4} parent=5 // pred_fallthru
        _
      %p307 = scmp.le.s32.totalorder 1, %s10
      %p308 = scmp.lt.s32.totalorder %s10, 3
      %p309 = pnand %p307, %p308
      %p310 = pneg %p309
      // Predicated region
      $region52: #{lenet_pallas.4} parent=5 // pred_check
        _
      $region53: #{lenet_pallas.4} parent=5 // pred_check_branch
        %312 = sbr.rel (%p309) target = $region55
      $region54: #{lenet_pallas.4} parent=5 // pred_region
        %s313 = ssub.s32 %s10, 1
        %s314 = sand.u32 %s23, 1
        %s315 = sand.u32 %s23, 1
        %s316 = smul.addr %s315, 512
        %s317 = scalar_lea.vmem [#allocation2], %s316
        // Predicated region
        $region56: #{lenet_pallas.4} parent=54 // pred_check
          %p318 = pneg %p36
        $region57: #{lenet_pallas.4} parent=54 // pred_check_branch
          %320 = sbr.rel (%p318) target = $region59
        $region58: #{lenet_pallas.4} parent=54 // pred_region
          _
        $region59: #{lenet_pallas.4} parent=54 // pred_fallthru
          _
        %s321 = sand.u32 %s23, 1
        %s322 = sand.u32 %s23, 1
        %s323 = smul.addr %s322, 512
        %s324 = scalar_lea.vmem [#allocation2], %s323
        %p325 = pneg %p36
        %p326 = pneg %p33
        %p327 = pneg %p57
        %p328 = pneg %p54
        %p329 = pneg %p78
        %p330 = pneg %p75
        %p331 = pneg %p99
        %p332 = pneg %p96
        %p333 = pneg %p125
        %p334 = pneg %p122
        %s335 = smul.u32 8, %s15
        %p336 = scmp.lt.s32.totalorder %s335, 15
        %s337 = scalar_select %p336, %s335, 15
        %s338 = smul.addr %s337, 8
        %s339 = scalar_lea.vmem %s4, %s338
        %s340 = smul.u32 8, %s15
        %s341 = smul.u32 8, %s15
        %p342 = scmp.lt.s32.totalorder %s341, 15
        %s343 = scalar_select %p342, %s341, 15
        %s344 = smul.addr %s343, 8
        %s345 = scalar_lea.vmem %s4, %s344
        %s346 = smul.u32 8, %s15
        %v348 = vld [vmem:[%s1] sm:$0xf]
        %v349 = vld [vmem:[%s1 + $0x4] sm:$0xf]
        %v350 = vld [vmem:[%s1 + $0x8] sm:$0xf]
        %v351 = vld [vmem:[%s1 + $0xc] sm:$0xf]
        %v352 = vld [vmem:[%s1 + $0x10] sm:$0xf]
        %v353 = vld [vmem:[%s1 + $0x14] sm:$0xf]
        %v354 = vld [vmem:[%s1 + $0x18] sm:$0xf]
        %v355 = vld [vmem:[%s1 + $0x1c] sm:$0xf]
        %v356 = vld [vmem:[%s1 + $0x20] sm:$0xf]
        %v357 = vld [vmem:[%s1 + $0x24] sm:$0xf]
        %v358 = vld [vmem:[%s1 + $0x28] sm:$0xf]
        %v359 = vld [vmem:[%s1 + $0x2c] sm:$0xf]
        %v360 = vld [vmem:[%s1 + $0x30] sm:$0xf]
        %v361 = vld [vmem:[%s1 + $0x34] sm:$0xf]
        %v362 = vld [vmem:[%s1 + $0x38] sm:$0xf]
        %v363 = vld [vmem:[%s1 + $0x3c] sm:$0xf]
        %v364 = vld [vmem:[%s1 + $0x40] sm:$0xf]
        %v365 = vld [vmem:[%s1 + $0x44] sm:$0xf]
        %v366 = vld [vmem:[%s1 + $0x48] sm:$0xf]
        %v367 = vld [vmem:[%s1 + $0x4c] sm:$0xf]
        %v368 = vld [vmem:[%s1 + $0x50] sm:$0xf]
        %v369 = vld [vmem:[%s1 + $0x54] sm:$0xf]
        %v370 = vld [vmem:[%s1 + $0x58] sm:$0xf]
        %v371 = vld [vmem:[%s1 + $0x5c] sm:$0xf]
        %v372 = vld [vmem:[%s1 + $0x60] sm:$0xf]
        %v373 = vld [vmem:[%s1 + $0x64] sm:$0xf]
        %v374 = vld [vmem:[%s1 + $0x68] sm:$0xf]
        %v375 = vld [vmem:[%s1 + $0x6c] sm:$0xf]
        %v376 = vld [vmem:[%s1 + $0x70] sm:$0xf]
        %v377 = vld [vmem:[%s1 + $0x74] sm:$0xf]
        %v378 = vld [vmem:[%s1 + $0x78] sm:$0xf]
        %v379 = vld [vmem:[%s1 + $0x7c] sm:$0xf]
        %v380 = vld [vmem:[%s1 + $0x80] sm:$0xf]
        %v381 = vld [vmem:[%s1 + $0x84] sm:$0xf]
        %v382 = vld [vmem:[%s1 + $0x88] sm:$0xf]
        %v383 = vld [vmem:[%s1 + $0x8c] sm:$0xf]
        %v384 = vld [vmem:[%s1 + $0x90] sm:$0xf]
        %v385 = vld [vmem:[%s1 + $0x94] sm:$0xf]
        %v386 = vld [vmem:[%s1 + $0x98] sm:$0xf]
        %v387 = vld [vmem:[%s1 + $0x9c] sm:$0xf]
        %v388 = vld [vmem:[%s1 + $0xa0] sm:$0xf]
        %v389 = vld [vmem:[%s1 + $0xa4] sm:$0xf]
        %v390 = vld [vmem:[%s1 + $0xa8] sm:$0xf]
        %v391 = vld [vmem:[%s1 + $0xac] sm:$0xf]
        %v392 = vld [vmem:[%s1 + $0xb0] sm:$0xf]
        %v393 = vld [vmem:[%s1 + $0xb4] sm:$0xf]
        %v394 = vld [vmem:[%s1 + $0xb8] sm:$0xf]
        %v395 = vld [vmem:[%s1 + $0xbc] sm:$0xf]
        %v396 = vld [vmem:[%s1 + $0xc0] sm:$0xf]
        %v397 = vld [vmem:[%s1 + $0xc4] sm:$0xf]
        %v398 = vld [vmem:[%s1 + $0xc8] sm:$0xf]
        %v399 = vld [vmem:[%s1 + $0xcc] sm:$0xf]
        %v400 = vld [vmem:[%s1 + $0xd0] sm:$0xf]
        %v401 = vld [vmem:[%s1 + $0xd4] sm:$0xf]
        %v402 = vld [vmem:[%s1 + $0xd8] sm:$0xf]
        %v403 = vld [vmem:[%s1 + $0xdc] sm:$0xf]
        %v404 = vld [vmem:[%s1 + $0xe0] sm:$0xf]
        %v405 = vld [vmem:[%s1 + $0xe4] sm:$0xf]
        %v406 = vld [vmem:[%s1 + $0xe8] sm:$0xf]
        %v407 = vld [vmem:[%s1 + $0xec] sm:$0xf]
        %v408 = vld [vmem:[%s1 + $0xf0] sm:$0xf]
        %v409 = vld [vmem:[%s1 + $0xf4] sm:$0xf]
        %v410 = vld [vmem:[%s1 + $0xf8] sm:$0xf]
        %v411 = vld [vmem:[%s1 + $0xfc] sm:$0xf]
        %v412 = vld [vmem:[%s2] sm:$0x1]
        %v413 = vld [vmem:[%s3] sm:$0x1]
        %v414 = vld [vmem:[%s317] sm:$0xff]
        %v415 = vld [vmem:[%s317 + $0x8] sm:$0xff]
        %v416 = vld [vmem:[%s317 + $0x10] sm:$0xff]
        %v417 = vld [vmem:[%s317 + $0x18] sm:$0xff]
        %v418 = vld [vmem:[%s317 + $0x20] sm:$0xff]
        %v419 = vld [vmem:[%s317 + $0x28] sm:$0xff]
        %v420 = vld [vmem:[%s317 + $0x30] sm:$0xff]
        %v421 = vld [vmem:[%s317 + $0x38] sm:$0xff]
        %v422 = vld [vmem:[%s317 + $0x40] sm:$0xff]
        %v423 = vld [vmem:[%s317 + $0x48] sm:$0xff]
        %v424 = vld [vmem:[%s317 + $0x50] sm:$0xff]
        %v425 = vld [vmem:[%s317 + $0x58] sm:$0xff]
        %v426 = vld [vmem:[%s317 + $0x60] sm:$0xff]
        %v427 = vld [vmem:[%s317 + $0x68] sm:$0xff]
        %v428 = vld [vmem:[%s317 + $0x70] sm:$0xff]
        %v429 = vld [vmem:[%s317 + $0x78] sm:$0xff]
        %v446 = vunpack.c.l.b16 %v414
        %v447 = vunpack.c.h.b16 %v414
        %v448 = vunpack.c.l.b16 %v415
        %v449 = vunpack.c.h.b16 %v415
        %v450 = vunpack.c.l.b16 %v416
        %v451 = vunpack.c.h.b16 %v416
        %v452 = vunpack.c.l.b16 %v417
        %v453 = vunpack.c.h.b16 %v417
        %v454 = vunpack.c.l.b16 %v418
        %v455 = vunpack.c.h.b16 %v418
        %v456 = vunpack.c.l.b16 %v419
        %v457 = vunpack.c.h.b16 %v419
        %v458 = vunpack.c.l.b16 %v420
        %v459 = vunpack.c.h.b16 %v420
        %v460 = vunpack.c.l.b16 %v421
        %v461 = vunpack.c.h.b16 %v421
        %v462 = vunpack.c.l.b16 %v422
        %v463 = vunpack.c.h.b16 %v422
        %v464 = vunpack.c.l.b16 %v423
        %v465 = vunpack.c.h.b16 %v423
        %v466 = vunpack.c.l.b16 %v424
        %v467 = vunpack.c.h.b16 %v424
        %v468 = vunpack.c.l.b16 %v425
        %v469 = vunpack.c.h.b16 %v425
        %v470 = vunpack.c.l.b16 %v426
        %v471 = vunpack.c.h.b16 %v426
        %v472 = vunpack.c.l.b16 %v427
        %v473 = vunpack.c.h.b16 %v427
        %v474 = vunpack.c.l.b16 %v428
        %v475 = vunpack.c.h.b16 %v428
        %v476 = vunpack.c.l.b16 %v429
        %v477 = vunpack.c.h.b16 %v429
        %v478 = vpack.c.b16 %v450, %v446
        %v479 = vpack.c.b16 %v451, %v447
        %v480 = vpack.c.b16 %v452, %v448
        %v481 = vpack.c.b16 %v453, %v449
        %v482 = vpack.c.b16 %v458, %v454
        %v483 = vpack.c.b16 %v459, %v455
        %v484 = vpack.c.b16 %v460, %v456
        %v485 = vpack.c.b16 %v461, %v457
        %v486 = vpack.c.b16 %v466, %v462
        %v487 = vpack.c.b16 %v467, %v463
        %v488 = vpack.c.b16 %v468, %v464
        %v489 = vpack.c.b16 %v469, %v465
        %v490 = vpack.c.b16 %v474, %v470
        %v491 = vpack.c.b16 %v475, %v471
        %v492 = vpack.c.b16 %v476, %v472
        %v493 = vpack.c.b16 %v477, %v473
        %v574 = vunpack.c.l.b16 %v348
        %v575 = vunpack.c.l.b16 %v349
        %v576 = vunpack.c.l.b16 %v350
        %v577 = vunpack.c.l.b16 %v351
        %v578 = vunpack.c.l.b16 %v352
        %v579 = vunpack.c.l.b16 %v353
        %v580 = vunpack.c.l.b16 %v354
        %v581 = vunpack.c.l.b16 %v355
        %v582 = vunpack.c.l.b16 %v356
        %v583 = vunpack.c.l.b16 %v357
        %v584 = vunpack.c.l.b16 %v358
        %v585 = vunpack.c.l.b16 %v359
        %v586 = vunpack.c.l.b16 %v360
        %v587 = vunpack.c.l.b16 %v361
        %v588 = vunpack.c.l.b16 %v362
        %v589 = vunpack.c.l.b16 %v363
        %v590 = vunpack.c.l.b16 %v364
        %v591 = vunpack.c.l.b16 %v365
        %v592 = vunpack.c.l.b16 %v366
        %v593 = vunpack.c.l.b16 %v367
        %v594 = vunpack.c.l.b16 %v368
        %v595 = vunpack.c.l.b16 %v369
        %v596 = vunpack.c.l.b16 %v370
        %v597 = vunpack.c.l.b16 %v371
        %v598 = vunpack.c.l.b16 %v372
        %v599 = vunpack.c.l.b16 %v373
        %v600 = vunpack.c.l.b16 %v374
        %v601 = vunpack.c.l.b16 %v375
        %v602 = vunpack.c.l.b16 %v376
        %v603 = vunpack.c.l.b16 %v377
        %v604 = vunpack.c.l.b16 %v378
        %v605 = vunpack.c.l.b16 %v379
        %v606 = vunpack.c.l.b16 %v380
        %v607 = vunpack.c.l.b16 %v381
        %v608 = vunpack.c.l.b16 %v382
        %v609 = vunpack.c.l.b16 %v383
        %v610 = vunpack.c.l.b16 %v384
        %v611 = vunpack.c.l.b16 %v385
        %v612 = vunpack.c.l.b16 %v386
        %v613 = vunpack.c.l.b16 %v387
        %v614 = vunpack.c.l.b16 %v388
        %v615 = vunpack.c.l.b16 %v389
        %v616 = vunpack.c.l.b16 %v390
        %v617 = vunpack.c.l.b16 %v391
        %v618 = vunpack.c.l.b16 %v392
        %v619 = vunpack.c.l.b16 %v393
        %v620 = vunpack.c.l.b16 %v394
        %v621 = vunpack.c.l.b16 %v395
        %v622 = vunpack.c.l.b16 %v396
        %v623 = vunpack.c.l.b16 %v397
        %v624 = vunpack.c.l.b16 %v398
        %v625 = vunpack.c.l.b16 %v399
        %v626 = vunpack.c.l.b16 %v400
        %v627 = vunpack.c.l.b16 %v401
        %v628 = vunpack.c.l.b16 %v402
        %v629 = vunpack.c.l.b16 %v403
        %v630 = vunpack.c.l.b16 %v404
        %v631 = vunpack.c.l.b16 %v405
        %v632 = vunpack.c.l.b16 %v406
        %v633 = vunpack.c.l.b16 %v407
        %v634 = vunpack.c.l.b16 %v408
        %v635 = vunpack.c.l.b16 %v409
        %v636 = vunpack.c.l.b16 %v410
        %v637 = vunpack.c.l.b16 %v411
        %v638 = vpack.c.b16 %v575, %v574
        %v639 = vpack.c.b16 %v577, %v576
        %v640 = vpack.c.b16 %v579, %v578
        %v641 = vpack.c.b16 %v581, %v580
        %v642 = vpack.c.b16 %v583, %v582
        %v643 = vpack.c.b16 %v585, %v584
        %v644 = vpack.c.b16 %v587, %v586
        %v645 = vpack.c.b16 %v589, %v588
        %v646 = vpack.c.b16 %v591, %v590
        %v647 = vpack.c.b16 %v593, %v592
        %v648 = vpack.c.b16 %v595, %v594
        %v649 = vpack.c.b16 %v597, %v596
        %v650 = vpack.c.b16 %v599, %v598
        %v651 = vpack.c.b16 %v601, %v600
        %v652 = vpack.c.b16 %v603, %v602
        %v653 = vpack.c.b16 %v605, %v604
        %v654 = vpack.c.b16 %v607, %v606
        %v655 = vpack.c.b16 %v609, %v608
        %v656 = vpack.c.b16 %v611, %v610
        %v657 = vpack.c.b16 %v613, %v612
        %v658 = vpack.c.b16 %v615, %v614
        %v659 = vpack.c.b16 %v617, %v616
        %v660 = vpack.c.b16 %v619, %v618
        %v661 = vpack.c.b16 %v621, %v620
        %v662 = vpack.c.b16 %v623, %v622
        %v663 = vpack.c.b16 %v625, %v624
        %v664 = vpack.c.b16 %v627, %v626
        %v665 = vpack.c.b16 %v629, %v628
        %v666 = vpack.c.b16 %v631, %v630
        %v667 = vpack.c.b16 %v633, %v632
        %v668 = vpack.c.b16 %v635, %v634
        %v669 = vpack.c.b16 %v637, %v636
        %702 = vmatprep.subr.bf16.mxu0 0
        %703 = vmatpush1.bf16.msra.mxu0 %v645
        %704 = vmatprep.subr.bf16.mxu0 0
        %705 = vmatpush1.bf16.msra.mxu0 %v644
        %706 = vmatprep.subr.bf16.mxu0 0
        %707 = vmatpush1.bf16.msra.mxu0 %v643
        %708 = vmatprep.subr.bf16.mxu0 0
        %709 = vmatpush1.bf16.msra.mxu0 %v642
        %710 = vmatprep.subr.bf16.mxu0 0
        %711 = vmatpush1.bf16.msra.mxu0 %v641
        %712 = vmatprep.subr.bf16.mxu0 0
        %713 = vmatpush1.bf16.msra.mxu0 %v640
        %714 = vmatprep.subr.bf16.mxu0 0
        %715 = vmatpush1.bf16.msra.mxu0 %v639
        %716 = vmatprep.subr.bf16.mxu0 0
        %717 = vmatpush1.bf16.msra.mxu0 %v638
        %718 = vmatprep.subr.bf16.mxu0 0
        %719 = vmatpush2.bf16.msra.mxu0 %v653
        %720 = vmatprep.subr.bf16.mxu0 0
        %721 = vmatpush2.bf16.msra.mxu0 %v652
        %722 = vmatprep.subr.bf16.mxu0 0
        %723 = vmatpush2.bf16.msra.mxu0 %v651
        %724 = vmatprep.subr.bf16.mxu0 0
        %725 = vmatpush2.bf16.msra.mxu0 %v650
        %726 = vmatprep.subr.bf16.mxu0 0
        %727 = vmatpush2.bf16.msra.mxu0 %v649
        %728 = vmatprep.subr.bf16.mxu0 0
        %729 = vmatpush2.bf16.msra.mxu0 %v648
        %730 = vmatprep.subr.bf16.mxu0 0
        %731 = vmatpush2.bf16.msra.mxu0 %v647
        %732 = vmatprep.subr.bf16.mxu0 0
        %733 = vmatpush2.bf16.msra.mxu0 %v646
        %734 = vmatprep.mubr.bf16.mxu0 %v479
        %735 = vmatmul.mubr.bf16.gmra.mxu0 %v478
        %v736 = vpop.f32.mrf.mxu0
        %v737 = vadd.f32 0.0, %v736
        %v738 = vpop.f32.mrf.mxu0
        %v739 = vpop.f32.mrf.mxu0
        %v740 = vadd.f32 0.0, %v739
        %v741 = vpop.f32.mrf.mxu0
        %742 = vmatprep.mubr.bf16.mxu0 %v483
        %743 = vmatmul.mubr.bf16.gmra.mxu0 %v482
        %v744 = vpop.f32.mrf.mxu0
        %v745 = vadd.f32 0.0, %v744
        %v746 = vpop.f32.mrf.mxu0
        %v747 = vpop.f32.mrf.mxu0
        %v748 = vadd.f32 0.0, %v747
        %v749 = vpop.f32.mrf.mxu0
        %750 = vmatprep.mubr.bf16.mxu0 %v487
        %751 = vmatmul.mubr.bf16.gmra.mxu0 %v486
        %v752 = vpop.f32.mrf.mxu0
        %v753 = vadd.f32 0.0, %v752
        %v754 = vpop.f32.mrf.mxu0
        %v755 = vpop.f32.mrf.mxu0
        %v756 = vadd.f32 0.0, %v755
        %v757 = vpop.f32.mrf.mxu0
        %758 = vmatprep.mubr.bf16.mxu0 %v491
        %759 = vmatmul.mubr.bf16.gmra.mxu0 %v490
        %v760 = vpop.f32.mrf.mxu0
        %v761 = vadd.f32 0.0, %v760
        %v762 = vpop.f32.mrf.mxu0
        %v763 = vpop.f32.mrf.mxu0
        %v764 = vadd.f32 0.0, %v763
        %v765 = vpop.f32.mrf.mxu0
        %766 = vdwg.mxu0
        %767 = vmatprep.subr.bf16.mxu0 0
        %768 = vmatpush1.bf16.msra.mxu0 %v661
        %769 = vmatprep.subr.bf16.mxu0 0
        %770 = vmatpush1.bf16.msra.mxu0 %v660
        %771 = vmatprep.subr.bf16.mxu0 0
        %772 = vmatpush1.bf16.msra.mxu0 %v659
        %773 = vmatprep.subr.bf16.mxu0 0
        %774 = vmatpush1.bf16.msra.mxu0 %v658
        %775 = vmatprep.subr.bf16.mxu0 0
        %776 = vmatpush1.bf16.msra.mxu0 %v657
        %777 = vmatprep.subr.bf16.mxu0 0
        %778 = vmatpush1.bf16.msra.mxu0 %v656
        %779 = vmatprep.subr.bf16.mxu0 0
        %780 = vmatpush1.bf16.msra.mxu0 %v655
        %781 = vmatprep.subr.bf16.mxu0 0
        %782 = vmatpush1.bf16.msra.mxu0 %v654
        %783 = vmatprep.subr.bf16.mxu0 0
        %784 = vmatpush2.bf16.msra.mxu0 %v669
        %785 = vmatprep.subr.bf16.mxu0 0
        %786 = vmatpush2.bf16.msra.mxu0 %v668
        %787 = vmatprep.subr.bf16.mxu0 0
        %788 = vmatpush2.bf16.msra.mxu0 %v667
        %789 = vmatprep.subr.bf16.mxu0 0
        %790 = vmatpush2.bf16.msra.mxu0 %v666
        %791 = vmatprep.subr.bf16.mxu0 0
        %792 = vmatpush2.bf16.msra.mxu0 %v665
        %793 = vmatprep.subr.bf16.mxu0 0
        %794 = vmatpush2.bf16.msra.mxu0 %v664
        %795 = vmatprep.subr.bf16.mxu0 0
        %796 = vmatpush2.bf16.msra.mxu0 %v663
        %797 = vmatprep.subr.bf16.mxu0 0
        %798 = vmatpush2.bf16.msra.mxu0 %v662
        %799 = vmatprep.mubr.bf16.mxu0 %v481
        %800 = vmatmul.mubr.bf16.gmra.mxu0 %v480
        %v801 = vpop.f32.mrf.mxu0
        %v802 = vadd.f32 %v737, %v801
        %v803 = vpop.f32.mrf.mxu0
        %v804 = vpop.f32.mrf.mxu0
        %v805 = vadd.f32 %v740, %v804
        %v806 = vpop.f32.mrf.mxu0
        %807 = vmatprep.mubr.bf16.mxu0 %v485
        %808 = vmatmul.mubr.bf16.gmra.mxu0 %v484
        %v809 = vpop.f32.mrf.mxu0
        %v810 = vadd.f32 %v745, %v809
        %v811 = vpop.f32.mrf.mxu0
        %v812 = vpop.f32.mrf.mxu0
        %v813 = vadd.f32 %v748, %v812
        %v814 = vpop.f32.mrf.mxu0
        %815 = vmatprep.mubr.bf16.mxu0 %v489
        %816 = vmatmul.mubr.bf16.gmra.mxu0 %v488
        %v817 = vpop.f32.mrf.mxu0
        %v818 = vadd.f32 %v753, %v817
        %v819 = vpop.f32.mrf.mxu0
        %v820 = vpop.f32.mrf.mxu0
        %v821 = vadd.f32 %v756, %v820
        %v822 = vpop.f32.mrf.mxu0
        %823 = vmatprep.mubr.bf16.mxu0 %v493
        %824 = vmatmul.mubr.bf16.gmra.mxu0 %v492
        %v825 = vpop.f32.mrf.mxu0
        %v826 = vadd.f32 %v761, %v825
        %v827 = vpop.f32.mrf.mxu0
        %v828 = vpop.f32.mrf.mxu0
        %v829 = vadd.f32 %v764, %v828
        %v830 = vpop.f32.mrf.mxu0
        %831 = vdwg.mxu0
        %v833 = vlaneseq
        %v834 = vshrl.u32 %v833, 7
        %v835 = vsub.s32 0, %v834
        %v836 = vrot.slane %v412, %v835
        %v838 = vmul.f32 %v802, %v836
        %v839 = vmul.f32 %v805, %v836
        %v840 = vmul.f32 %v810, %v836
        %v841 = vmul.f32 %v813, %v836
        %v842 = vmul.f32 %v818, %v836
        %v843 = vmul.f32 %v821, %v836
        %v844 = vmul.f32 %v826, %v836
        %v845 = vmul.f32 %v829, %v836
        %v847 = vlaneseq
        %v848 = vshrl.u32 %v847, 7
        %v849 = vsub.s32 0, %v848
        %v850 = vrot.slane %v413, %v849
        %v852 = vadd.f32 %v838, %v850
        %v853 = vadd.f32 %v839, %v850
        %v854 = vadd.f32 %v840, %v850
        %v855 = vadd.f32 %v841, %v850
        %v856 = vadd.f32 %v842, %v850
        %v857 = vadd.f32 %v843, %v850
        %v858 = vadd.f32 %v844, %v850
        %v859 = vadd.f32 %v845, %v850
        %v860 = vmax.f32 %v852, 0.0
        %v861 = vmax.f32 %v853, 0.0
        %v862 = vmax.f32 %v854, 0.0
        %v863 = vmax.f32 %v855, 0.0
        %v864 = vmax.f32 %v856, 0.0
        %v865 = vmax.f32 %v857, 0.0
        %v866 = vmax.f32 %v858, 0.0
        %v867 = vmax.f32 %v859, 0.0
        %s868 = scalar_lea.vmem %s317, 128 [#allocation2]
        %v869 = vld [vmem:[%s868] sm:$0xff]
        %v870 = vld [vmem:[%s868 + $0x8] sm:$0xff]
        %v871 = vld [vmem:[%s868 + $0x10] sm:$0xff]
        %v872 = vld [vmem:[%s868 + $0x18] sm:$0xff]
        %v873 = vld [vmem:[%s868 + $0x20] sm:$0xff]
        %v874 = vld [vmem:[%s868 + $0x28] sm:$0xff]
        %v875 = vld [vmem:[%s868 + $0x30] sm:$0xff]
        %v876 = vld [vmem:[%s868 + $0x38] sm:$0xff]
        %v877 = vld [vmem:[%s868 + $0x40] sm:$0xff]
        %v878 = vld [vmem:[%s868 + $0x48] sm:$0xff]
        %v879 = vld [vmem:[%s868 + $0x50] sm:$0xff]
        %v880 = vld [vmem:[%s868 + $0x58] sm:$0xff]
        %v881 = vld [vmem:[%s868 + $0x60] sm:$0xff]
        %v882 = vld [vmem:[%s868 + $0x68] sm:$0xff]
        %v883 = vld [vmem:[%s868 + $0x70] sm:$0xff]
        %v884 = vld [vmem:[%s868 + $0x78] sm:$0xff]
        %v901 = vunpack.c.l.b16 %v869
        %v902 = vunpack.c.h.b16 %v869
        %v903 = vunpack.c.l.b16 %v870
        %v904 = vunpack.c.h.b16 %v870
        %v905 = vunpack.c.l.b16 %v871
        %v906 = vunpack.c.h.b16 %v871
        %v907 = vunpack.c.l.b16 %v872
        %v908 = vunpack.c.h.b16 %v872
        %v909 = vunpack.c.l.b16 %v873
        %v910 = vunpack.c.h.b16 %v873
        %v911 = vunpack.c.l.b16 %v874
        %v912 = vunpack.c.h.b16 %v874
        %v913 = vunpack.c.l.b16 %v875
        %v914 = vunpack.c.h.b16 %v875
        %v915 = vunpack.c.l.b16 %v876
        %v916 = vunpack.c.h.b16 %v876
        %v917 = vunpack.c.l.b16 %v877
        %v918 = vunpack.c.h.b16 %v877
        %v919 = vunpack.c.l.b16 %v878
        %v920 = vunpack.c.h.b16 %v878
        %v921 = vunpack.c.l.b16 %v879
        %v922 = vunpack.c.h.b16 %v879
        %v923 = vunpack.c.l.b16 %v880
        %v924 = vunpack.c.h.b16 %v880
        %v925 = vunpack.c.l.b16 %v881
        %v926 = vunpack.c.h.b16 %v881
        %v927 = vunpack.c.l.b16 %v882
        %v928 = vunpack.c.h.b16 %v882
        %v929 = vunpack.c.l.b16 %v883
        %v930 = vunpack.c.h.b16 %v883
        %v931 = vunpack.c.l.b16 %v884
        %v932 = vunpack.c.h.b16 %v884
        %v933 = vpack.c.b16 %v905, %v901
        %v934 = vpack.c.b16 %v906, %v902
        %v935 = vpack.c.b16 %v907, %v903
        %v936 = vpack.c.b16 %v908, %v904
        %v937 = vpack.c.b16 %v913, %v909
        %v938 = vpack.c.b16 %v914, %v910
        %v939 = vpack.c.b16 %v915, %v911
        %v940 = vpack.c.b16 %v916, %v912
        %v941 = vpack.c.b16 %v921, %v917
        %v942 = vpack.c.b16 %v922, %v918
        %v943 = vpack.c.b16 %v923, %v919
        %v944 = vpack.c.b16 %v924, %v920
        %v945 = vpack.c.b16 %v929, %v925
        %v946 = vpack.c.b16 %v930, %v926
        %v947 = vpack.c.b16 %v931, %v927
        %v948 = vpack.c.b16 %v932, %v928
        %965 = vmatprep.subr.bf16.mxu0 0
        %966 = vmatpush1.bf16.msra.mxu0 %v645
        %967 = vmatprep.subr.bf16.mxu0 0
        %968 = vmatpush1.bf16.msra.mxu0 %v644
        %969 = vmatprep.subr.bf16.mxu0 0
        %970 = vmatpush1.bf16.msra.mxu0 %v643
        %971 = vmatprep.subr.bf16.mxu0 0
        %972 = vmatpush1.bf16.msra.mxu0 %v642
        %973 = vmatprep.subr.bf16.mxu0 0
        %974 = vmatpush1.bf16.msra.mxu0 %v641
        %975 = vmatprep.subr.bf16.mxu0 0
        %976 = vmatpush1.bf16.msra.mxu0 %v640
        %977 = vmatprep.subr.bf16.mxu0 0
        %978 = vmatpush1.bf16.msra.mxu0 %v639
        %979 = vmatprep.subr.bf16.mxu0 0
        %980 = vmatpush1.bf16.msra.mxu0 %v638
        %981 = vmatprep.subr.bf16.mxu0 0
        %982 = vmatpush2.bf16.msra.mxu0 %v653
        %983 = vmatprep.subr.bf16.mxu0 0
        %984 = vmatpush2.bf16.msra.mxu0 %v652
        %985 = vmatprep.subr.bf16.mxu0 0
        %986 = vmatpush2.bf16.msra.mxu0 %v651
        %987 = vmatprep.subr.bf16.mxu0 0
        %988 = vmatpush2.bf16.msra.mxu0 %v650
        %989 = vmatprep.subr.bf16.mxu0 0
        %990 = vmatpush2.bf16.msra.mxu0 %v649
        %991 = vmatprep.subr.bf16.mxu0 0
        %992 = vmatpush2.bf16.msra.mxu0 %v648
        %993 = vmatprep.subr.bf16.mxu0 0
        %994 = vmatpush2.bf16.msra.mxu0 %v647
        %995 = vmatprep.subr.bf16.mxu0 0
        %996 = vmatpush2.bf16.msra.mxu0 %v646
        %997 = vmatprep.mubr.bf16.mxu0 %v934
        %998 = vmatmul.mubr.bf16.gmra.mxu0 %v933
        %v999 = vpop.f32.mrf.mxu0
        %v1000 = vadd.f32 0.0, %v999
        %v1001 = vpop.f32.mrf.mxu0
        %v1002 = vpop.f32.mrf.mxu0
        %v1003 = vadd.f32 0.0, %v1002
        %v1004 = vpop.f32.mrf.mxu0
        %1005 = vmatprep.mubr.bf16.mxu0 %v938
        %1006 = vmatmul.mubr.bf16.gmra.mxu0 %v937
        %v1007 = vpop.f32.mrf.mxu0
        %v1008 = vadd.f32 0.0, %v1007
        %v1009 = vpop.f32.mrf.mxu0
        %v1010 = vpop.f32.mrf.mxu0
        %v1011 = vadd.f32 0.0, %v1010
        %v1012 = vpop.f32.mrf.mxu0
        %1013 = vmatprep.mubr.bf16.mxu0 %v942
        %1014 = vmatmul.mubr.bf16.gmra.mxu0 %v941
        %v1015 = vpop.f32.mrf.mxu0
        %v1016 = vadd.f32 0.0, %v1015
        %v1017 = vpop.f32.mrf.mxu0
        %v1018 = vpop.f32.mrf.mxu0
        %v1019 = vadd.f32 0.0, %v1018
        %v1020 = vpop.f32.mrf.mxu0
        %1021 = vmatprep.mubr.bf16.mxu0 %v946
        %1022 = vmatmul.mubr.bf16.gmra.mxu0 %v945
        %v1023 = vpop.f32.mrf.mxu0
        %v1024 = vadd.f32 0.0, %v1023
        %v1025 = vpop.f32.mrf.mxu0
        %v1026 = vpop.f32.mrf.mxu0
        %v1027 = vadd.f32 0.0, %v1026
        %v1028 = vpop.f32.mrf.mxu0
        %1029 = vdwg.mxu0
        %1030 = vmatprep.subr.bf16.mxu0 0
        %1031 = vmatpush1.bf16.msra.mxu0 %v661
        %1032 = vmatprep.subr.bf16.mxu0 0
        %1033 = vmatpush1.bf16.msra.mxu0 %v660
        %1034 = vmatprep.subr.bf16.mxu0 0
        %1035 = vmatpush1.bf16.msra.mxu0 %v659
        %1036 = vmatprep.subr.bf16.mxu0 0
        %1037 = vmatpush1.bf16.msra.mxu0 %v658
        %1038 = vmatprep.subr.bf16.mxu0 0
        %1039 = vmatpush1.bf16.msra.mxu0 %v657
        %1040 = vmatprep.subr.bf16.mxu0 0
        %1041 = vmatpush1.bf16.msra.mxu0 %v656
        %1042 = vmatprep.subr.bf16.mxu0 0
        %1043 = vmatpush1.bf16.msra.mxu0 %v655
        %1044 = vmatprep.subr.bf16.mxu0 0
        %1045 = vmatpush1.bf16.msra.mxu0 %v654
        %1046 = vmatprep.subr.bf16.mxu0 0
        %1047 = vmatpush2.bf16.msra.mxu0 %v669
        %1048 = vmatprep.subr.bf16.mxu0 0
        %1049 = vmatpush2.bf16.msra.mxu0 %v668
        %1050 = vmatprep.subr.bf16.mxu0 0
        %1051 = vmatpush2.bf16.msra.mxu0 %v667
        %1052 = vmatprep.subr.bf16.mxu0 0
        %1053 = vmatpush2.bf16.msra.mxu0 %v666
        %1054 = vmatprep.subr.bf16.mxu0 0
        %1055 = vmatpush2.bf16.msra.mxu0 %v665
        %1056 = vmatprep.subr.bf16.mxu0 0
        %1057 = vmatpush2.bf16.msra.mxu0 %v664
        %1058 = vmatprep.subr.bf16.mxu0 0
        %1059 = vmatpush2.bf16.msra.mxu0 %v663
        %1060 = vmatprep.subr.bf16.mxu0 0
        %1061 = vmatpush2.bf16.msra.mxu0 %v662
        %1062 = vmatprep.mubr.bf16.mxu0 %v936
        %1063 = vmatmul.mubr.bf16.gmra.mxu0 %v935
        %v1064 = vpop.f32.mrf.mxu0
        %v1065 = vadd.f32 %v1000, %v1064
        %v1066 = vpop.f32.mrf.mxu0
        %v1067 = vpop.f32.mrf.mxu0
        %v1068 = vadd.f32 %v1003, %v1067
        %v1069 = vpop.f32.mrf.mxu0
        %1070 = vmatprep.mubr.bf16.mxu0 %v940
        %1071 = vmatmul.mubr.bf16.gmra.mxu0 %v939
        %v1072 = vpop.f32.mrf.mxu0
        %v1073 = vadd.f32 %v1008, %v1072
        %v1074 = vpop.f32.mrf.mxu0
        %v1075 = vpop.f32.mrf.mxu0
        %v1076 = vadd.f32 %v1011, %v1075
        %v1077 = vpop.f32.mrf.mxu0
        %1078 = vmatprep.mubr.bf16.mxu0 %v944
        %1079 = vmatmul.mubr.bf16.gmra.mxu0 %v943
        %v1080 = vpop.f32.mrf.mxu0
        %v1081 = vadd.f32 %v1016, %v1080
        %v1082 = vpop.f32.mrf.mxu0
        %v1083 = vpop.f32.mrf.mxu0
        %v1084 = vadd.f32 %v1019, %v1083
        %v1085 = vpop.f32.mrf.mxu0
        %1086 = vmatprep.mubr.bf16.mxu0 %v948
        %1087 = vmatmul.mubr.bf16.gmra.mxu0 %v947
        %v1088 = vpop.f32.mrf.mxu0
        %v1089 = vadd.f32 %v1024, %v1088
        %v1090 = vpop.f32.mrf.mxu0
        %v1091 = vpop.f32.mrf.mxu0
        %v1092 = vadd.f32 %v1027, %v1091
        %v1093 = vpop.f32.mrf.mxu0
        %1094 = vdwg.mxu0
        %v1095 = vmul.f32 %v1065, %v836
        %v1096 = vmul.f32 %v1068, %v836
        %v1097 = vmul.f32 %v1073, %v836
        %v1098 = vmul.f32 %v1076, %v836
        %v1099 = vmul.f32 %v1081, %v836
        %v1100 = vmul.f32 %v1084, %v836
        %v1101 = vmul.f32 %v1089, %v836
        %v1102 = vmul.f32 %v1092, %v836
        %v1103 = vadd.f32 %v1095, %v850
        %v1104 = vadd.f32 %v1096, %v850
        %v1105 = vadd.f32 %v1097, %v850
        %v1106 = vadd.f32 %v1098, %v850
        %v1107 = vadd.f32 %v1099, %v850
        %v1108 = vadd.f32 %v1100, %v850
        %v1109 = vadd.f32 %v1101, %v850
        %v1110 = vadd.f32 %v1102, %v850
        %v1111 = vmax.f32 %v1103, 0.0
        %v1112 = vmax.f32 %v1104, 0.0
        %v1113 = vmax.f32 %v1105, 0.0
        %v1114 = vmax.f32 %v1106, 0.0
        %v1115 = vmax.f32 %v1107, 0.0
        %v1116 = vmax.f32 %v1108, 0.0
        %v1117 = vmax.f32 %v1109, 0.0
        %v1118 = vmax.f32 %v1110, 0.0
        %v1119 = vmax.f32 %v860, %v1111
        %v1120 = vmax.f32 %v861, %v1112
        %v1121 = vmax.f32 %v862, %v1113
        %v1122 = vmax.f32 %v863, %v1114
        %v1123 = vmax.f32 %v864, %v1115
        %v1124 = vmax.f32 %v865, %v1116
        %v1125 = vmax.f32 %v866, %v1117
        %v1126 = vmax.f32 %v867, %v1118
        %s1127 = scalar_lea.vmem %s317, 256 [#allocation2]
        %v1128 = vld [vmem:[%s1127] sm:$0xff]
        %v1129 = vld [vmem:[%s1127 + $0x8] sm:$0xff]
        %v1130 = vld [vmem:[%s1127 + $0x10] sm:$0xff]
        %v1131 = vld [vmem:[%s1127 + $0x18] sm:$0xff]
        %v1132 = vld [vmem:[%s1127 + $0x20] sm:$0xff]
        %v1133 = vld [vmem:[%s1127 + $0x28] sm:$0xff]
        %v1134 = vld [vmem:[%s1127 + $0x30] sm:$0xff]
        %v1135 = vld [vmem:[%s1127 + $0x38] sm:$0xff]
        %v1136 = vld [vmem:[%s1127 + $0x40] sm:$0xff]
        %v1137 = vld [vmem:[%s1127 + $0x48] sm:$0xff]
        %v1138 = vld [vmem:[%s1127 + $0x50] sm:$0xff]
        %v1139 = vld [vmem:[%s1127 + $0x58] sm:$0xff]
        %v1140 = vld [vmem:[%s1127 + $0x60] sm:$0xff]
        %v1141 = vld [vmem:[%s1127 + $0x68] sm:$0xff]
        %v1142 = vld [vmem:[%s1127 + $0x70] sm:$0xff]
        %v1143 = vld [vmem:[%s1127 + $0x78] sm:$0xff]
        %v1160 = vunpack.c.l.b16 %v1128
        %v1161 = vunpack.c.h.b16 %v1128
        %v1162 = vunpack.c.l.b16 %v1129
        %v1163 = vunpack.c.h.b16 %v1129
        %v1164 = vunpack.c.l.b16 %v1130
        %v1165 = vunpack.c.h.b16 %v1130
        %v1166 = vunpack.c.l.b16 %v1131
        %v1167 = vunpack.c.h.b16 %v1131
        %v1168 = vunpack.c.l.b16 %v1132
        %v1169 = vunpack.c.h.b16 %v1132
        %v1170 = vunpack.c.l.b16 %v1133
        %v1171 = vunpack.c.h.b16 %v1133
        %v1172 = vunpack.c.l.b16 %v1134
        %v1173 = vunpack.c.h.b16 %v1134
        %v1174 = vunpack.c.l.b16 %v1135
        %v1175 = vunpack.c.h.b16 %v1135
        %v1176 = vunpack.c.l.b16 %v1136
        %v1177 = vunpack.c.h.b16 %v1136
        %v1178 = vunpack.c.l.b16 %v1137
        %v1179 = vunpack.c.h.b16 %v1137
        %v1180 = vunpack.c.l.b16 %v1138
        %v1181 = vunpack.c.h.b16 %v1138
        %v1182 = vunpack.c.l.b16 %v1139
        %v1183 = vunpack.c.h.b16 %v1139
        %v1184 = vunpack.c.l.b16 %v1140
        %v1185 = vunpack.c.h.b16 %v1140
        %v1186 = vunpack.c.l.b16 %v1141
        %v1187 = vunpack.c.h.b16 %v1141
        %v1188 = vunpack.c.l.b16 %v1142
        %v1189 = vunpack.c.h.b16 %v1142
        %v1190 = vunpack.c.l.b16 %v1143
        %v1191 = vunpack.c.h.b16 %v1143
        %v1192 = vpack.c.b16 %v1164, %v1160
        %v1193 = vpack.c.b16 %v1165, %v1161
        %v1194 = vpack.c.b16 %v1166, %v1162
        %v1195 = vpack.c.b16 %v1167, %v1163
        %v1196 = vpack.c.b16 %v1172, %v1168
        %v1197 = vpack.c.b16 %v1173, %v1169
        %v1198 = vpack.c.b16 %v1174, %v1170
        %v1199 = vpack.c.b16 %v1175, %v1171
        %v1200 = vpack.c.b16 %v1180, %v1176
        %v1201 = vpack.c.b16 %v1181, %v1177
        %v1202 = vpack.c.b16 %v1182, %v1178
        %v1203 = vpack.c.b16 %v1183, %v1179
        %v1204 = vpack.c.b16 %v1188, %v1184
        %v1205 = vpack.c.b16 %v1189, %v1185
        %v1206 = vpack.c.b16 %v1190, %v1186
        %v1207 = vpack.c.b16 %v1191, %v1187
        %1224 = vmatprep.subr.bf16.mxu0 0
        %1225 = vmatpush1.bf16.msra.mxu0 %v645
        %1226 = vmatprep.subr.bf16.mxu0 0
        %1227 = vmatpush1.bf16.msra.mxu0 %v644
        %1228 = vmatprep.subr.bf16.mxu0 0
        %1229 = vmatpush1.bf16.msra.mxu0 %v643
        %1230 = vmatprep.subr.bf16.mxu0 0
        %1231 = vmatpush1.bf16.msra.mxu0 %v642
        %1232 = vmatprep.subr.bf16.mxu0 0
        %1233 = vmatpush1.bf16.msra.mxu0 %v641
        %1234 = vmatprep.subr.bf16.mxu0 0
        %1235 = vmatpush1.bf16.msra.mxu0 %v640
        %1236 = vmatprep.subr.bf16.mxu0 0
        %1237 = vmatpush1.bf16.msra.mxu0 %v639
        %1238 = vmatprep.subr.bf16.mxu0 0
        %1239 = vmatpush1.bf16.msra.mxu0 %v638
        %1240 = vmatprep.subr.bf16.mxu0 0
        %1241 = vmatpush2.bf16.msra.mxu0 %v653
        %1242 = vmatprep.subr.bf16.mxu0 0
        %1243 = vmatpush2.bf16.msra.mxu0 %v652
        %1244 = vmatprep.subr.bf16.mxu0 0
        %1245 = vmatpush2.bf16.msra.mxu0 %v651
        %1246 = vmatprep.subr.bf16.mxu0 0
        %1247 = vmatpush2.bf16.msra.mxu0 %v650
        %1248 = vmatprep.subr.bf16.mxu0 0
        %1249 = vmatpush2.bf16.msra.mxu0 %v649
        %1250 = vmatprep.subr.bf16.mxu0 0
        %1251 = vmatpush2.bf16.msra.mxu0 %v648
        %1252 = vmatprep.subr.bf16.mxu0 0
        %1253 = vmatpush2.bf16.msra.mxu0 %v647
        %1254 = vmatprep.subr.bf16.mxu0 0
        %1255 = vmatpush2.bf16.msra.mxu0 %v646
        %1256 = vmatprep.mubr.bf16.mxu0 %v1193
        %1257 = vmatmul.mubr.bf16.gmra.mxu0 %v1192
        %v1258 = vpop.f32.mrf.mxu0
        %v1259 = vadd.f32 0.0, %v1258
        %v1260 = vpop.f32.mrf.mxu0
        %v1261 = vpop.f32.mrf.mxu0
        %v1262 = vadd.f32 0.0, %v1261
        %v1263 = vpop.f32.mrf.mxu0
        %1264 = vmatprep.mubr.bf16.mxu0 %v1197
        %1265 = vmatmul.mubr.bf16.gmra.mxu0 %v1196
        %v1266 = vpop.f32.mrf.mxu0
        %v1267 = vadd.f32 0.0, %v1266
        %v1268 = vpop.f32.mrf.mxu0
        %v1269 = vpop.f32.mrf.mxu0
        %v1270 = vadd.f32 0.0, %v1269
        %v1271 = vpop.f32.mrf.mxu0
        %1272 = vmatprep.mubr.bf16.mxu0 %v1201
        %1273 = vmatmul.mubr.bf16.gmra.mxu0 %v1200
        %v1274 = vpop.f32.mrf.mxu0
        %v1275 = vadd.f32 0.0, %v1274
        %v1276 = vpop.f32.mrf.mxu0
        %v1277 = vpop.f32.mrf.mxu0
        %v1278 = vadd.f32 0.0, %v1277
        %v1279 = vpop.f32.mrf.mxu0
        %1280 = vmatprep.mubr.bf16.mxu0 %v1205
        %1281 = vmatmul.mubr.bf16.gmra.mxu0 %v1204
        %v1282 = vpop.f32.mrf.mxu0
        %v1283 = vadd.f32 0.0, %v1282
        %v1284 = vpop.f32.mrf.mxu0
        %v1285 = vpop.f32.mrf.mxu0
        %v1286 = vadd.f32 0.0, %v1285
        %v1287 = vpop.f32.mrf.mxu0
        %1288 = vdwg.mxu0
        %1289 = vmatprep.subr.bf16.mxu0 0
        %1290 = vmatpush1.bf16.msra.mxu0 %v661
        %1291 = vmatprep.subr.bf16.mxu0 0
        %1292 = vmatpush1.bf16.msra.mxu0 %v660
        %1293 = vmatprep.subr.bf16.mxu0 0
        %1294 = vmatpush1.bf16.msra.mxu0 %v659
        %1295 = vmatprep.subr.bf16.mxu0 0
        %1296 = vmatpush1.bf16.msra.mxu0 %v658
        %1297 = vmatprep.subr.bf16.mxu0 0
        %1298 = vmatpush1.bf16.msra.mxu0 %v657
        %1299 = vmatprep.subr.bf16.mxu0 0
        %1300 = vmatpush1.bf16.msra.mxu0 %v656
        %1301 = vmatprep.subr.bf16.mxu0 0
        %1302 = vmatpush1.bf16.msra.mxu0 %v655
        %1303 = vmatprep.subr.bf16.mxu0 0
        %1304 = vmatpush1.bf16.msra.mxu0 %v654
        %1305 = vmatprep.subr.bf16.mxu0 0
        %1306 = vmatpush2.bf16.msra.mxu0 %v669
        %1307 = vmatprep.subr.bf16.mxu0 0
        %1308 = vmatpush2.bf16.msra.mxu0 %v668
        %1309 = vmatprep.subr.bf16.mxu0 0
        %1310 = vmatpush2.bf16.msra.mxu0 %v667
        %1311 = vmatprep.subr.bf16.mxu0 0
        %1312 = vmatpush2.bf16.msra.mxu0 %v666
        %1313 = vmatprep.subr.bf16.mxu0 0
        %1314 = vmatpush2.bf16.msra.mxu0 %v665
        %1315 = vmatprep.subr.bf16.mxu0 0
        %1316 = vmatpush2.bf16.msra.mxu0 %v664
        %1317 = vmatprep.subr.bf16.mxu0 0
        %1318 = vmatpush2.bf16.msra.mxu0 %v663
        %1319 = vmatprep.subr.bf16.mxu0 0
        %1320 = vmatpush2.bf16.msra.mxu0 %v662
        %1321 = vmatprep.mubr.bf16.mxu0 %v1195
        %1322 = vmatmul.mubr.bf16.gmra.mxu0 %v1194
        %v1323 = vpop.f32.mrf.mxu0
        %v1324 = vadd.f32 %v1259, %v1323
        %v1325 = vpop.f32.mrf.mxu0
        %v1326 = vpop.f32.mrf.mxu0
        %v1327 = vadd.f32 %v1262, %v1326
        %v1328 = vpop.f32.mrf.mxu0
        %1329 = vmatprep.mubr.bf16.mxu0 %v1199
        %1330 = vmatmul.mubr.bf16.gmra.mxu0 %v1198
        %v1331 = vpop.f32.mrf.mxu0
        %v1332 = vadd.f32 %v1267, %v1331
        %v1333 = vpop.f32.mrf.mxu0
        %v1334 = vpop.f32.mrf.mxu0
        %v1335 = vadd.f32 %v1270, %v1334
        %v1336 = vpop.f32.mrf.mxu0
        %1337 = vmatprep.mubr.bf16.mxu0 %v1203
        %1338 = vmatmul.mubr.bf16.gmra.mxu0 %v1202
        %v1339 = vpop.f32.mrf.mxu0
        %v1340 = vadd.f32 %v1275, %v1339
        %v1341 = vpop.f32.mrf.mxu0
        %v1342 = vpop.f32.mrf.mxu0
        %v1343 = vadd.f32 %v1278, %v1342
        %v1344 = vpop.f32.mrf.mxu0
        %1345 = vmatprep.mubr.bf16.mxu0 %v1207
        %1346 = vmatmul.mubr.bf16.gmra.mxu0 %v1206
        %v1347 = vpop.f32.mrf.mxu0
        %v1348 = vadd.f32 %v1283, %v1347
        %v1349 = vpop.f32.mrf.mxu0
        %v1350 = vpop.f32.mrf.mxu0
        %v1351 = vadd.f32 %v1286, %v1350
        %v1352 = vpop.f32.mrf.mxu0
        %1353 = vdwg.mxu0
        %v1354 = vmul.f32 %v1324, %v836
        %v1355 = vmul.f32 %v1327, %v836
        %v1356 = vmul.f32 %v1332, %v836
        %v1357 = vmul.f32 %v1335, %v836
        %v1358 = vmul.f32 %v1340, %v836
        %v1359 = vmul.f32 %v1343, %v836
        %v1360 = vmul.f32 %v1348, %v836
        %v1361 = vmul.f32 %v1351, %v836
        %v1362 = vadd.f32 %v1354, %v850
        %v1363 = vadd.f32 %v1355, %v850
        %v1364 = vadd.f32 %v1356, %v850
        %v1365 = vadd.f32 %v1357, %v850
        %v1366 = vadd.f32 %v1358, %v850
        %v1367 = vadd.f32 %v1359, %v850
        %v1368 = vadd.f32 %v1360, %v850
        %v1369 = vadd.f32 %v1361, %v850
        %v1370 = vmax.f32 %v1362, 0.0
        %v1371 = vmax.f32 %v1363, 0.0
        %v1372 = vmax.f32 %v1364, 0.0
        %v1373 = vmax.f32 %v1365, 0.0
        %v1374 = vmax.f32 %v1366, 0.0
        %v1375 = vmax.f32 %v1367, 0.0
        %v1376 = vmax.f32 %v1368, 0.0
        %v1377 = vmax.f32 %v1369, 0.0
        %s1378 = scalar_lea.vmem %s317, 384 [#allocation2]
        %v1379 = vld [vmem:[%s1378] sm:$0xff]
        %v1380 = vld [vmem:[%s1378 + $0x8] sm:$0xff]
        %v1381 = vld [vmem:[%s1378 + $0x10] sm:$0xff]
        %v1382 = vld [vmem:[%s1378 + $0x18] sm:$0xff]
        %v1383 = vld [vmem:[%s1378 + $0x20] sm:$0xff]
        %v1384 = vld [vmem:[%s1378 + $0x28] sm:$0xff]
        %v1385 = vld [vmem:[%s1378 + $0x30] sm:$0xff]
        %v1386 = vld [vmem:[%s1378 + $0x38] sm:$0xff]
        %v1387 = vld [vmem:[%s1378 + $0x40] sm:$0xff]
        %v1388 = vld [vmem:[%s1378 + $0x48] sm:$0xff]
        %v1389 = vld [vmem:[%s1378 + $0x50] sm:$0xff]
        %v1390 = vld [vmem:[%s1378 + $0x58] sm:$0xff]
        %v1391 = vld [vmem:[%s1378 + $0x60] sm:$0xff]
        %v1392 = vld [vmem:[%s1378 + $0x68] sm:$0xff]
        %v1393 = vld [vmem:[%s1378 + $0x70] sm:$0xff]
        %v1394 = vld [vmem:[%s1378 + $0x78] sm:$0xff]
        %v1411 = vunpack.c.l.b16 %v1379
        %v1412 = vunpack.c.h.b16 %v1379
        %v1413 = vunpack.c.l.b16 %v1380
        %v1414 = vunpack.c.h.b16 %v1380
        %v1415 = vunpack.c.l.b16 %v1381
        %v1416 = vunpack.c.h.b16 %v1381
        %v1417 = vunpack.c.l.b16 %v1382
        %v1418 = vunpack.c.h.b16 %v1382
        %v1419 = vunpack.c.l.b16 %v1383
        %v1420 = vunpack.c.h.b16 %v1383
        %v1421 = vunpack.c.l.b16 %v1384
        %v1422 = vunpack.c.h.b16 %v1384
        %v1423 = vunpack.c.l.b16 %v1385
        %v1424 = vunpack.c.h.b16 %v1385
        %v1425 = vunpack.c.l.b16 %v1386
        %v1426 = vunpack.c.h.b16 %v1386
        %v1427 = vunpack.c.l.b16 %v1387
        %v1428 = vunpack.c.h.b16 %v1387
        %v1429 = vunpack.c.l.b16 %v1388
        %v1430 = vunpack.c.h.b16 %v1388
        %v1431 = vunpack.c.l.b16 %v1389
        %v1432 = vunpack.c.h.b16 %v1389
        %v1433 = vunpack.c.l.b16 %v1390
        %v1434 = vunpack.c.h.b16 %v1390
        %v1435 = vunpack.c.l.b16 %v1391
        %v1436 = vunpack.c.h.b16 %v1391
        %v1437 = vunpack.c.l.b16 %v1392
        %v1438 = vunpack.c.h.b16 %v1392
        %v1439 = vunpack.c.l.b16 %v1393
        %v1440 = vunpack.c.h.b16 %v1393
        %v1441 = vunpack.c.l.b16 %v1394
        %v1442 = vunpack.c.h.b16 %v1394
        %v1443 = vpack.c.b16 %v1415, %v1411
        %v1444 = vpack.c.b16 %v1416, %v1412
        %v1445 = vpack.c.b16 %v1417, %v1413
        %v1446 = vpack.c.b16 %v1418, %v1414
        %v1447 = vpack.c.b16 %v1423, %v1419
        %v1448 = vpack.c.b16 %v1424, %v1420
        %v1449 = vpack.c.b16 %v1425, %v1421
        %v1450 = vpack.c.b16 %v1426, %v1422
        %v1451 = vpack.c.b16 %v1431, %v1427
        %v1452 = vpack.c.b16 %v1432, %v1428
        %v1453 = vpack.c.b16 %v1433, %v1429
        %v1454 = vpack.c.b16 %v1434, %v1430
        %v1455 = vpack.c.b16 %v1439, %v1435
        %v1456 = vpack.c.b16 %v1440, %v1436
        %v1457 = vpack.c.b16 %v1441, %v1437
        %v1458 = vpack.c.b16 %v1442, %v1438
        %1475 = vmatprep.subr.bf16.mxu0 0
        %1476 = vmatpush1.bf16.msra.mxu0 %v645
        %1477 = vmatprep.subr.bf16.mxu0 0
        %1478 = vmatpush1.bf16.msra.mxu0 %v644
        %1479 = vmatprep.subr.bf16.mxu0 0
        %1480 = vmatpush1.bf16.msra.mxu0 %v643
        %1481 = vmatprep.subr.bf16.mxu0 0
        %1482 = vmatpush1.bf16.msra.mxu0 %v642
        %1483 = vmatprep.subr.bf16.mxu0 0
        %1484 = vmatpush1.bf16.msra.mxu0 %v641
        %1485 = vmatprep.subr.bf16.mxu0 0
        %1486 = vmatpush1.bf16.msra.mxu0 %v640
        %1487 = vmatprep.subr.bf16.mxu0 0
        %1488 = vmatpush1.bf16.msra.mxu0 %v639
        %1489 = vmatprep.subr.bf16.mxu0 0
        %1490 = vmatpush1.bf16.msra.mxu0 %v638
        %1491 = vmatprep.subr.bf16.mxu0 0
        %1492 = vmatpush2.bf16.msra.mxu0 %v653
        %1493 = vmatprep.subr.bf16.mxu0 0
        %1494 = vmatpush2.bf16.msra.mxu0 %v652
        %1495 = vmatprep.subr.bf16.mxu0 0
        %1496 = vmatpush2.bf16.msra.mxu0 %v651
        %1497 = vmatprep.subr.bf16.mxu0 0
        %1498 = vmatpush2.bf16.msra.mxu0 %v650
        %1499 = vmatprep.subr.bf16.mxu0 0
        %1500 = vmatpush2.bf16.msra.mxu0 %v649
        %1501 = vmatprep.subr.bf16.mxu0 0
        %1502 = vmatpush2.bf16.msra.mxu0 %v648
        %1503 = vmatprep.subr.bf16.mxu0 0
        %1504 = vmatpush2.bf16.msra.mxu0 %v647
        %1505 = vmatprep.subr.bf16.mxu0 0
        %1506 = vmatpush2.bf16.msra.mxu0 %v646
        %1507 = vmatprep.mubr.bf16.mxu0 %v1444
        %1508 = vmatmul.mubr.bf16.gmra.mxu0 %v1443
        %v1509 = vpop.f32.mrf.mxu0
        %v1510 = vadd.f32 0.0, %v1509
        %v1511 = vpop.f32.mrf.mxu0
        %v1512 = vpop.f32.mrf.mxu0
        %v1513 = vadd.f32 0.0, %v1512
        %v1514 = vpop.f32.mrf.mxu0
        %1515 = vmatprep.mubr.bf16.mxu0 %v1448
        %1516 = vmatmul.mubr.bf16.gmra.mxu0 %v1447
        %v1517 = vpop.f32.mrf.mxu0
        %v1518 = vadd.f32 0.0, %v1517
        %v1519 = vpop.f32.mrf.mxu0
        %v1520 = vpop.f32.mrf.mxu0
        %v1521 = vadd.f32 0.0, %v1520
        %v1522 = vpop.f32.mrf.mxu0
        %1523 = vmatprep.mubr.bf16.mxu0 %v1452
        %1524 = vmatmul.mubr.bf16.gmra.mxu0 %v1451
        %v1525 = vpop.f32.mrf.mxu0
        %v1526 = vadd.f32 0.0, %v1525
        %v1527 = vpop.f32.mrf.mxu0
        %v1528 = vpop.f32.mrf.mxu0
        %v1529 = vadd.f32 0.0, %v1528
        %v1530 = vpop.f32.mrf.mxu0
        %1531 = vmatprep.mubr.bf16.mxu0 %v1456
        %1532 = vmatmul.mubr.bf16.gmra.mxu0 %v1455
        %v1533 = vpop.f32.mrf.mxu0
        %v1534 = vadd.f32 0.0, %v1533
        %v1535 = vpop.f32.mrf.mxu0
        %v1536 = vpop.f32.mrf.mxu0
        %v1537 = vadd.f32 0.0, %v1536
        %v1538 = vpop.f32.mrf.mxu0
        %1539 = vdwg.mxu0
        %1540 = vmatprep.subr.bf16.mxu0 0
        %1541 = vmatpush1.bf16.msra.mxu0 %v661
        %1542 = vmatprep.subr.bf16.mxu0 0
        %1543 = vmatpush1.bf16.msra.mxu0 %v660
        %1544 = vmatprep.subr.bf16.mxu0 0
        %1545 = vmatpush1.bf16.msra.mxu0 %v659
        %1546 = vmatprep.subr.bf16.mxu0 0
        %1547 = vmatpush1.bf16.msra.mxu0 %v658
        %1548 = vmatprep.subr.bf16.mxu0 0
        %1549 = vmatpush1.bf16.msra.mxu0 %v657
        %1550 = vmatprep.subr.bf16.mxu0 0
        %1551 = vmatpush1.bf16.msra.mxu0 %v656
        %1552 = vmatprep.subr.bf16.mxu0 0
        %1553 = vmatpush1.bf16.msra.mxu0 %v655
        %1554 = vmatprep.subr.bf16.mxu0 0
        %1555 = vmatpush1.bf16.msra.mxu0 %v654
        %1556 = vmatprep.subr.bf16.mxu0 0
        %1557 = vmatpush2.bf16.msra.mxu0 %v669
        %1558 = vmatprep.subr.bf16.mxu0 0
        %1559 = vmatpush2.bf16.msra.mxu0 %v668
        %1560 = vmatprep.subr.bf16.mxu0 0
        %1561 = vmatpush2.bf16.msra.mxu0 %v667
        %1562 = vmatprep.subr.bf16.mxu0 0
        %1563 = vmatpush2.bf16.msra.mxu0 %v666
        %1564 = vmatprep.subr.bf16.mxu0 0
        %1565 = vmatpush2.bf16.msra.mxu0 %v665
        %1566 = vmatprep.subr.bf16.mxu0 0
        %1567 = vmatpush2.bf16.msra.mxu0 %v664
        %1568 = vmatprep.subr.bf16.mxu0 0
        %1569 = vmatpush2.bf16.msra.mxu0 %v663
        %1570 = vmatprep.subr.bf16.mxu0 0
        %1571 = vmatpush2.bf16.msra.mxu0 %v662
        %1572 = vmatprep.mubr.bf16.mxu0 %v1446
        %1573 = vmatmul.mubr.bf16.gmra.mxu0 %v1445
        %v1574 = vpop.f32.mrf.mxu0
        %v1575 = vadd.f32 %v1510, %v1574
        %v1576 = vpop.f32.mrf.mxu0
        %v1577 = vpop.f32.mrf.mxu0
        %v1578 = vadd.f32 %v1513, %v1577
        %v1579 = vpop.f32.mrf.mxu0
        %1580 = vmatprep.mubr.bf16.mxu0 %v1450
        %1581 = vmatmul.mubr.bf16.gmra.mxu0 %v1449
        %v1582 = vpop.f32.mrf.mxu0
        %v1583 = vadd.f32 %v1518, %v1582
        %v1584 = vpop.f32.mrf.mxu0
        %v1585 = vpop.f32.mrf.mxu0
        %v1586 = vadd.f32 %v1521, %v1585
        %v1587 = vpop.f32.mrf.mxu0
        %1588 = vmatprep.mubr.bf16.mxu0 %v1454
        %1589 = vmatmul.mubr.bf16.gmra.mxu0 %v1453
        %v1590 = vpop.f32.mrf.mxu0
        %v1591 = vadd.f32 %v1526, %v1590
        %v1592 = vpop.f32.mrf.mxu0
        %v1593 = vpop.f32.mrf.mxu0
        %v1594 = vadd.f32 %v1529, %v1593
        %v1595 = vpop.f32.mrf.mxu0
        %1596 = vmatprep.mubr.bf16.mxu0 %v1458
        %1597 = vmatmul.mubr.bf16.gmra.mxu0 %v1457
        %v1598 = vpop.f32.mrf.mxu0
        %v1599 = vadd.f32 %v1534, %v1598
        %v1600 = vpop.f32.mrf.mxu0
        %v1601 = vpop.f32.mrf.mxu0
        %v1602 = vadd.f32 %v1537, %v1601
        %v1603 = vpop.f32.mrf.mxu0
        %1604 = vdwg.mxu0
        %v1605 = vmul.f32 %v1575, %v836
        %v1606 = vmul.f32 %v1578, %v836
        %v1607 = vmul.f32 %v1583, %v836
        %v1608 = vmul.f32 %v1586, %v836
        %v1609 = vmul.f32 %v1591, %v836
        %v1610 = vmul.f32 %v1594, %v836
        %v1611 = vmul.f32 %v1599, %v836
        %v1612 = vmul.f32 %v1602, %v836
        %v1613 = vadd.f32 %v1605, %v850
        %v1614 = vadd.f32 %v1606, %v850
        %v1615 = vadd.f32 %v1607, %v850
        %v1616 = vadd.f32 %v1608, %v850
        %v1617 = vadd.f32 %v1609, %v850
        %v1618 = vadd.f32 %v1610, %v850
        %v1619 = vadd.f32 %v1611, %v850
        %v1620 = vadd.f32 %v1612, %v850
        %v1621 = vmax.f32 %v1613, 0.0
        %v1622 = vmax.f32 %v1614, 0.0
        %v1623 = vmax.f32 %v1615, 0.0
        %v1624 = vmax.f32 %v1616, 0.0
        %v1625 = vmax.f32 %v1617, 0.0
        %v1626 = vmax.f32 %v1618, 0.0
        %v1627 = vmax.f32 %v1619, 0.0
        %v1628 = vmax.f32 %v1620, 0.0
        %v1629 = vmax.f32 %v1370, %v1621
        %v1630 = vmax.f32 %v1371, %v1622
        %v1631 = vmax.f32 %v1372, %v1623
        %v1632 = vmax.f32 %v1373, %v1624
        %v1633 = vmax.f32 %v1374, %v1625
        %v1634 = vmax.f32 %v1375, %v1626
        %v1635 = vmax.f32 %v1376, %v1627
        %v1636 = vmax.f32 %v1377, %v1628
        %v1637 = vmax.f32 %v1119, %v1629
        %v1638 = vmax.f32 %v1120, %v1630
        %v1639 = vmax.f32 %v1121, %v1631
        %v1640 = vmax.f32 %v1122, %v1632
        %v1641 = vmax.f32 %v1123, %v1633
        %v1642 = vmax.f32 %v1124, %v1634
        %v1643 = vmax.f32 %v1125, %v1635
        %v1644 = vmax.f32 %v1126, %v1636
        %1645 = vst [vmem:[%s345] sm:$0xff] %v1637
        %1646 = vst [vmem:[%s345 + $0x8] sm:$0xff] %v1638
        %1647 = vst [vmem:[%s345 + $0x10] sm:$0xff] %v1639
        %1648 = vst [vmem:[%s345 + $0x18] sm:$0xff] %v1640
        %1649 = vst [vmem:[%s345 + $0x20] sm:$0xff] %v1641
        %1650 = vst [vmem:[%s345 + $0x28] sm:$0xff] %v1642
        %1651 = vst [vmem:[%s345 + $0x30] sm:$0xff] %v1643
        %1652 = vst [vmem:[%s345 + $0x38] sm:$0xff] %v1644
        %s1653 = smul.u32 8, %s15
        %p1654 = scmp.lt.s32.totalorder %s1653, 15
        %s1655 = scalar_select %p1654, %s1653, 15
        %s1656 = smul.addr %s1655, 8
        %s1657 = scalar_lea.vmem %s4, %s1656
        // Predicated region
        $region60: #{lenet_pallas.4} parent=54 // pred_check
          %p1658 = pneg %p122
        $region61: #{lenet_pallas.4} parent=54 // pred_check_branch
          %1660 = sbr.rel (%p1658) target = $region63
        $region62: #{lenet_pallas.4} parent=54 // pred_region
          %s1661 = smul.u32 8, %s15
        $region63: #{lenet_pallas.4} parent=54 // pred_fallthru
          _
      $region55: #{lenet_pallas.4} parent=5 // pred_fallthru
        _
      %p1662 = scmp.le.s32.totalorder 2, %s10
      // Predicated region
      $region64: #{lenet_pallas.4} parent=5 // pred_check
        %p1663 = pneg %p1662
      $region65: #{lenet_pallas.4} parent=5 // pred_check_branch
        %1665 = sbr.rel (%p1663) target = $region67
      $region66: #{lenet_pallas.4} parent=5 // pred_region
        %s1666 = ssub.s32 %s10, 2
        // Predicated region
        $region68: #{lenet_pallas.4} parent=66 // pred_check
          %p1667 = pneg %p128
        $region69: #{lenet_pallas.4} parent=66 // pred_check_branch
          %1669 = sbr.rel (%p1667) target = $region71
        $region70: #{lenet_pallas.4} parent=66 // pred_region
          %s1670 = smul.u32 8, %s16
          %p1671 = scmp.lt.s32.totalorder %s1670, 15
          %s1672 = scalar_select %p1671, %s1670, 15
          %s1673 = smul.addr %s1672, 8
          %s1674 = scalar_lea.vmem %s4, %s1673
        $region71: #{lenet_pallas.4} parent=66 // pred_fallthru
          _
      $region67: #{lenet_pallas.4} parent=5 // pred_fallthru
        _
    $region6: #{lenet_pallas.4} parent=1 // loop_footer
      %s14 = sadd.s32 1, %s10
    $region7: #{lenet_pallas.4} parent=1 // loop_footer_branch
      %9 = sbr.rel target = $region3
    $region8: #{lenet_pallas.4} parent=1 // loop_exit
      _

// kernel: lenet_pallas.5
$region0: #{lenet_pallas.5}
  #allocation0 [shape = 'u32[]', space=smem, size = 0x4, offset = 0x4, fixed_abs, tag = 'smem constant byte address 0x4 - core index']
  #allocation1 [shape = 'u32[144,128]{1,0:T(1,128)}', space=vmem, size = 0x12000, scoped, tag = 'internal scratch']
  %s0 = inlined_call_operand.vmem [shape: bf16[32,256], index: 0, kind: input, shape index: {}]
  %s1 = inlined_call_operand.vmem [shape: bf16[256,512], index: 1, kind: input, shape index: {}]
  %s2 = inlined_call_operand.vmem [shape: f32[1,512], index: 2, kind: input, shape index: {}]
  %s3 = inlined_call_operand.vmem [shape: f32[1,512], index: 3, kind: input, shape index: {}]
  %s4 = inlined_call_operand.vmem [shape: bf16[512,128], index: 4, kind: input, shape index: {}]
  %s5 = inlined_call_operand.vmem [shape: f32[1,128], index: 5, kind: input, shape index: {}]
  %s6 = inlined_call_operand.vmem [shape: f32[32,128], index: 6, kind: output, shape index: {}]
  %s7 = sld [smem:[#allocation0]]
  $region34: #{lenet_pallas.5} parent=0
    _
  %s9 = ssub.s32 1, %s7
  %s10 = scalar_select 0, %s9, %s7
  // Predicated region
  $region2: #{lenet_pallas.5} parent=0 // pred_check
    _
  $region3: #{lenet_pallas.5} parent=0 // pred_check_branch
    %12 = sbr.rel (0) target = $region5
  $region4: #{lenet_pallas.5} parent=0 // pred_region
    _
  $region5: #{lenet_pallas.5} parent=0 // pred_fallthru
    _
  // Predicated region
  $region6: #{lenet_pallas.5} parent=0 // pred_check
    _
  $region7: #{lenet_pallas.5} parent=0 // pred_check_branch
    %14 = sbr.rel (0) target = $region9
  $region8: #{lenet_pallas.5} parent=0 // pred_region
    _
  $region9: #{lenet_pallas.5} parent=0 // pred_fallthru
    _
  // Predicated region
  $region10: #{lenet_pallas.5} parent=0 // pred_check
    _
  $region11: #{lenet_pallas.5} parent=0 // pred_check_branch
    %16 = sbr.rel (0) target = $region13
  $region12: #{lenet_pallas.5} parent=0 // pred_region
    _
  $region13: #{lenet_pallas.5} parent=0 // pred_fallthru
    _
  // Predicated region
  $region14: #{lenet_pallas.5} parent=0 // pred_check
    _
  $region15: #{lenet_pallas.5} parent=0 // pred_check_branch
    %18 = sbr.rel (0) target = $region17
  $region16: #{lenet_pallas.5} parent=0 // pred_region
    _
  $region17: #{lenet_pallas.5} parent=0 // pred_fallthru
    _
  // Predicated region
  $region18: #{lenet_pallas.5} parent=0 // pred_check
    _
  $region19: #{lenet_pallas.5} parent=0 // pred_check_branch
    %20 = sbr.rel (0) target = $region21
  $region20: #{lenet_pallas.5} parent=0 // pred_region
    _
  $region21: #{lenet_pallas.5} parent=0 // pred_fallthru
    _
  // Predicated region
  $region22: #{lenet_pallas.5} parent=0 // pred_check
    _
  $region23: #{lenet_pallas.5} parent=0 // pred_check_branch
    %22 = sbr.rel (0) target = $region25
  $region24: #{lenet_pallas.5} parent=0 // pred_region
    _
  $region25: #{lenet_pallas.5} parent=0 // pred_fallthru
    _
  %v24 = vld [vmem:[%s0] sm:$0xff]
  %v25 = vld [vmem:[%s0 + $0x8] sm:$0xff]
  %v26 = vld [vmem:[%s0 + $0x10] sm:$0xff]
  %v27 = vld [vmem:[%s0 + $0x18] sm:$0xff]
  %v28 = vld [vmem:[%s1] sm:$0xff]
  %v29 = vld [vmem:[%s1 + $0x8] sm:$0xff]
  %v30 = vld [vmem:[%s1 + $0x10] sm:$0xff]
  %v31 = vld [vmem:[%s1 + $0x18] sm:$0xff]
  %v32 = vld [vmem:[%s1 + $0x20] sm:$0xff]
  %v33 = vld [vmem:[%s1 + $0x28] sm:$0xff]
  %v34 = vld [vmem:[%s1 + $0x30] sm:$0xff]
  %v35 = vld [vmem:[%s1 + $0x38] sm:$0xff]
  %v36 = vld [vmem:[%s1 + $0x40] sm:$0xff]
  %v37 = vld [vmem:[%s1 + $0x48] sm:$0xff]
  %v38 = vld [vmem:[%s1 + $0x50] sm:$0xff]
  %v39 = vld [vmem:[%s1 + $0x58] sm:$0xff]
  %v40 = vld [vmem:[%s1 + $0x60] sm:$0xff]
  %v41 = vld [vmem:[%s1 + $0x68] sm:$0xff]
  %v42 = vld [vmem:[%s1 + $0x70] sm:$0xff]
  %v43 = vld [vmem:[%s1 + $0x78] sm:$0xff]
  %v44 = vld [vmem:[%s1 + $0x80] sm:$0xff]
  %v45 = vld [vmem:[%s1 + $0x88] sm:$0xff]
  %v46 = vld [vmem:[%s1 + $0x90] sm:$0xff]
  %v47 = vld [vmem:[%s1 + $0x98] sm:$0xff]
  %v48 = vld [vmem:[%s1 + $0xa0] sm:$0xff]
  %v49 = vld [vmem:[%s1 + $0xa8] sm:$0xff]
  %v50 = vld [vmem:[%s1 + $0xb0] sm:$0xff]
  %v51 = vld [vmem:[%s1 + $0xb8] sm:$0xff]
  %v52 = vld [vmem:[%s1 + $0xc0] sm:$0xff]
  %v53 = vld [vmem:[%s1 + $0xc8] sm:$0xff]
  %v54 = vld [vmem:[%s1 + $0xd0] sm:$0xff]
  %v55 = vld [vmem:[%s1 + $0xd8] sm:$0xff]
  %v56 = vld [vmem:[%s1 + $0xe0] sm:$0xff]
  %v57 = vld [vmem:[%s1 + $0xe8] sm:$0xff]
  %v58 = vld [vmem:[%s1 + $0xf0] sm:$0xff]
  %v59 = vld [vmem:[%s1 + $0xf8] sm:$0xff]
  %v60 = vld [vmem:[%s1 + $0x100] sm:$0xff]
  %v61 = vld [vmem:[%s1 + $0x108] sm:$0xff]
  %v62 = vld [vmem:[%s1 + $0x110] sm:$0xff]
  %v63 = vld [vmem:[%s1 + $0x118] sm:$0xff]
  %v64 = vld [vmem:[%s1 + $0x120] sm:$0xff]
  %v65 = vld [vmem:[%s1 + $0x128] sm:$0xff]
  %v66 = vld [vmem:[%s1 + $0x130] sm:$0xff]
  %v67 = vld [vmem:[%s1 + $0x138] sm:$0xff]
  %v68 = vld [vmem:[%s1 + $0x140] sm:$0xff]
  %v69 = vld [vmem:[%s1 + $0x148] sm:$0xff]
  %v70 = vld [vmem:[%s1 + $0x150] sm:$0xff]
  %v71 = vld [vmem:[%s1 + $0x158] sm:$0xff]
  %v72 = vld [vmem:[%s1 + $0x160] sm:$0xff]
  %v73 = vld [vmem:[%s1 + $0x168] sm:$0xff]
  %v74 = vld [vmem:[%s1 + $0x170] sm:$0xff]
  %v75 = vld [vmem:[%s1 + $0x178] sm:$0xff]
  %v76 = vld [vmem:[%s1 + $0x180] sm:$0xff]
  %v77 = vld [vmem:[%s1 + $0x188] sm:$0xff]
  %v78 = vld [vmem:[%s1 + $0x190] sm:$0xff]
  %v79 = vld [vmem:[%s1 + $0x198] sm:$0xff]
  %v80 = vld [vmem:[%s1 + $0x1a0] sm:$0xff]
  %v81 = vld [vmem:[%s1 + $0x1a8] sm:$0xff]
  %v82 = vld [vmem:[%s1 + $0x1b0] sm:$0xff]
  %v83 = vld [vmem:[%s1 + $0x1b8] sm:$0xff]
  %v84 = vld [vmem:[%s1 + $0x1c0] sm:$0xff]
  %v85 = vld [vmem:[%s1 + $0x1c8] sm:$0xff]
  %v86 = vld [vmem:[%s1 + $0x1d0] sm:$0xff]
  %v87 = vld [vmem:[%s1 + $0x1d8] sm:$0xff]
  %v88 = vld [vmem:[%s1 + $0x1e0] sm:$0xff]
  %v89 = vld [vmem:[%s1 + $0x1e8] sm:$0xff]
  %v90 = vld [vmem:[%s1 + $0x1f0] sm:$0xff]
  %v91 = vld [vmem:[%s1 + $0x1f8] sm:$0xff]
  %v96 = vunpack.c.l.b16 %v24
  %v97 = vunpack.c.h.b16 %v24
  %v98 = vunpack.c.l.b16 %v25
  %v99 = vunpack.c.h.b16 %v25
  %v100 = vunpack.c.l.b16 %v26
  %v101 = vunpack.c.h.b16 %v26
  %v102 = vunpack.c.l.b16 %v27
  %v103 = vunpack.c.h.b16 %v27
  %v104 = vpack.c.b16 %v98, %v96
  %v105 = vpack.c.b16 %v99, %v97
  %v106 = vpack.c.b16 %v102, %v100
  %v107 = vpack.c.b16 %v103, %v101
  %v176 = vunpack.c.l.b16 %v28
  %v177 = vunpack.c.h.b16 %v28
  %v178 = vunpack.c.l.b16 %v29
  %v179 = vunpack.c.h.b16 %v29
  %v180 = vunpack.c.l.b16 %v30
  %v181 = vunpack.c.h.b16 %v30
  %v182 = vunpack.c.l.b16 %v31
  %v183 = vunpack.c.h.b16 %v31
  %v184 = vunpack.c.l.b16 %v32
  %v185 = vunpack.c.h.b16 %v32
  %v186 = vunpack.c.l.b16 %v33
  %v187 = vunpack.c.h.b16 %v33
  %v188 = vunpack.c.l.b16 %v34
  %v189 = vunpack.c.h.b16 %v34
  %v190 = vunpack.c.l.b16 %v35
  %v191 = vunpack.c.h.b16 %v35
  %v192 = vunpack.c.l.b16 %v36
  %v193 = vunpack.c.h.b16 %v36
  %v194 = vunpack.c.l.b16 %v37
  %v195 = vunpack.c.h.b16 %v37
  %v196 = vunpack.c.l.b16 %v38
  %v197 = vunpack.c.h.b16 %v38
  %v198 = vunpack.c.l.b16 %v39
  %v199 = vunpack.c.h.b16 %v39
  %v200 = vunpack.c.l.b16 %v40
  %v201 = vunpack.c.h.b16 %v40
  %v202 = vunpack.c.l.b16 %v41
  %v203 = vunpack.c.h.b16 %v41
  %v204 = vunpack.c.l.b16 %v42
  %v205 = vunpack.c.h.b16 %v42
  %v206 = vunpack.c.l.b16 %v43
  %v207 = vunpack.c.h.b16 %v43
  %v208 = vunpack.c.l.b16 %v44
  %v209 = vunpack.c.h.b16 %v44
  %v210 = vunpack.c.l.b16 %v45
  %v211 = vunpack.c.h.b16 %v45
  %v212 = vunpack.c.l.b16 %v46
  %v213 = vunpack.c.h.b16 %v46
  %v214 = vunpack.c.l.b16 %v47
  %v215 = vunpack.c.h.b16 %v47
  %v216 = vunpack.c.l.b16 %v48
  %v217 = vunpack.c.h.b16 %v48
  %v218 = vunpack.c.l.b16 %v49
  %v219 = vunpack.c.h.b16 %v49
  %v220 = vunpack.c.l.b16 %v50
  %v221 = vunpack.c.h.b16 %v50
  %v222 = vunpack.c.l.b16 %v51
  %v223 = vunpack.c.h.b16 %v51
  %v224 = vunpack.c.l.b16 %v52
  %v225 = vunpack.c.h.b16 %v52
  %v226 = vunpack.c.l.b16 %v53
  %v227 = vunpack.c.h.b16 %v53
  %v228 = vunpack.c.l.b16 %v54
  %v229 = vunpack.c.h.b16 %v54
  %v230 = vunpack.c.l.b16 %v55
  %v231 = vunpack.c.h.b16 %v55
  %v232 = vunpack.c.l.b16 %v56
  %v233 = vunpack.c.h.b16 %v56
  %v234 = vunpack.c.l.b16 %v57
  %v235 = vunpack.c.h.b16 %v57
  %v236 = vunpack.c.l.b16 %v58
  %v237 = vunpack.c.h.b16 %v58
  %v238 = vunpack.c.l.b16 %v59
  %v239 = vunpack.c.h.b16 %v59
  %v240 = vunpack.c.l.b16 %v60
  %v241 = vunpack.c.h.b16 %v60
  %v242 = vunpack.c.l.b16 %v61
  %v243 = vunpack.c.h.b16 %v61
  %v244 = vunpack.c.l.b16 %v62
  %v245 = vunpack.c.h.b16 %v62
  %v246 = vunpack.c.l.b16 %v63
  %v247 = vunpack.c.h.b16 %v63
  %v248 = vunpack.c.l.b16 %v64
  %v249 = vunpack.c.h.b16 %v64
  %v250 = vunpack.c.l.b16 %v65
  %v251 = vunpack.c.h.b16 %v65
  %v252 = vunpack.c.l.b16 %v66
  %v253 = vunpack.c.h.b16 %v66
  %v254 = vunpack.c.l.b16 %v67
  %v255 = vunpack.c.h.b16 %v67
  %v256 = vunpack.c.l.b16 %v68
  %v257 = vunpack.c.h.b16 %v68
  %v258 = vunpack.c.l.b16 %v69
  %v259 = vunpack.c.h.b16 %v69
  %v260 = vunpack.c.l.b16 %v70
  %v261 = vunpack.c.h.b16 %v70
  %v262 = vunpack.c.l.b16 %v71
  %v263 = vunpack.c.h.b16 %v71
  %v264 = vunpack.c.l.b16 %v72
  %v265 = vunpack.c.h.b16 %v72
  %v266 = vunpack.c.l.b16 %v73
  %v267 = vunpack.c.h.b16 %v73
  %v268 = vunpack.c.l.b16 %v74
  %v269 = vunpack.c.h.b16 %v74
  %v270 = vunpack.c.l.b16 %v75
  %v271 = vunpack.c.h.b16 %v75
  %v272 = vunpack.c.l.b16 %v76
  %v273 = vunpack.c.h.b16 %v76
  %v274 = vunpack.c.l.b16 %v77
  %v275 = vunpack.c.h.b16 %v77
  %v276 = vunpack.c.l.b16 %v78
  %v277 = vunpack.c.h.b16 %v78
  %v278 = vunpack.c.l.b16 %v79
  %v279 = vunpack.c.h.b16 %v79
  %v280 = vunpack.c.l.b16 %v80
  %v281 = vunpack.c.h.b16 %v80
  %v282 = vunpack.c.l.b16 %v81
  %v283 = vunpack.c.h.b16 %v81
  %v284 = vunpack.c.l.b16 %v82
  %v285 = vunpack.c.h.b16 %v82
  %v286 = vunpack.c.l.b16 %v83
  %v287 = vunpack.c.h.b16 %v83
  %v288 = vunpack.c.l.b16 %v84
  %v289 = vunpack.c.h.b16 %v84
  %v290 = vunpack.c.l.b16 %v85
  %v291 = vunpack.c.h.b16 %v85
  %v292 = vunpack.c.l.b16 %v86
  %v293 = vunpack.c.h.b16 %v86
  %v294 = vunpack.c.l.b16 %v87
  %v295 = vunpack.c.h.b16 %v87
  %v296 = vunpack.c.l.b16 %v88
  %v297 = vunpack.c.h.b16 %v88
  %v298 = vunpack.c.l.b16 %v89
  %v299 = vunpack.c.h.b16 %v89
  %v300 = vunpack.c.l.b16 %v90
  %v301 = vunpack.c.h.b16 %v90
  %v302 = vunpack.c.l.b16 %v91
  %v303 = vunpack.c.h.b16 %v91
  %v304 = vpack.c.b16 %v180, %v176
  %v305 = vpack.c.b16 %v181, %v177
  %v306 = vpack.c.b16 %v182, %v178
  %v307 = vpack.c.b16 %v183, %v179
  %v308 = vpack.c.b16 %v188, %v184
  %v309 = vpack.c.b16 %v189, %v185
  %v310 = vpack.c.b16 %v190, %v186
  %v311 = vpack.c.b16 %v191, %v187
  %v312 = vpack.c.b16 %v196, %v192
  %v313 = vpack.c.b16 %v197, %v193
  %v314 = vpack.c.b16 %v198, %v194
  %v315 = vpack.c.b16 %v199, %v195
  %v316 = vpack.c.b16 %v204, %v200
  %v317 = vpack.c.b16 %v205, %v201
  %v318 = vpack.c.b16 %v206, %v202
  %v319 = vpack.c.b16 %v207, %v203
  %v320 = vpack.c.b16 %v212, %v208
  %v321 = vpack.c.b16 %v213, %v209
  %v322 = vpack.c.b16 %v214, %v210
  %v323 = vpack.c.b16 %v215, %v211
  %v324 = vpack.c.b16 %v220, %v216
  %v325 = vpack.c.b16 %v221, %v217
  %v326 = vpack.c.b16 %v222, %v218
  %v327 = vpack.c.b16 %v223, %v219
  %v328 = vpack.c.b16 %v228, %v224
  %v329 = vpack.c.b16 %v229, %v225
  %v330 = vpack.c.b16 %v230, %v226
  %v331 = vpack.c.b16 %v231, %v227
  %v332 = vpack.c.b16 %v236, %v232
  %v333 = vpack.c.b16 %v237, %v233
  %v334 = vpack.c.b16 %v238, %v234
  %v335 = vpack.c.b16 %v239, %v235
  %v336 = vpack.c.b16 %v244, %v240
  %v337 = vpack.c.b16 %v245, %v241
  %v338 = vpack.c.b16 %v246, %v242
  %v339 = vpack.c.b16 %v247, %v243
  %v340 = vpack.c.b16 %v252, %v248
  %v341 = vpack.c.b16 %v253, %v249
  %v342 = vpack.c.b16 %v254, %v250
  %v343 = vpack.c.b16 %v255, %v251
  %v344 = vpack.c.b16 %v260, %v256
  %v345 = vpack.c.b16 %v261, %v257
  %v346 = vpack.c.b16 %v262, %v258
  %v347 = vpack.c.b16 %v263, %v259
  %v348 = vpack.c.b16 %v268, %v264
  %v349 = vpack.c.b16 %v269, %v265
  %v350 = vpack.c.b16 %v270, %v266
  %v351 = vpack.c.b16 %v271, %v267
  %v352 = vpack.c.b16 %v276, %v272
  %v353 = vpack.c.b16 %v277, %v273
  %v354 = vpack.c.b16 %v278, %v274
  %v355 = vpack.c.b16 %v279, %v275
  %v356 = vpack.c.b16 %v284, %v280
  %v357 = vpack.c.b16 %v285, %v281
  %v358 = vpack.c.b16 %v286, %v282
  %v359 = vpack.c.b16 %v287, %v283
  %v360 = vpack.c.b16 %v292, %v288
  %v361 = vpack.c.b16 %v293, %v289
  %v362 = vpack.c.b16 %v294, %v290
  %v363 = vpack.c.b16 %v295, %v291
  %v364 = vpack.c.b16 %v300, %v296
  %v365 = vpack.c.b16 %v301, %v297
  %v366 = vpack.c.b16 %v302, %v298
  %v367 = vpack.c.b16 %v303, %v299
  %432 = vmatprep.subr.bf16.mxu0 %v333
  %433 = vmatpush1.bf16.msra.mxu0 %v332
  %434 = vmatprep.subr.bf16.mxu0 %v329
  %435 = vmatpush1.bf16.msra.mxu0 %v328
  %436 = vmatprep.subr.bf16.mxu0 %v325
  %437 = vmatpush1.bf16.msra.mxu0 %v324
  %438 = vmatprep.subr.bf16.mxu0 %v321
  %439 = vmatpush1.bf16.msra.mxu0 %v320
  %440 = vmatprep.subr.bf16.mxu0 %v317
  %441 = vmatpush1.bf16.msra.mxu0 %v316
  %442 = vmatprep.subr.bf16.mxu0 %v313
  %443 = vmatpush1.bf16.msra.mxu0 %v312
  %444 = vmatprep.subr.bf16.mxu0 %v309
  %445 = vmatpush1.bf16.msra.mxu0 %v308
  %446 = vmatprep.subr.bf16.mxu0 %v305
  %447 = vmatpush1.bf16.msra.mxu0 %v304
  %448 = vmatprep.subr.bf16.mxu0 %v365
  %449 = vmatpush2.bf16.msra.mxu0 %v364
  %450 = vmatprep.subr.bf16.mxu0 %v361
  %451 = vmatpush2.bf16.msra.mxu0 %v360
  %452 = vmatprep.subr.bf16.mxu0 %v357
  %453 = vmatpush2.bf16.msra.mxu0 %v356
  %454 = vmatprep.subr.bf16.mxu0 %v353
  %455 = vmatpush2.bf16.msra.mxu0 %v352
  %456 = vmatprep.subr.bf16.mxu0 %v349
  %457 = vmatpush2.bf16.msra.mxu0 %v348
  %458 = vmatprep.subr.bf16.mxu0 %v345
  %459 = vmatpush2.bf16.msra.mxu0 %v344
  %460 = vmatprep.subr.bf16.mxu0 %v341
  %461 = vmatpush2.bf16.msra.mxu0 %v340
  %462 = vmatprep.subr.bf16.mxu0 %v337
  %463 = vmatpush2.bf16.msra.mxu0 %v336
  %464 = vmatprep.mubr.bf16.mxu0 %v105
  %465 = vmatmul.mubr.bf16.gmra.mxu0 %v104
  %v466 = vpop.f32.mrf.mxu0
  %v467 = vadd.f32 0.0, %v466
  %v468 = vpop.f32.mrf.mxu0
  %v469 = vadd.f32 0.0, %v468
  %v470 = vpop.f32.mrf.mxu0
  %v471 = vadd.f32 0.0, %v470
  %v472 = vpop.f32.mrf.mxu0
  %v473 = vadd.f32 0.0, %v472
  %474 = vmatprep.mubr.bf16.mxu0 %v107
  %475 = vmatmul.mubr.bf16.gmra.mxu0 %v106
  %v476 = vpop.f32.mrf.mxu0
  %v477 = vadd.f32 0.0, %v476
  %v478 = vpop.f32.mrf.mxu0
  %v479 = vadd.f32 0.0, %v478
  %v480 = vpop.f32.mrf.mxu0
  %v481 = vadd.f32 0.0, %v480
  %v482 = vpop.f32.mrf.mxu0
  %v483 = vadd.f32 0.0, %v482
  %484 = vdwg.mxu0
  %485 = vmatprep.subr.bf16.mxu0 %v335
  %486 = vmatpush1.bf16.msra.mxu0 %v334
  %487 = vmatprep.subr.bf16.mxu0 %v331
  %488 = vmatpush1.bf16.msra.mxu0 %v330
  %489 = vmatprep.subr.bf16.mxu0 %v327
  %490 = vmatpush1.bf16.msra.mxu0 %v326
  %491 = vmatprep.subr.bf16.mxu0 %v323
  %492 = vmatpush1.bf16.msra.mxu0 %v322
  %493 = vmatprep.subr.bf16.mxu0 %v319
  %494 = vmatpush1.bf16.msra.mxu0 %v318
  %495 = vmatprep.subr.bf16.mxu0 %v315
  %496 = vmatpush1.bf16.msra.mxu0 %v314
  %497 = vmatprep.subr.bf16.mxu0 %v311
  %498 = vmatpush1.bf16.msra.mxu0 %v310
  %499 = vmatprep.subr.bf16.mxu0 %v307
  %500 = vmatpush1.bf16.msra.mxu0 %v306
  %501 = vmatprep.subr.bf16.mxu0 %v367
  %502 = vmatpush2.bf16.msra.mxu0 %v366
  %503 = vmatprep.subr.bf16.mxu0 %v363
  %504 = vmatpush2.bf16.msra.mxu0 %v362
  %505 = vmatprep.subr.bf16.mxu0 %v359
  %506 = vmatpush2.bf16.msra.mxu0 %v358
  %507 = vmatprep.subr.bf16.mxu0 %v355
  %508 = vmatpush2.bf16.msra.mxu0 %v354
  %509 = vmatprep.subr.bf16.mxu0 %v351
  %510 = vmatpush2.bf16.msra.mxu0 %v350
  %511 = vmatprep.subr.bf16.mxu0 %v347
  %512 = vmatpush2.bf16.msra.mxu0 %v346
  %513 = vmatprep.subr.bf16.mxu0 %v343
  %514 = vmatpush2.bf16.msra.mxu0 %v342
  %515 = vmatprep.subr.bf16.mxu0 %v339
  %516 = vmatpush2.bf16.msra.mxu0 %v338
  %517 = vmatprep.mubr.bf16.mxu0 %v105
  %518 = vmatmul.mubr.bf16.gmra.mxu0 %v104
  %v519 = vpop.f32.mrf.mxu0
  %v520 = vadd.f32 0.0, %v519
  %v521 = vpop.f32.mrf.mxu0
  %v522 = vadd.f32 0.0, %v521
  %v523 = vpop.f32.mrf.mxu0
  %v524 = vadd.f32 0.0, %v523
  %v525 = vpop.f32.mrf.mxu0
  %v526 = vadd.f32 0.0, %v525
  %527 = vmatprep.mubr.bf16.mxu0 %v107
  %528 = vmatmul.mubr.bf16.gmra.mxu0 %v106
  %v529 = vpop.f32.mrf.mxu0
  %v530 = vadd.f32 0.0, %v529
  %v531 = vpop.f32.mrf.mxu0
  %v532 = vadd.f32 0.0, %v531
  %v533 = vpop.f32.mrf.mxu0
  %v534 = vadd.f32 0.0, %v533
  %v535 = vpop.f32.mrf.mxu0
  %v536 = vadd.f32 0.0, %v535
  %537 = vdwg.mxu0
  %v538 = vld [vmem:[%s2] sm:$0xf]
  %v540 = vlaneseq
  %v541 = vshrl.u32 %v540, 7
  %v542 = vsub.s32 0, %v541
  %v543 = vrot.slane %v538, %v542
  %v544 = vlaneseq
  %v545 = vshrl.u32 %v544, 7
  %v546 = vsub.s32 1, %v545
  %v547 = vrot.slane %v538, %v546
  %v548 = vlaneseq
  %v549 = vshrl.u32 %v548, 7
  %v550 = vsub.s32 2, %v549
  %v551 = vrot.slane %v538, %v550
  %v552 = vlaneseq
  %v553 = vshrl.u32 %v552, 7
  %v554 = vsub.s32 3, %v553
  %v555 = vrot.slane %v538, %v554
  %v560 = vmul.f32 %v467, %v543
  %v561 = vmul.f32 %v469, %v547
  %v562 = vmul.f32 %v520, %v551
  %v563 = vmul.f32 %v522, %v555
  %v564 = vmul.f32 %v471, %v543
  %v565 = vmul.f32 %v473, %v547
  %v566 = vmul.f32 %v524, %v551
  %v567 = vmul.f32 %v526, %v555
  %v568 = vmul.f32 %v477, %v543
  %v569 = vmul.f32 %v479, %v547
  %v570 = vmul.f32 %v530, %v551
  %v571 = vmul.f32 %v532, %v555
  %v572 = vmul.f32 %v481, %v543
  %v573 = vmul.f32 %v483, %v547
  %v574 = vmul.f32 %v534, %v551
  %v575 = vmul.f32 %v536, %v555
  %v576 = vld [vmem:[%s3] sm:$0xf]
  %v578 = vlaneseq
  %v579 = vshrl.u32 %v578, 7
  %v580 = vsub.s32 0, %v579
  %v581 = vrot.slane %v576, %v580
  %v582 = vlaneseq
  %v583 = vshrl.u32 %v582, 7
  %v584 = vsub.s32 1, %v583
  %v585 = vrot.slane %v576, %v584
  %v586 = vlaneseq
  %v587 = vshrl.u32 %v586, 7
  %v588 = vsub.s32 2, %v587
  %v589 = vrot.slane %v576, %v588
  %v590 = vlaneseq
  %v591 = vshrl.u32 %v590, 7
  %v592 = vsub.s32 3, %v591
  %v593 = vrot.slane %v576, %v592
  %v598 = vadd.f32 %v560, %v581
  %v599 = vadd.f32 %v561, %v585
  %v600 = vadd.f32 %v562, %v589
  %v601 = vadd.f32 %v563, %v593
  %v602 = vadd.f32 %v564, %v581
  %v603 = vadd.f32 %v565, %v585
  %v604 = vadd.f32 %v566, %v589
  %v605 = vadd.f32 %v567, %v593
  %v606 = vadd.f32 %v568, %v581
  %v607 = vadd.f32 %v569, %v585
  %v608 = vadd.f32 %v570, %v589
  %v609 = vadd.f32 %v571, %v593
  %v610 = vadd.f32 %v572, %v581
  %v611 = vadd.f32 %v573, %v585
  %v612 = vadd.f32 %v574, %v589
  %v613 = vadd.f32 %v575, %v593
  %v614 = vmax.f32 %v598, 0.0
  %v615 = vmax.f32 %v599, 0.0
  %v616 = vmax.f32 %v600, 0.0
  %v617 = vmax.f32 %v601, 0.0
  %v618 = vmax.f32 %v602, 0.0
  %v619 = vmax.f32 %v603, 0.0
  %v620 = vmax.f32 %v604, 0.0
  %v621 = vmax.f32 %v605, 0.0
  %v622 = vmax.f32 %v606, 0.0
  %v623 = vmax.f32 %v607, 0.0
  %v624 = vmax.f32 %v608, 0.0
  %v625 = vmax.f32 %v609, 0.0
  %v626 = vmax.f32 %v610, 0.0
  %v627 = vmax.f32 %v611, 0.0
  %v628 = vmax.f32 %v612, 0.0
  %v629 = vmax.f32 %v613, 0.0
  %v630 = vpack.c.bf16 %v618, %v614
  %v631 = vpack.c.bf16 %v619, %v615
  %v632 = vpack.c.bf16 %v620, %v616
  %v633 = vpack.c.bf16 %v621, %v617
  %v634 = vpack.c.bf16 %v626, %v622
  %v635 = vpack.c.bf16 %v627, %v623
  %v636 = vpack.c.bf16 %v628, %v624
  %v637 = vpack.c.bf16 %v629, %v625
  %v638 = vld [vmem:[%s4] sm:$0xf]
  %v639 = vld [vmem:[%s4 + $0x4] sm:$0xf]
  %v640 = vld [vmem:[%s4 + $0x8] sm:$0xf]
  %v641 = vld [vmem:[%s4 + $0xc] sm:$0xf]
  %v642 = vld [vmem:[%s4 + $0x10] sm:$0xf]
  %v643 = vld [vmem:[%s4 + $0x14] sm:$0xf]
  %v644 = vld [vmem:[%s4 + $0x18] sm:$0xf]
  %v645 = vld [vmem:[%s4 + $0x1c] sm:$0xf]
  %v646 = vld [vmem:[%s4 + $0x20] sm:$0xf]
  %v647 = vld [vmem:[%s4 + $0x24] sm:$0xf]
  %v648 = vld [vmem:[%s4 + $0x28] sm:$0xf]
  %v649 = vld [vmem:[%s4 + $0x2c] sm:$0xf]
  %v650 = vld [vmem:[%s4 + $0x30] sm:$0xf]
  %v651 = vld [vmem:[%s4 + $0x34] sm:$0xf]
  %v652 = vld [vmem:[%s4 + $0x38] sm:$0xf]
  %v653 = vld [vmem:[%s4 + $0x3c] sm:$0xf]
  %v654 = vld [vmem:[%s4 + $0x40] sm:$0xf]
  %v655 = vld [vmem:[%s4 + $0x44] sm:$0xf]
  %v656 = vld [vmem:[%s4 + $0x48] sm:$0xf]
  %v657 = vld [vmem:[%s4 + $0x4c] sm:$0xf]
  %v658 = vld [vmem:[%s4 + $0x50] sm:$0xf]
  %v659 = vld [vmem:[%s4 + $0x54] sm:$0xf]
  %v660 = vld [vmem:[%s4 + $0x58] sm:$0xf]
  %v661 = vld [vmem:[%s4 + $0x5c] sm:$0xf]
  %v662 = vld [vmem:[%s4 + $0x60] sm:$0xf]
  %v663 = vld [vmem:[%s4 + $0x64] sm:$0xf]
  %v664 = vld [vmem:[%s4 + $0x68] sm:$0xf]
  %v665 = vld [vmem:[%s4 + $0x6c] sm:$0xf]
  %v666 = vld [vmem:[%s4 + $0x70] sm:$0xf]
  %v667 = vld [vmem:[%s4 + $0x74] sm:$0xf]
  %v668 = vld [vmem:[%s4 + $0x78] sm:$0xf]
  %v669 = vld [vmem:[%s4 + $0x7c] sm:$0xf]
  %v670 = vld [vmem:[%s4 + $0x80] sm:$0xf]
  %v671 = vld [vmem:[%s4 + $0x84] sm:$0xf]
  %v672 = vld [vmem:[%s4 + $0x88] sm:$0xf]
  %v673 = vld [vmem:[%s4 + $0x8c] sm:$0xf]
  %v674 = vld [vmem:[%s4 + $0x90] sm:$0xf]
  %v675 = vld [vmem:[%s4 + $0x94] sm:$0xf]
  %v676 = vld [vmem:[%s4 + $0x98] sm:$0xf]
  %v677 = vld [vmem:[%s4 + $0x9c] sm:$0xf]
  %v678 = vld [vmem:[%s4 + $0xa0] sm:$0xf]
  %v679 = vld [vmem:[%s4 + $0xa4] sm:$0xf]
  %v680 = vld [vmem:[%s4 + $0xa8] sm:$0xf]
  %v681 = vld [vmem:[%s4 + $0xac] sm:$0xf]
  %v682 = vld [vmem:[%s4 + $0xb0] sm:$0xf]
  %v683 = vld [vmem:[%s4 + $0xb4] sm:$0xf]
  %v684 = vld [vmem:[%s4 + $0xb8] sm:$0xf]
  %v685 = vld [vmem:[%s4 + $0xbc] sm:$0xf]
  %v686 = vld [vmem:[%s4 + $0xc0] sm:$0xf]
  %v687 = vld [vmem:[%s4 + $0xc4] sm:$0xf]
  %v688 = vld [vmem:[%s4 + $0xc8] sm:$0xf]
  %v689 = vld [vmem:[%s4 + $0xcc] sm:$0xf]
  %v690 = vld [vmem:[%s4 + $0xd0] sm:$0xf]
  %v691 = vld [vmem:[%s4 + $0xd4] sm:$0xf]
  %v692 = vld [vmem:[%s4 + $0xd8] sm:$0xf]
  %v693 = vld [vmem:[%s4 + $0xdc] sm:$0xf]
  %v694 = vld [vmem:[%s4 + $0xe0] sm:$0xf]
  %v695 = vld [vmem:[%s4 + $0xe4] sm:$0xf]
  %v696 = vld [vmem:[%s4 + $0xe8] sm:$0xf]
  %v697 = vld [vmem:[%s4 + $0xec] sm:$0xf]
  %v698 = vld [vmem:[%s4 + $0xf0] sm:$0xf]
  %v699 = vld [vmem:[%s4 + $0xf4] sm:$0xf]
  %v700 = vld [vmem:[%s4 + $0xf8] sm:$0xf]
  %v701 = vld [vmem:[%s4 + $0xfc] sm:$0xf]
  %v702 = vld [vmem:[%s5] sm:$0x1]
  %v704 = vlaneseq
  %v705 = vshrl.u32 %v704, 7
  %v706 = vsub.s32 0, %v705
  %v707 = vrot.slane %v702, %v706
  %v773 = vunpack.c.l.b16 %v638
  %v774 = vunpack.c.l.b16 %v639
  %v775 = vunpack.c.l.b16 %v640
  %v776 = vunpack.c.l.b16 %v641
  %v777 = vunpack.c.l.b16 %v642
  %v778 = vunpack.c.l.b16 %v643
  %v779 = vunpack.c.l.b16 %v644
  %v780 = vunpack.c.l.b16 %v645
  %v781 = vunpack.c.l.b16 %v646
  %v782 = vunpack.c.l.b16 %v647
  %v783 = vunpack.c.l.b16 %v648
  %v784 = vunpack.c.l.b16 %v649
  %v785 = vunpack.c.l.b16 %v650
  %v786 = vunpack.c.l.b16 %v651
  %v787 = vunpack.c.l.b16 %v652
  %v788 = vunpack.c.l.b16 %v653
  %v789 = vunpack.c.l.b16 %v654
  %v790 = vunpack.c.l.b16 %v655
  %v791 = vunpack.c.l.b16 %v656
  %v792 = vunpack.c.l.b16 %v657
  %v793 = vunpack.c.l.b16 %v658
  %v794 = vunpack.c.l.b16 %v659
  %v795 = vunpack.c.l.b16 %v660
  %v796 = vunpack.c.l.b16 %v661
  %v797 = vunpack.c.l.b16 %v662
  %v798 = vunpack.c.l.b16 %v663
  %v799 = vunpack.c.l.b16 %v664
  %v800 = vunpack.c.l.b16 %v665
  %v801 = vunpack.c.l.b16 %v666
  %v802 = vunpack.c.l.b16 %v667
  %v803 = vunpack.c.l.b16 %v668
  %v804 = vunpack.c.l.b16 %v669
  %v805 = vunpack.c.l.b16 %v670
  %v806 = vunpack.c.l.b16 %v671
  %v807 = vunpack.c.l.b16 %v672
  %v808 = vunpack.c.l.b16 %v673
  %v809 = vunpack.c.l.b16 %v674
  %v810 = vunpack.c.l.b16 %v675
  %v811 = vunpack.c.l.b16 %v676
  %v812 = vunpack.c.l.b16 %v677
  %v813 = vunpack.c.l.b16 %v678
  %v814 = vunpack.c.l.b16 %v679
  %v815 = vunpack.c.l.b16 %v680
  %v816 = vunpack.c.l.b16 %v681
  %v817 = vunpack.c.l.b16 %v682
  %v818 = vunpack.c.l.b16 %v683
  %v819 = vunpack.c.l.b16 %v684
  %v820 = vunpack.c.l.b16 %v685
  %v821 = vunpack.c.l.b16 %v686
  %v822 = vunpack.c.l.b16 %v687
  %v823 = vunpack.c.l.b16 %v688
  %v824 = vunpack.c.l.b16 %v689
  %v825 = vunpack.c.l.b16 %v690
  %v826 = vunpack.c.l.b16 %v691
  %v827 = vunpack.c.l.b16 %v692
  %v828 = vunpack.c.l.b16 %v693
  %v829 = vunpack.c.l.b16 %v694
  %v830 = vunpack.c.l.b16 %v695
  %v831 = vunpack.c.l.b16 %v696
  %v832 = vunpack.c.l.b16 %v697
  %v833 = vunpack.c.l.b16 %v698
  %v834 = vunpack.c.l.b16 %v699
  %v835 = vunpack.c.l.b16 %v700
  %v836 = vunpack.c.l.b16 %v701
  %v837 = vpack.c.b16 %v774, %v773
  %v838 = vpack.c.b16 %v776, %v775
  %v839 = vpack.c.b16 %v778, %v777
  %v840 = vpack.c.b16 %v780, %v779
  %v841 = vpack.c.b16 %v782, %v781
  %v842 = vpack.c.b16 %v784, %v783
  %v843 = vpack.c.b16 %v786, %v785
  %v844 = vpack.c.b16 %v788, %v787
  %v845 = vpack.c.b16 %v790, %v789
  %v846 = vpack.c.b16 %v792, %v791
  %v847 = vpack.c.b16 %v794, %v793
  %v848 = vpack.c.b16 %v796, %v795
  %v849 = vpack.c.b16 %v798, %v797
  %v850 = vpack.c.b16 %v800, %v799
  %v851 = vpack.c.b16 %v802, %v801
  %v852 = vpack.c.b16 %v804, %v803
  %v853 = vpack.c.b16 %v806, %v805
  %v854 = vpack.c.b16 %v808, %v807
  %v855 = vpack.c.b16 %v810, %v809
  %v856 = vpack.c.b16 %v812, %v811
  %v857 = vpack.c.b16 %v814, %v813
  %v858 = vpack.c.b16 %v816, %v815
  %v859 = vpack.c.b16 %v818, %v817
  %v860 = vpack.c.b16 %v820, %v819
  %v861 = vpack.c.b16 %v822, %v821
  %v862 = vpack.c.b16 %v824, %v823
  %v863 = vpack.c.b16 %v826, %v825
  %v864 = vpack.c.b16 %v828, %v827
  %v865 = vpack.c.b16 %v830, %v829
  %v866 = vpack.c.b16 %v832, %v831
  %v867 = vpack.c.b16 %v834, %v833
  %v868 = vpack.c.b16 %v836, %v835
  %901 = vmatprep.subr.bf16.mxu0 0
  %902 = vmatpush1.bf16.msra.mxu0 %v844
  %903 = vmatprep.subr.bf16.mxu0 0
  %904 = vmatpush1.bf16.msra.mxu0 %v843
  %905 = vmatprep.subr.bf16.mxu0 0
  %906 = vmatpush1.bf16.msra.mxu0 %v842
  %907 = vmatprep.subr.bf16.mxu0 0
  %908 = vmatpush1.bf16.msra.mxu0 %v841
  %909 = vmatprep.subr.bf16.mxu0 0
  %910 = vmatpush1.bf16.msra.mxu0 %v840
  %911 = vmatprep.subr.bf16.mxu0 0
  %912 = vmatpush1.bf16.msra.mxu0 %v839
  %913 = vmatprep.subr.bf16.mxu0 0
  %914 = vmatpush1.bf16.msra.mxu0 %v838
  %915 = vmatprep.subr.bf16.mxu0 0
  %916 = vmatpush1.bf16.msra.mxu0 %v837
  %917 = vmatprep.subr.bf16.mxu0 0
  %918 = vmatpush2.bf16.msra.mxu0 %v852
  %919 = vmatprep.subr.bf16.mxu0 0
  %920 = vmatpush2.bf16.msra.mxu0 %v851
  %921 = vmatprep.subr.bf16.mxu0 0
  %922 = vmatpush2.bf16.msra.mxu0 %v850
  %923 = vmatprep.subr.bf16.mxu0 0
  %924 = vmatpush2.bf16.msra.mxu0 %v849
  %925 = vmatprep.subr.bf16.mxu0 0
  %926 = vmatpush2.bf16.msra.mxu0 %v848
  %927 = vmatprep.subr.bf16.mxu0 0
  %928 = vmatpush2.bf16.msra.mxu0 %v847
  %929 = vmatprep.subr.bf16.mxu0 0
  %930 = vmatpush2.bf16.msra.mxu0 %v846
  %931 = vmatprep.subr.bf16.mxu0 0
  %932 = vmatpush2.bf16.msra.mxu0 %v845
  %933 = vmatprep.mubr.bf16.mxu0 %v631
  %934 = vmatmul.mubr.bf16.gmra.mxu0 %v630
  %v935 = vpop.f32.mrf.mxu0
  %v936 = vadd.f32 %v707, %v935
  %v937 = vpop.f32.mrf.mxu0
  %v938 = vpop.f32.mrf.mxu0
  %v939 = vadd.f32 %v707, %v938
  %v940 = vpop.f32.mrf.mxu0
  %941 = vmatprep.mubr.bf16.mxu0 %v635
  %942 = vmatmul.mubr.bf16.gmra.mxu0 %v634
  %v943 = vpop.f32.mrf.mxu0
  %v944 = vadd.f32 %v707, %v943
  %v945 = vpop.f32.mrf.mxu0
  %v946 = vpop.f32.mrf.mxu0
  %v947 = vadd.f32 %v707, %v946
  %v948 = vpop.f32.mrf.mxu0
  %949 = vdwg.mxu0
  %950 = vmatprep.subr.bf16.mxu0 0
  %951 = vmatpush1.bf16.msra.mxu0 %v860
  %952 = vmatprep.subr.bf16.mxu0 0
  %953 = vmatpush1.bf16.msra.mxu0 %v859
  %954 = vmatprep.subr.bf16.mxu0 0
  %955 = vmatpush1.bf16.msra.mxu0 %v858
  %956 = vmatprep.subr.bf16.mxu0 0
  %957 = vmatpush1.bf16.msra.mxu0 %v857
  %958 = vmatprep.subr.bf16.mxu0 0
  %959 = vmatpush1.bf16.msra.mxu0 %v856
  %960 = vmatprep.subr.bf16.mxu0 0
  %961 = vmatpush1.bf16.msra.mxu0 %v855
  %962 = vmatprep.subr.bf16.mxu0 0
  %963 = vmatpush1.bf16.msra.mxu0 %v854
  %964 = vmatprep.subr.bf16.mxu0 0
  %965 = vmatpush1.bf16.msra.mxu0 %v853
  %966 = vmatprep.subr.bf16.mxu0 0
  %967 = vmatpush2.bf16.msra.mxu0 %v868
  %968 = vmatprep.subr.bf16.mxu0 0
  %969 = vmatpush2.bf16.msra.mxu0 %v867
  %970 = vmatprep.subr.bf16.mxu0 0
  %971 = vmatpush2.bf16.msra.mxu0 %v866
  %972 = vmatprep.subr.bf16.mxu0 0
  %973 = vmatpush2.bf16.msra.mxu0 %v865
  %974 = vmatprep.subr.bf16.mxu0 0
  %975 = vmatpush2.bf16.msra.mxu0 %v864
  %976 = vmatprep.subr.bf16.mxu0 0
  %977 = vmatpush2.bf16.msra.mxu0 %v863
  %978 = vmatprep.subr.bf16.mxu0 0
  %979 = vmatpush2.bf16.msra.mxu0 %v862
  %980 = vmatprep.subr.bf16.mxu0 0
  %981 = vmatpush2.bf16.msra.mxu0 %v861
  %982 = vmatprep.mubr.bf16.mxu0 %v633
  %983 = vmatmul.mubr.bf16.gmra.mxu0 %v632
  %v984 = vpop.f32.mrf.mxu0
  %v985 = vadd.f32 %v936, %v984
  %v986 = vpop.f32.mrf.mxu0
  %v987 = vpop.f32.mrf.mxu0
  %v988 = vadd.f32 %v939, %v987
  %v989 = vpop.f32.mrf.mxu0
  %990 = vmatprep.mubr.bf16.mxu0 %v637
  %991 = vmatmul.mubr.bf16.gmra.mxu0 %v636
  %v992 = vpop.f32.mrf.mxu0
  %v993 = vadd.f32 %v944, %v992
  %v994 = vpop.f32.mrf.mxu0
  %v995 = vpop.f32.mrf.mxu0
  %v996 = vadd.f32 %v947, %v995
  %v997 = vpop.f32.mrf.mxu0
  %998 = vdwg.mxu0
  %999 = vst [vmem:[%s6] sm:$0xff] %v985
  %1000 = vst [vmem:[%s6 + $0x8] sm:$0xff] %v988
  %1001 = vst [vmem:[%s6 + $0x10] sm:$0xff] %v993
  %1002 = vst [vmem:[%s6 + $0x18] sm:$0xff] %v996
  // Predicated region
  $region26: #{lenet_pallas.5} parent=0 // pred_check
    _
  $region27: #{lenet_pallas.5} parent=0 // pred_check_branch
    %1004 = sbr.rel (0) target = $region29
  $region28: #{lenet_pallas.5} parent=0 // pred_region
    _
  $region29: #{lenet_pallas.5} parent=0 // pred_fallthru
    _
  // Predicated region
  $region30: #{lenet_pallas.5} parent=0 // pred_check
    _
  $region31: #{lenet_pallas.5} parent=0 // pred_check_branch
    %1006 = sbr.rel (0) target = $region33
  $region32: #{lenet_pallas.5} parent=0 // pred_region
    _
  $region33: #{lenet_pallas.5} parent=0 // pred_fallthru
    _

</llo_original>
